<compile_context>
chip_gen: v5e
topology: v5e:2x2
jax: 0.10.0
libtpu: 0.0.40
codegen_flags: <defaults>
</compile_context>

<pallas_src>
import math
from functools import partial

import jax
import jax.numpy as jnp
from jax.experimental import pallas as pl
from jax.experimental.pallas import tpu as pltpu

# ------------------------- small synthetic config -------------------------
CFG = dict(
    vocab=64,        # vocab size (synthetic; real BioLinkBERT ~28.9k)
    type_vocab=2,
    max_pos=16,
    hidden=32,       # hidden size
    heads=2,         # attention heads (head_dim = 16)
    layers=2,        # transformer layers
    ffn=64,          # intermediate size
    num_cls=3,       # self.W = nn.Linear(hidden, 3)
)


def _vmem_limit_bytes():
    # ~75% of physical VMEM, capped at 96 MiB: v5e/v6e (128 MiB) -> 96 MiB,
    # v7x (64 MiB) -> 48 MiB. Falls back to a conservative 48 MiB.
    try:
        cap = pltpu.get_tpu_info().vmem_capacity_bytes
        return int(min(cap * 3 // 4, 96 << 20))
    except Exception:
        return 48 << 20


_VMEM_LIMIT = _vmem_limit_bytes()


def _tile(dim, pref, align):
    """Largest tile <= pref that divides dim, preferring multiples of `align`.

    Never returns the full dimension when dim > pref (the old behaviour that
    blew VMEM at production vocab / 3H sizes).
    """
    if dim <= pref:
        return dim
    start = (pref // align) * align
    for t in range(start, 0, -align):
        if dim % t == 0:
            return t
    for t in range(pref, 7, -1):          # unaligned fallback (rare shapes)
        if dim % t == 0:
            return t
    return dim                             # no usable divisor; caller must pad


# ------------------------------ Pallas kernels ----------------------------

def _matmul_bias_kernel(x_ref, w_ref, b_ref, o_ref, acc_ref, *, act):
    # y = act(x @ W + b), k-tiled with f32 accumulator.
    k = pl.program_id(2)

    @pl.when(k == 0)
    def _():
        acc_ref[...] = jnp.zeros_like(acc_ref)

    acc_ref[...] += jnp.dot(x_ref[...], w_ref[...],
                            preferred_element_type=jnp.float32)

    @pl.when(k == pl.num_programs(2) - 1)
    def _():
        y = acc_ref[...] + b_ref[...]
        if act == "gelu":
            # TODO(synk): HF BERT uses exact erf-GELU; tanh approximation here.
            y = 0.5 * y * (1.0 + jnp.tanh(0.7978845608028654 *
                                          (y + 0.044715 * y * y * y)))
        o_ref[...] = y.astype(o_ref.dtype)


def _matmul_bias_add_ln_kernel(x_ref, w_ref, b_ref, r_ref, g_ref, beta_ref,
                               o_ref, acc_ref):
    # y = LayerNorm(x @ W + b + residual) * gamma + beta   (eps = 1e-12)
    # N axis is un-tiled (full row needed for LN statistics).
    k = pl.program_id(1)

    @pl.when(k == 0)
    def _():
        acc_ref[...] = jnp.zeros_like(acc_ref)

    acc_ref[...] += jnp.dot(x_ref[...], w_ref[...],
                            preferred_element_type=jnp.float32)

    @pl.when(k == pl.num_programs(1) - 1)
    def _():
        h = acc_ref[...] + b_ref[...] + r_ref[...].astype(jnp.float32)
        mu = jnp.mean(h, axis=-1, keepdims=True)
        var = jnp.mean((h - mu) ** 2, axis=-1, keepdims=True)
        o_ref[...] = ((h - mu) * jax.lax.rsqrt(var + 1e-12) * g_ref[...]
                      + beta_ref[...]).astype(o_ref.dtype)


def _layernorm_kernel(x_ref, g_ref, b_ref, o_ref):
    # LayerNorm(x) * gamma + beta (f32 statistics).
    h = x_ref[...].astype(jnp.float32)
    mu = jnp.mean(h, axis=-1, keepdims=True)
    var = jnp.mean((h - mu) ** 2, axis=-1, keepdims=True)
    o_ref[...] = ((h - mu) * jax.lax.rsqrt(var + 1e-12) * g_ref[...]
                  + b_ref[...]).astype(o_ref.dtype)


def _embed_ln_kernel(we_ref, pe_ref, te_ref, g_ref, b_ref, o_ref):
    # Fused (word + position + type) embedding sum + LayerNorm.
    h = (we_ref[...].astype(jnp.float32) + pe_ref[...].astype(jnp.float32)
         + te_ref[...].astype(jnp.float32))
    mu = jnp.mean(h, axis=-1, keepdims=True)
    var = jnp.mean((h - mu) ** 2, axis=-1, keepdims=True)
    o_ref[...] = ((h - mu) * jax.lax.rsqrt(var + 1e-12) * g_ref[...]
                  + b_ref[...]).astype(o_ref.dtype)


def _attention_kernel(qkv_ref, bias_ref, o_ref, *, n_heads, head_dim, scale):
    # One batch element per grid step.  qkv_ref is the (S, 3H) slab of the
    # fused QKV projection; heads are contiguous lane-slices.  Output is the
    # lane-dense (S, H) block consumed directly by the wo matmul (no JAX-level
    # transposes); the HBM writeback of the full block is an unmasked store.
    # TODO(synk): for long sequences (S>=512) tile the q rows flash-style to
    # bound the live [S, S] score tensor further.
    H = n_heads * head_dim
    bias = bias_ref[0]                                 # [1, S] f32 mask bias
    for h in range(n_heads):
        q = qkv_ref[:, h * head_dim:(h + 1) * head_dim]           # [S, dh] bf16
        k = qkv_ref[:, H + h * head_dim:H + (h + 1) * head_dim]
        v = qkv_ref[:, 2 * H + h * head_dim:2 * H + (h + 1) * head_dim]
        # q @ k.T : native transposed-RHS MXU matmul (no XLU transpose).
        s = jax.lax.dot_general(q, k, (((1,), (1,)), ((), ())),
                                preferred_element_type=jnp.float32) * scale
        s = s + bias                                   # broadcast over queries
        s = s - jnp.max(s, axis=-1, keepdims=True)
        p = jnp.exp(s)
        denom = jnp.sum(p, axis=-1, keepdims=True)
        p = p * pl.reciprocal(denom, approx=True)      # EUP slot, frees VALU
        out_h = jnp.dot(p.astype(v.dtype), v,
                        preferred_element_type=jnp.float32)
        o_ref[:, h * head_dim:(h + 1) * head_dim] = out_h.astype(o_ref.dtype)


def _decoder_xent_kernel(t_ref, emb_ref, b_ref, lbl_ref, o_ref,
                         m_sc, l_sc, pick_sc, *, v_true):
    # Fused tied-decoder matmul + masked cross-entropy, streaming logsumexp over
    # vocab tiles.  Never materializes [M, V] logits or a one-hot matrix.
    # Emits PER-ROW losses (0 where label == -100); the M axis is "parallel".
    v = pl.program_id(1)
    nv = pl.num_programs(1)

    @pl.when(v == 0)
    def _():
        m_sc[...] = jnp.full_like(m_sc, -jnp.inf)
        l_sc[...] = jnp.zeros_like(l_sc)
        pick_sc[...] = jnp.zeros_like(pick_sc)

    # logits tile [tm, tv]: contract t [tm, H] with emb [tv, H] over H
    # (transposed-RHS form, reads the embedding table directly).
    s = jax.lax.dot_general(t_ref[...], emb_ref[...],
                            (((1,), (1,)), ((), ())),
                            preferred_element_type=jnp.float32) + b_ref[...]

    tv = s.shape[-1]
    col = jax.lax.broadcasted_iota(jnp.int32, s.shape, 1) + v * tv
    # mask cdiv-padded vocab columns (each tile still has >=1 real column)
    s = jnp.where(col < v_true, s, -1e30)

    # online logsumexp
    m_new = jnp.maximum(m_sc[...], jnp.max(s, axis=-1, keepdims=True))
    l_sc[...] = (l_sc[...] * jnp.exp(m_sc[...] - m_new)
                 + jnp.sum(jnp.exp(s - m_new), axis=-1, keepdims=True))
    m_sc[...] = m_new

    # gather the label logit from this vocab tile (no one-hot)
    hit = (col == lbl_ref[...])                        # labels [tm, 1] int32
    pick_sc[...] += jnp.sum(jnp.where(hit, s, 0.0), axis=-1, keepdims=True)

    @pl.when(v == nv - 1)
    def _():
        valid = (lbl_ref[...] != -100)
        o_ref[...] = jnp.where(valid,
                               jnp.log(l_sc[...]) + m_sc[...] - pick_sc[...],
                               0.0)


# ------------------------------ kernel wrappers ----------------------------

def pallas_matmul(x, w, b, *, act="none", out_dtype=jnp.bfloat16,
                  tm_pref=256, tn_pref=512, tk_pref=512):
    M, K = x.shape
    _, N = w.shape
    tm = _tile(M, tm_pref, 8)
    tn = _tile(N, tn_pref, 128)
    tk = _tile(K, tk_pref, 128)
    grid = (M // tm, N // tn, K // tk)
    w_spec_kwargs = {}
    if grid[2] >= 3:            # deeper buffering for the streamed weight (v5e)
        w_spec_kwargs["pipeline_mode"] = pl.Buffered(3)
    return pl.pallas_call(
        partial(_matmul_bias_kernel, act=act),
        out_shape=jax.ShapeDtypeStruct((M, N), out_dtype),
        grid_spec=pltpu.PrefetchScalarGridSpec(
            num_scalar_prefetch=0, grid=grid,
            in_specs=[pl.BlockSpec((tm, tk), lambda i, j, k: (i, k)),
                      pl.BlockSpec((tk, tn), lambda i, j, k: (k, j),
                                   **w_spec_kwargs),
                      pl.BlockSpec((1, tn), lambda i, j, k: (0, j))],
            out_specs=pl.BlockSpec((tm, tn), lambda i, j, k: (i, j)),
            scratch_shapes=[pltpu.VMEM((tm, tn), jnp.float32)]),
        compiler_params=pltpu.CompilerParams(
            dimension_semantics=("parallel", "parallel", "arbitrary"),
            vmem_limit_bytes=_VMEM_LIMIT),
    )(x.astype(jnp.bfloat16), w.astype(jnp.bfloat16),
      b.reshape(1, N).astype(jnp.float32))


def pallas_matmul_add_ln(x, w, b, residual, gamma, beta, *,
                         out_dtype=jnp.bfloat16, tm_pref=256, tk_pref=512):
    M, K = x.shape
    _, N = w.shape
    tm = _tile(M, tm_pref, 8)
    tk = _tile(K, tk_pref, 128)
    grid = (M // tm, K // tk)
    return pl.pallas_call(
        _matmul_bias_add_ln_kernel,
        out_shape=jax.ShapeDtypeStruct((M, N), out_dtype),
        grid_spec=pltpu.PrefetchScalarGridSpec(
            num_scalar_prefetch=0, grid=grid,
            in_specs=[pl.BlockSpec((tm, tk), lambda i, k: (i, k)),
                      pl.BlockSpec((tk, N), lambda i, k: (k, 0)),
                      pl.BlockSpec((1, N), lambda i, k: (0, 0)),
                      pl.BlockSpec((tm, N), lambda i, k: (i, 0)),
                      pl.BlockSpec((1, N), lambda i, k: (0, 0)),
                      pl.BlockSpec((1, N), lambda i, k: (0, 0))],
            out_specs=pl.BlockSpec((tm, N), lambda i, k: (i, 0)),
            scratch_shapes=[pltpu.VMEM((tm, N), jnp.float32)]),
        compiler_params=pltpu.CompilerParams(
            dimension_semantics=("parallel", "arbitrary"),
            vmem_limit_bytes=_VMEM_LIMIT),
    )(x.astype(jnp.bfloat16), w.astype(jnp.bfloat16),
      b.reshape(1, N).astype(jnp.float32), residual.astype(jnp.bfloat16),
      gamma.reshape(1, N).astype(jnp.float32),
      beta.reshape(1, N).astype(jnp.float32))


def pallas_layernorm(x, gamma, beta, *, out_dtype=jnp.bfloat16, tm_pref=256):
    M, N = x.shape
    tm = _tile(M, tm_pref, 8)
    return pl.pallas_call(
        _layernorm_kernel,
        out_shape=jax.ShapeDtypeStruct((M, N), out_dtype),
        grid_spec=pltpu.PrefetchScalarGridSpec(
            num_scalar_prefetch=0, grid=(M // tm,),
            in_specs=[pl.BlockSpec((tm, N), lambda i: (i, 0)),
                      pl.BlockSpec((1, N), lambda i: (0, 0)),
                      pl.BlockSpec((1, N), lambda i: (0, 0))],
            out_specs=pl.BlockSpec((tm, N), lambda i: (i, 0))),
        compiler_params=pltpu.CompilerParams(
            dimension_semantics=("parallel",),
            vmem_limit_bytes=_VMEM_LIMIT),
    )(x, gamma.reshape(1, N).astype(jnp.float32),
      beta.reshape(1, N).astype(jnp.float32))


def pallas_embed_ln(we, pe, te, gamma, beta, *, B, S, out_dtype=jnp.bfloat16):
    # we, te: [B*S, H] bf16; pe: [S, H] bf16. One batch element per grid step.
    M, H = we.shape
    return pl.pallas_call(
        _embed_ln_kernel,
        out_shape=jax.ShapeDtypeStruct((M, H), out_dtype),
        grid_spec=pltpu.PrefetchScalarGridSpec(
            num_scalar_prefetch=0, grid=(B,),
            in_specs=[pl.BlockSpec((S, H), lambda b: (b, 0)),
                      pl.BlockSpec((S, H), lambda b: (0, 0)),
                      pl.BlockSpec((S, H), lambda b: (b, 0)),
                      pl.BlockSpec((1, H), lambda b: (0, 0)),
                      pl.BlockSpec((1, H), lambda b: (0, 0))],
            out_specs=pl.BlockSpec((S, H), lambda b: (b, 0))),
        compiler_params=pltpu.CompilerParams(
            dimension_semantics=("parallel",),
            vmem_limit_bytes=_VMEM_LIMIT),
    )(we, pe, te, gamma.reshape(1, H).astype(jnp.float32),
      beta.reshape(1, H).astype(jnp.float32))


def pallas_attention(qkv, bias, *, B, S, n_heads, head_dim):
    # qkv: [B*S, 3H] bf16 (fused projection, untouched by JAX transposes);
    # bias: [B, 1, S] f32 additive mask.  Output [B*S, H] bf16, lane-dense.
    M, threeH = qkv.shape
    H = n_heads * head_dim
    return pl.pallas_call(
        partial(_attention_kernel, n_heads=n_heads, head_dim=head_dim,
                scale=1.0 / math.sqrt(head_dim)),
        out_shape=jax.ShapeDtypeStruct((M, H), jnp.bfloat16),
        grid_spec=pltpu.PrefetchScalarGridSpec(
            num_scalar_prefetch=0, grid=(B,),
            in_specs=[pl.BlockSpec((S, threeH), lambda b: (b, 0)),
                      pl.BlockSpec((1, 1, S), lambda b: (b, 0, 0))],
            out_specs=pl.BlockSpec((S, H), lambda b: (b, 0))),
        compiler_params=pltpu.CompilerParams(
            dimension_semantics=("parallel",),
            vmem_limit_bytes=_VMEM_LIMIT),
    )(qkv, bias)


def pallas_decoder_xent(t, word_emb, dec_bias, labels, *,
                        tm_pref=256, tv_pref=512):
    # Returns per-row masked cross-entropies, shape (M, 1) f32 (0 for ignored
    # rows).  M axis is megacore-parallel; vocab axis streams (cdiv-padded).
    M, H = t.shape
    V = word_emb.shape[0]
    tm = _tile(M, tm_pref, 8)
    if V <= tv_pref:
        tv, Vp = V, V
    else:
        tv = tv_pref                       # 128-aligned
        Vp = pl.cdiv(V, tv) * tv

    emb = word_emb
    bias = dec_bias.reshape(1, V)
    if Vp != V:
        emb = jnp.pad(word_emb, ((0, Vp - V), (0, 0)))
        bias = jnp.pad(bias, ((0, 0), (0, Vp - V)))

    grid = (M // tm, Vp // tv)
    emb_spec_kwargs = {}
    if grid[1] >= 3:                       # deeper buffering of the vocab table
        emb_spec_kwargs["pipeline_mode"] = pl.Buffered(3)

    return pl.pallas_call(
        partial(_decoder_xent_kernel, v_true=V),
        out_shape=jax.ShapeDtypeStruct((M, 1), jnp.float32),
        grid_spec=pltpu.PrefetchScalarGridSpec(
            num_scalar_prefetch=0, grid=grid,
            in_specs=[pl.BlockSpec((tm, H), lambda i, v: (i, 0)),
                      pl.BlockSpec((tv, H), lambda i, v: (v, 0),
                                   **emb_spec_kwargs),
                      pl.BlockSpec((1, tv), lambda i, v: (0, v)),
                      pl.BlockSpec((tm, 1), lambda i, v: (i, 0))],
            out_specs=pl.BlockSpec((tm, 1), lambda i, v: (i, 0)),
            scratch_shapes=[pltpu.VMEM((tm, 1), jnp.float32),
                            pltpu.VMEM((tm, 1), jnp.float32),
                            pltpu.VMEM((tm, 1), jnp.float32)]),
        compiler_params=pltpu.CompilerParams(
            dimension_semantics=("parallel", "arbitrary"),
            vmem_limit_bytes=_VMEM_LIMIT),
    )(t.astype(jnp.bfloat16), emb.astype(jnp.bfloat16),
      bias.astype(jnp.float32), labels)


# ------------------------------ parameters --------------------------------

def init_params(key, cfg):
    H, F, V = cfg["hidden"], cfg["ffn"], cfg["vocab"]
    std = 0.02

    def nrm(k, shape):
        return (std * jax.random.normal(k, shape)).astype(jnp.bfloat16)

    keys = iter(jax.random.split(key, 8 + 8 * cfg["layers"]))
    p = {
        "word_emb": nrm(next(keys), (V, H)),     # also the tied decoder weight
        "pos_emb": nrm(next(keys), (cfg["max_pos"], H)),
        "type_emb": nrm(next(keys), (cfg["type_vocab"], H)),
        "emb_ln_g": jnp.ones((H,), jnp.float32),
        "emb_ln_b": jnp.zeros((H,), jnp.float32),
        "mlm_dense_w": nrm(next(keys), (H, H)),
        "mlm_dense_b": jnp.zeros((H,), jnp.float32),
        "mlm_ln_g": jnp.ones((H,), jnp.float32),
        "mlm_ln_b": jnp.zeros((H,), jnp.float32),
        "decoder_b": jnp.zeros((V,), jnp.float32),
        "W_w": nrm(next(keys), (H, cfg["num_cls"])),   # self.W = Linear(H, 3)
        "W_b": jnp.zeros((cfg["num_cls"],), jnp.float32),
        "layers": [],
    }
    for _ in range(cfg["layers"]):
        p["layers"].append({
            # fused QKV projection: [H, 3H] (q | k | v along the output axis)
            "wqkv": nrm(next(keys), (H, 3 * H)),
            "bqkv": jnp.zeros((3 * H,), jnp.float32),
            "wo": nrm(next(keys), (H, H)), "bo": jnp.zeros((H,), jnp.float32),
            "ln1_g": jnp.ones((H,), jnp.float32),
            "ln1_b": jnp.zeros((H,), jnp.float32),
            "wi": nrm(next(keys), (H, F)), "bi": jnp.zeros((F,), jnp.float32),
            "wf": nrm(next(keys), (F, H)), "bf": jnp.zeros((H,), jnp.float32),
            "ln2_g": jnp.ones((H,), jnp.float32),
            "ln2_b": jnp.zeros((H,), jnp.float32),
        })
    return p


# ------------------------------ forward pass -------------------------------

def post_model_forward(params, input_ids, token_type_ids, attention_mask,
                       mlm_label, cfg):
    B, S = input_ids.shape
    H, nH = cfg["hidden"], cfg["heads"]
    dh = H // nH

    # --- embeddings: gathers are XLA glue; sum + LayerNorm fused in Pallas ---
    we = params["word_emb"][input_ids].reshape(B * S, H)        # bf16 [B*S,H]
    te = params["type_emb"][token_type_ids].reshape(B * S, H)   # bf16 [B*S,H]
    pe = params["pos_emb"][:S]                                  # bf16 [S,H]
    h = pallas_embed_ln(we, pe, te, params["emb_ln_g"], params["emb_ln_b"],
                        B=B, S=S)                               # bf16 [B*S,H]

    # --- extended attention mask: (1 - mask) * large_negative ---
    attn_bias = ((1.0 - attention_mask.astype(jnp.float32))
                 * (-1e9)).reshape(B, 1, S)

    # --- transformer encoder layers (no JAX-level transposes) ---
    for lyr in params["layers"]:
        x = h
        qkv = pallas_matmul(x, lyr["wqkv"], lyr["bqkv"])        # [B*S, 3H]
        ctx = pallas_attention(qkv, attn_bias, B=B, S=S,
                               n_heads=nH, head_dim=dh)         # [B*S, H]
        h = pallas_matmul_add_ln(ctx, lyr["wo"], lyr["bo"], x,
                                 lyr["ln1_g"], lyr["ln1_b"])
        inter = pallas_matmul(h, lyr["wi"], lyr["bi"], act="gelu")
        h = pallas_matmul_add_ln(inter, lyr["wf"], lyr["bf"], h,
                                 lyr["ln2_g"], lyr["ln2_b"])

    hidden_last = h.reshape(B, S, H)       # output['hidden_states'][-1]

    # --- MLM head: dense + gelu + LayerNorm + tied decoder + masked CE ---
    # TODO(synk): gathering only the masked rows (labels != -100) before the
    # MLM head would cut the dominant decoder FLOPs ~6x, but needs a static
    # masked-token budget from the data pipeline; running on all rows here.
    t = pallas_matmul(h, params["mlm_dense_w"], params["mlm_dense_b"],
                      act="gelu")
    t = pallas_layernorm(t, params["mlm_ln_g"], params["mlm_ln_b"])

    labels = mlm_label.reshape(B * S, 1).astype(jnp.int32)
    per_tok = pallas_decoder_xent(t, params["word_emb"],
                                  params["decoder_b"], labels)   # [B*S, 1]
    n_valid = jnp.sum((mlm_label.reshape(-1) != -100).astype(jnp.float32))
    # TODO(synk): PyTorch CrossEntropyLoss(mean, ignore_index) is NaN when no
    # valid tokens exist; here we return 0 in that degenerate case.
    mlm_loss = jnp.sum(per_tok) / jnp.maximum(n_valid, 1.0)

    # --- CLS head: self.W(cls_token_state); N=3 is too small for a Pallas
    #     kernel (3/128 lane util) so plain XLA dot is used. ---
    cls_state = hidden_last[:, 0, :].astype(jnp.float32)         # [B, H]
    cls_output = cls_state @ params["W_w"].astype(jnp.float32) + params["W_b"]

    return mlm_loss, cls_output


# ---------------------------------- main -----------------------------------

if __name__ == "__main__":
    key = jax.random.PRNGKey(0)
    k_param, k_ids, k_lab = jax.random.split(key, 3)

    B, S = 2, 8
    params = init_params(k_param, CFG)

    input_ids = jax.random.randint(k_ids, (B, S), 0, CFG["vocab"], dtype=jnp.int32)
    token_type_ids = jnp.zeros((B, S), dtype=jnp.int32)
    attention_mask = jnp.ones((B, S), dtype=jnp.int32).at[1, -2:].set(0)  # pad tail
    # mask ~20% positions for MLM loss; others get ignore_index -100
    mlm_positions = (jax.random.uniform(k_lab, (B, S)) < 0.2)
    mlm_label = jnp.where(mlm_positions, input_ids, -100).astype(jnp.int32)

    fwd = jax.jit(partial(post_model_forward, cfg=CFG))
    mlm_loss, cls_output = fwd(params, input_ids, token_type_ids,
                               attention_mask, mlm_label)
    jax.block_until_ready((mlm_loss, cls_output))

    assert cls_output.shape == (B, CFG["num_cls"])
    assert mlm_loss.shape == ()
    assert bool(jnp.isfinite(mlm_loss))
    print("KERNEL_OK")
</pallas_src>

<mosaic_0001>
module attributes {stable_mosaic.version = 11 : i64} {
  func.func @_embed_ln_kernel(%arg0: i32, %arg1: memref<8x32xbf16, #tpu.memory_space<vmem>>, %arg2: memref<8x32xbf16, #tpu.memory_space<vmem>>, %arg3: memref<8x32xbf16, #tpu.memory_space<vmem>>, %arg4: memref<1x32xf32, #tpu.memory_space<vmem>>, %arg5: memref<1x32xf32, #tpu.memory_space<vmem>>, %arg6: memref<8x32xbf16, #tpu.memory_space<vmem>>) attributes {dimension_semantics = [#tpu.dimension_semantics<parallel>], iteration_bounds = array<i64: 2>, scalar_prefetch = 0 : i64, scratch_operands = 0 : i64, tpu.core_type = #tpu.core_type<tc>, window_params = [{transform_indices = @transform_0, window_bounds = array<i64: 8, 32>}, {pipeline_mode = #tpu.pipeline_mode<synchronous>, transform_indices = @transform_1, window_bounds = array<i64: 8, 32>}, {transform_indices = @transform_2, window_bounds = array<i64: 8, 32>}, {pipeline_mode = #tpu.pipeline_mode<synchronous>, transform_indices = @transform_3, window_bounds = array<i64: 1, 32>}, {pipeline_mode = #tpu.pipeline_mode<synchronous>, transform_indices = @transform_4, window_bounds = array<i64: 1, 32>}, {transform_indices = @transform_5, window_bounds = array<i64: 8, 32>}]} {
    %c0 = arith.constant 0 : index
    %c0_0 = arith.constant 0 : index
    %0 = vector.load %arg1[%c0, %c0_0] : memref<8x32xbf16, #tpu.memory_space<vmem>>, vector<8x32xbf16>
    %1 = arith.extf %0 : vector<8x32xbf16> to vector<8x32xf32>
    %c0_1 = arith.constant 0 : index
    %c0_2 = arith.constant 0 : index
    %2 = vector.load %arg2[%c0_1, %c0_2] : memref<8x32xbf16, #tpu.memory_space<vmem>>, vector<8x32xbf16>
    %3 = arith.extf %2 : vector<8x32xbf16> to vector<8x32xf32>
    %4 = arith.addf %1, %3 : vector<8x32xf32>
    %c0_3 = arith.constant 0 : index
    %c0_4 = arith.constant 0 : index
    %5 = vector.load %arg3[%c0_3, %c0_4] : memref<8x32xbf16, #tpu.memory_space<vmem>>, vector<8x32xbf16>
    %6 = arith.extf %5 : vector<8x32xbf16> to vector<8x32xf32>
    %7 = arith.addf %4, %6 : vector<8x32xf32>
    %cst = arith.constant dense<0.000000e+00> : vector<8xf32>
    %8 = vector.multi_reduction <add>, %7, %cst [1] : vector<8x32xf32> to vector<8xf32>
    %9 = vector.shape_cast %8 : vector<8xf32> to vector<8x1xf32>
    %cst_5 = arith.constant 3.200000e+01 : f32
    %10 = vector.broadcast %cst_5 : f32 to vector<8x1xf32>
    %11 = arith.divf %9, %10 : vector<8x1xf32>
    %12 = vector.broadcast %11 : vector<8x1xf32> to vector<8x32xf32>
    %13 = arith.subf %7, %12 : vector<8x32xf32>
    %14 = arith.mulf %13, %13 : vector<8x32xf32>
    %cst_6 = arith.constant dense<0.000000e+00> : vector<8xf32>
    %15 = vector.multi_reduction <add>, %14, %cst_6 [1] : vector<8x32xf32> to vector<8xf32>
    %16 = vector.shape_cast %15 : vector<8xf32> to vector<8x1xf32>
    %cst_7 = arith.constant 3.200000e+01 : f32
    %17 = vector.broadcast %cst_7 : f32 to vector<8x1xf32>
    %18 = arith.divf %16, %17 : vector<8x1xf32>
    %19 = vector.broadcast %11 : vector<8x1xf32> to vector<8x32xf32>
    %20 = arith.subf %7, %19 : vector<8x32xf32>
    %cst_8 = arith.constant 9.99999996E-13 : f32
    %21 = vector.broadcast %cst_8 : f32 to vector<8x1xf32>
    %22 = arith.addf %18, %21 : vector<8x1xf32>
    %23 = math.rsqrt %22 : vector<8x1xf32>
    %24 = vector.broadcast %23 : vector<8x1xf32> to vector<8x32xf32>
    %25 = arith.mulf %20, %24 : vector<8x32xf32>
    %c0_9 = arith.constant 0 : index
    %c0_10 = arith.constant 0 : index
    %26 = vector.load %arg4[%c0_9, %c0_10] : memref<1x32xf32, #tpu.memory_space<vmem>>, vector<1x32xf32>
    %27 = vector.broadcast %26 : vector<1x32xf32> to vector<8x32xf32>
    %28 = arith.mulf %25, %27 : vector<8x32xf32>
    %c0_11 = arith.constant 0 : index
    %c0_12 = arith.constant 0 : index
    %29 = vector.load %arg5[%c0_11, %c0_12] : memref<1x32xf32, #tpu.memory_space<vmem>>, vector<1x32xf32>
    %30 = vector.broadcast %29 : vector<1x32xf32> to vector<8x32xf32>
    %31 = arith.addf %28, %30 : vector<8x32xf32>
    %32 = arith.truncf %31 : vector<8x32xf32> to vector<8x32xbf16>
    %c0_13 = arith.constant 0 : index
    %c0_14 = arith.constant 0 : index
    %33 = vector.load %arg6[%c0_13, %c0_14] : memref<8x32xbf16, #tpu.memory_space<vmem>>, vector<8x32xbf16>
    tpu.vector_store %arg6[%c0_13, %c0_14], %32 {strides = array<i32>} : memref<8x32xbf16, #tpu.memory_space<vmem>>, vector<8x32xbf16>,
    return
  }
  func.func @transform_0(%arg0: i32) -> (i32, i32) {
    %c0_i32 = arith.constant 0 : i32
    %c0_i32_0 = arith.constant 0 : i32
    return %arg0, %c0_i32 : i32, i32
  }
  func.func @transform_1(%arg0: i32) -> (i32, i32) {
    %c0_i32 = arith.constant 0 : i32
    %c0_i32_0 = arith.constant 0 : i32
    %c0_i32_1 = arith.constant 0 : i32
    return %c0_i32, %c0_i32_0 : i32, i32
  }
  func.func @transform_2(%arg0: i32) -> (i32, i32) {
    %c0_i32 = arith.constant 0 : i32
    %c0_i32_0 = arith.constant 0 : i32
    return %arg0, %c0_i32 : i32, i32
  }
  func.func @transform_3(%arg0: i32) -> (i32, i32) {
    %c0_i32 = arith.constant 0 : i32
    %c0_i32_0 = arith.constant 0 : i32
    %c0_i32_1 = arith.constant 0 : i32
    return %c0_i32, %c0_i32_0 : i32, i32
  }
  func.func @transform_4(%arg0: i32) -> (i32, i32) {
    %c0_i32 = arith.constant 0 : i32
    %c0_i32_0 = arith.constant 0 : i32
    %c0_i32_1 = arith.constant 0 : i32
    return %c0_i32, %c0_i32_0 : i32, i32
  }
  func.func @transform_5(%arg0: i32) -> (i32, i32) {
    %c0_i32 = arith.constant 0 : i32
    %c0_i32_0 = arith.constant 0 : i32
    return %arg0, %c0_i32 : i32, i32
  }
}

module attributes {stable_mosaic.version = 11 : i64} {
  func.func @_matmul_bias_kernel(%arg0: i32, %arg1: i32, %arg2: i32, %arg3: memref<16x32xbf16, #tpu.memory_space<vmem>>, %arg4: memref<32x96xbf16, #tpu.memory_space<vmem>>, %arg5: memref<1x96xf32, #tpu.memory_space<vmem>>, %arg6: memref<16x96xbf16, #tpu.memory_space<vmem>>, %arg7: memref<16x96xf32, #tpu.memory_space<vmem>>) attributes {dimension_semantics = [#tpu.dimension_semantics<parallel>, #tpu.dimension_semantics<parallel>, #tpu.dimension_semantics<arbitrary>], iteration_bounds = array<i64: 1, 1, 1>, scalar_prefetch = 0 : i64, scratch_operands = 1 : i64, tpu.core_type = #tpu.core_type<tc>, window_params = [{transform_indices = @transform_0, window_bounds = array<i64: 16, 32>}, {transform_indices = @transform_1, window_bounds = array<i64: 32, 96>}, {transform_indices = @transform_2, window_bounds = array<i64: 1, 96>}, {transform_indices = @transform_3, window_bounds = array<i64: 16, 96>}]} {
    %c0_i32 = arith.constant 0 : i32
    %0 = arith.cmpi eq, %arg2, %c0_i32 : i32
    %1 = arith.extui %0 : i1 to i32
    %c0_i32_0 = arith.constant 0 : i32
    %2 = arith.cmpi ne, %1, %c0_i32_0 : i32
    scf.if %2 {
      %cst_10 = arith.constant 0.000000e+00 : f32
      %12 = vector.broadcast %cst_10 : f32 to vector<16x96xf32>
      %c0_11 = arith.constant 0 : index
      %c0_12 = arith.constant 0 : index
      %13 = vector.load %arg7[%c0_11, %c0_12] : memref<16x96xf32, #tpu.memory_space<vmem>>, vector<16x96xf32>
      tpu.vector_store %arg7[%c0_11, %c0_12], %12 {strides = array<i32>} : memref<16x96xf32, #tpu.memory_space<vmem>>, vector<16x96xf32>,
    } else {
    }
    %c0 = arith.constant 0 : index
    %c0_1 = arith.constant 0 : index
    %3 = vector.load %arg7[%c0, %c0_1] : memref<16x96xf32, #tpu.memory_space<vmem>>, vector<16x96xf32>
    %c0_2 = arith.constant 0 : index
    %c0_3 = arith.constant 0 : index
    %4 = vector.load %arg3[%c0_2, %c0_3] : memref<16x32xbf16, #tpu.memory_space<vmem>>, vector<16x32xbf16>
    %c0_4 = arith.constant 0 : index
    %c0_5 = arith.constant 0 : index
    %5 = vector.load %arg4[%c0_4, %c0_5] : memref<32x96xbf16, #tpu.memory_space<vmem>>, vector<32x96xbf16>
    %cst = arith.constant dense<0.000000e+00> : vector<16x96xf32>
    %6 = tpu.matmul %4, %5, %cst {dimension_numbers = #tpu.dot_dimension_numbers<[1], [0], [0], [1], [0, 0, 1, 1], [], []>} : vector<16x32xbf16>, vector<32x96xbf16>, vector<16x96xf32> -> vector<16x96xf32>
    %7 = arith.addf %3, %6 : vector<16x96xf32>
    %c0_6 = arith.constant 0 : index
    %c0_7 = arith.constant 0 : index
    %8 = vector.load %arg7[%c0_6, %c0_7] : memref<16x96xf32, #tpu.memory_space<vmem>>, vector<16x96xf32>
    tpu.vector_store %arg7[%c0_6, %c0_7], %7 {strides = array<i32>} : memref<16x96xf32, #tpu.memory_space<vmem>>, vector<16x96xf32>,
    %c0_i32_8 = arith.constant 0 : i32
    %9 = arith.cmpi eq, %arg2, %c0_i32_8 : i32
    %10 = arith.extui %9 : i1 to i32
    %c0_i32_9 = arith.constant 0 : i32
    %11 = arith.cmpi ne, %10, %c0_i32_9 : i32
    scf.if %11 {
      %c0_10 = arith.constant 0 : index
      %c0_11 = arith.constant 0 : index
      %12 = vector.load %arg7[%c0_10, %c0_11] : memref<16x96xf32, #tpu.memory_space<vmem>>, vector<16x96xf32>
      %c0_12 = arith.constant 0 : index
      %c0_13 = arith.constant 0 : index
      %13 = vector.load %arg5[%c0_12, %c0_13] : memref<1x96xf32, #tpu.memory_space<vmem>>, vector<1x96xf32>
      %14 = vector.broadcast %13 : vector<1x96xf32> to vector<16x96xf32>
      %15 = arith.addf %12, %14 : vector<16x96xf32>
      %16 = arith.truncf %15 : vector<16x96xf32> to vector<16x96xbf16>
      %c0_14 = arith.constant 0 : index
      %c0_15 = arith.constant 0 : index
      %17 = vector.load %arg6[%c0_14, %c0_15] : memref<16x96xbf16, #tpu.memory_space<vmem>>, vector<16x96xbf16>
      tpu.vector_store %arg6[%c0_14, %c0_15], %16 {strides = array<i32>} : memref<16x96xbf16, #tpu.memory_space<vmem>>, vector<16x96xbf16>,
    } else {
    }
    return
  }
  func.func @transform_0(%arg0: i32, %arg1: i32, %arg2: i32) -> (i32, i32) {
    %c0_i32 = arith.constant 0 : i32
    return %arg0, %arg2 : i32, i32
  }
  func.func @transform_1(%arg0: i32, %arg1: i32, %arg2: i32) -> (i32, i32) {
    %c0_i32 = arith.constant 0 : i32
    return %arg2, %arg1 : i32, i32
  }
  func.func @transform_2(%arg0: i32, %arg1: i32, %arg2: i32) -> (i32, i32) {
    %c0_i32 = arith.constant 0 : i32
    %c0_i32_0 = arith.constant 0 : i32
    return %c0_i32, %arg1 : i32, i32
  }
  func.func @transform_3(%arg0: i32, %arg1: i32, %arg2: i32) -> (i32, i32) {
    %c0_i32 = arith.constant 0 : i32
    return %arg0, %arg1 : i32, i32
  }
}

module attributes {stable_mosaic.version = 11 : i64} {
  func.func @_attention_kernel(%arg0: i32, %arg1: memref<8x96xbf16, #tpu.memory_space<vmem>>, %arg2: memref<1x1x8xf32, #tpu.memory_space<vmem>>, %arg3: memref<8x32xbf16, #tpu.memory_space<vmem>>) attributes {dimension_semantics = [#tpu.dimension_semantics<parallel>], iteration_bounds = array<i64: 2>, scalar_prefetch = 0 : i64, scratch_operands = 0 : i64, tpu.core_type = #tpu.core_type<tc>, window_params = [{transform_indices = @transform_0, window_bounds = array<i64: 8, 96>}, {transform_indices = @transform_1, window_bounds = array<i64: 1, 1, 8>}, {transform_indices = @transform_2, window_bounds = array<i64: 8, 32>}]} {
    %c0 = arith.constant 0 : index
    %c0_0 = arith.constant 0 : index
    %c0_1 = arith.constant 0 : index
    %0 = vector.load %arg2[%c0, %c0_0, %c0_1] : memref<1x1x8xf32, #tpu.memory_space<vmem>>, vector<1x1x8xf32>
    %1 = vector.shape_cast %0 : vector<1x1x8xf32> to vector<1x8xf32>
    %c0_2 = arith.constant 0 : index
    %c0_3 = arith.constant 0 : index
    %2 = vector.load %arg1[%c0_2, %c0_3] : memref<8x96xbf16, #tpu.memory_space<vmem>>, vector<8x16xbf16>
    %c0_4 = arith.constant 0 : index
    %c32 = arith.constant 32 : index
    %3 = vector.load %arg1[%c0_4, %c32] : memref<8x96xbf16, #tpu.memory_space<vmem>>, vector<8x16xbf16>
    %c0_5 = arith.constant 0 : index
    %c64 = arith.constant 64 : index
    %4 = vector.load %arg1[%c0_5, %c64] : memref<8x96xbf16, #tpu.memory_space<vmem>>, vector<8x16xbf16>
    %cst = arith.constant dense<0.000000e+00> : vector<8x8xf32>
    %5 = tpu.matmul %2, %3, %cst {dimension_numbers = #tpu.dot_dimension_numbers<[1], [1], [0], [0], [0, 0, 1, 0], [], []>} : vector<8x16xbf16>, vector<8x16xbf16>, vector<8x8xf32> -> vector<8x8xf32>
    %cst_6 = arith.constant 2.500000e-01 : f32
    %6 = vector.broadcast %cst_6 : f32 to vector<8x8xf32>
    %7 = arith.mulf %5, %6 : vector<8x8xf32>
    %8 = vector.broadcast %1 : vector<1x8xf32> to vector<8x8xf32>
    %9 = arith.addf %7, %8 : vector<8x8xf32>
    %cst_7 = arith.constant dense<0xFF800000> : vector<8xf32>
    %10 = vector.multi_reduction <maximumf>, %9, %cst_7 [1] : vector<8x8xf32> to vector<8xf32>
    %11 = vector.shape_cast %10 : vector<8xf32> to vector<8x1xf32>
    %12 = vector.broadcast %11 : vector<8x1xf32> to vector<8x8xf32>
    %13 = arith.subf %9, %12 : vector<8x8xf32>
    %14 = math.exp %13 : vector<8x8xf32>
    %cst_8 = arith.constant dense<0.000000e+00> : vector<8xf32>
    %15 = vector.multi_reduction <add>, %14, %cst_8 [1] : vector<8x8xf32> to vector<8xf32>
    %16 = vector.shape_cast %15 : vector<8xf32> to vector<8x1xf32>
    %17 = tpu.reciprocal %16 {approx = true} : vector<8x1xf32> -> vector<8x1xf32>
    %18 = vector.broadcast %17 : vector<8x1xf32> to vector<8x8xf32>
    %19 = arith.mulf %14, %18 : vector<8x8xf32>
    %20 = arith.truncf %19 : vector<8x8xf32> to vector<8x8xbf16>
    %cst_9 = arith.constant dense<0.000000e+00> : vector<8x16xf32>
    %21 = tpu.matmul %20, %4, %cst_9 {dimension_numbers = #tpu.dot_dimension_numbers<[1], [0], [0], [1], [0, 0, 1, 1], [], []>} : vector<8x8xbf16>, vector<8x16xbf16>, vector<8x16xf32> -> vector<8x16xf32>
    %22 = arith.truncf %21 : vector<8x16xf32> to vector<8x16xbf16>
    %c0_10 = arith.constant 0 : index
    %c0_11 = arith.constant 0 : index
    %23 = vector.load %arg3[%c0_10, %c0_11] : memref<8x32xbf16, #tpu.memory_space<vmem>>, vector<8x16xbf16>
    tpu.vector_store %arg3[%c0_10, %c0_11], %22 {strides = array<i32>} : memref<8x32xbf16, #tpu.memory_space<vmem>>, vector<8x16xbf16>,
    %c0_12 = arith.constant 0 : index
    %c16 = arith.constant 16 : index
    %24 = vector.load %arg1[%c0_12, %c16] : memref<8x96xbf16, #tpu.memory_space<vmem>>, vector<8x16xbf16>
    %c0_13 = arith.constant 0 : index
    %c48 = arith.constant 48 : index
    %25 = vector.load %arg1[%c0_13, %c48] : memref<8x96xbf16, #tpu.memory_space<vmem>>, vector<8x16xbf16>
    %c0_14 = arith.constant 0 : index
    %c80 = arith.constant 80 : index
    %26 = vector.load %arg1[%c0_14, %c80] : memref<8x96xbf16, #tpu.memory_space<vmem>>, vector<8x16xbf16>
    %cst_15 = arith.constant dense<0.000000e+00> : vector<8x8xf32>
    %27 = tpu.matmul %24, %25, %cst_15 {dimension_numbers = #tpu.dot_dimension_numbers<[1], [1], [0], [0], [0, 0, 1, 0], [], []>} : vector<8x16xbf16>, vector<8x16xbf16>, vector<8x8xf32> -> vector<8x8xf32>
    %cst_16 = arith.constant 2.500000e-01 : f32
    %28 = vector.broadcast %cst_16 : f32 to vector<8x8xf32>
    %29 = arith.mulf %27, %28 : vector<8x8xf32>
    %30 = vector.broadcast %1 : vector<1x8xf32> to vector<8x8xf32>
    %31 = arith.addf %29, %30 : vector<8x8xf32>
    %cst_17 = arith.constant dense<0xFF800000> : vector<8xf32>
    %32 = vector.multi_reduction <maximumf>, %31, %cst_17 [1] : vector<8x8xf32> to vector<8xf32>
    %33 = vector.shape_cast %32 : vector<8xf32> to vector<8x1xf32>
    %34 = vector.broadcast %33 : vector<8x1xf32> to vector<8x8xf32>
    %35 = arith.subf %31, %34 : vector<8x8xf32>
    %36 = math.exp %35 : vector<8x8xf32>
    %cst_18 = arith.constant dense<0.000000e+00> : vector<8xf32>
    %37 = vector.multi_reduction <add>, %36, %cst_18 [1] : vector<8x8xf32> to vector<8xf32>
    %38 = vector.shape_cast %37 : vector<8xf32> to vector<8x1xf32>
    %39 = tpu.reciprocal %38 {approx = true} : vector<8x1xf32> -> vector<8x1xf32>
    %40 = vector.broadcast %39 : vector<8x1xf32> to vector<8x8xf32>
    %41 = arith.mulf %36, %40 : vector<8x8xf32>
    %42 = arith.truncf %41 : vector<8x8xf32> to vector<8x8xbf16>
    %cst_19 = arith.constant dense<0.000000e+00> : vector<8x16xf32>
    %43 = tpu.matmul %42, %26, %cst_19 {dimension_numbers = #tpu.dot_dimension_numbers<[1], [0], [0], [1], [0, 0, 1, 1], [], []>} : vector<8x8xbf16>, vector<8x16xbf16>, vector<8x16xf32> -> vector<8x16xf32>
    %44 = arith.truncf %43 : vector<8x16xf32> to vector<8x16xbf16>
    %c0_20 = arith.constant 0 : index
    %c16_21 = arith.constant 16 : index
    %45 = vector.load %arg3[%c0_20, %c16_21] : memref<8x32xbf16, #tpu.memory_space<vmem>>, vector<8x16xbf16>
    tpu.vector_store %arg3[%c0_20, %c16_21], %44 {strides = array<i32>} : memref<8x32xbf16, #tpu.memory_space<vmem>>, vector<8x16xbf16>,
    return
  }
  func.func @transform_0(%arg0: i32) -> (i32, i32) {
    %c0_i32 = arith.constant 0 : i32
    %c0_i32_0 = arith.constant 0 : i32
    return %arg0, %c0_i32 : i32, i32
  }
  func.func @transform_1(%arg0: i32) -> (i32, i32, i32) {
    %c0_i32 = arith.constant 0 : i32
    %c0_i32_0 = arith.constant 0 : i32
    %c0_i32_1 = arith.constant 0 : i32
    return %arg0, %c0_i32, %c0_i32_0 : i32, i32, i32
  }
  func.func @transform_2(%arg0: i32) -> (i32, i32) {
    %c0_i32 = arith.constant 0 : i32
    %c0_i32_0 = arith.constant 0 : i32
    return %arg0, %c0_i32 : i32, i32
  }
}

module attributes {stable_mosaic.version = 11 : i64} {
  func.func @_matmul_bias_add_ln_kernel(%arg0: i32, %arg1: i32, %arg2: memref<16x32xbf16, #tpu.memory_space<vmem>>, %arg3: memref<32x32xbf16, #tpu.memory_space<vmem>>, %arg4: memref<1x32xf32, #tpu.memory_space<vmem>>, %arg5: memref<16x32xbf16, #tpu.memory_space<vmem>>, %arg6: memref<1x32xf32, #tpu.memory_space<vmem>>, %arg7: memref<1x32xf32, #tpu.memory_space<vmem>>, %arg8: memref<16x32xbf16, #tpu.memory_space<vmem>>, %arg9: memref<16x32xf32, #tpu.memory_space<vmem>>) attributes {dimension_semantics = [#tpu.dimension_semantics<parallel>, #tpu.dimension_semantics<arbitrary>], iteration_bounds = array<i64: 1, 1>, scalar_prefetch = 0 : i64, scratch_operands = 1 : i64, tpu.core_type = #tpu.core_type<tc>, window_params = [{transform_indices = @transform_0, window_bounds = array<i64: 16, 32>}, {transform_indices = @transform_1, window_bounds = array<i64: 32, 32>}, {pipeline_mode = #tpu.pipeline_mode<synchronous>, transform_indices = @transform_2, window_bounds = array<i64: 1, 32>}, {transform_indices = @transform_3, window_bounds = array<i64: 16, 32>}, {pipeline_mode = #tpu.pipeline_mode<synchronous>, transform_indices = @transform_4, window_bounds = array<i64: 1, 32>}, {pipeline_mode = #tpu.pipeline_mode<synchronous>, transform_indices = @transform_5, window_bounds = array<i64: 1, 32>}, {transform_indices = @transform_6, window_bounds = array<i64: 16, 32>}]} {
    %c0_i32 = arith.constant 0 : i32
    %0 = arith.cmpi eq, %arg1, %c0_i32 : i32
    %1 = arith.extui %0 : i1 to i32
    %c0_i32_0 = arith.constant 0 : i32
    %2 = arith.cmpi ne, %1, %c0_i32_0 : i32
    scf.if %2 {
      %cst_10 = arith.constant 0.000000e+00 : f32
      %12 = vector.broadcast %cst_10 : f32 to vector<16x32xf32>
      %c0_11 = arith.constant 0 : index
      %c0_12 = arith.constant 0 : index
      %13 = vector.load %arg9[%c0_11, %c0_12] : memref<16x32xf32, #tpu.memory_space<vmem>>, vector<16x32xf32>
      tpu.vector_store %arg9[%c0_11, %c0_12], %12 {strides = array<i32>} : memref<16x32xf32, #tpu.memory_space<vmem>>, vector<16x32xf32>,
    } else {
    }
    %c0 = arith.constant 0 : index
    %c0_1 = arith.constant 0 : index
    %3 = vector.load %arg9[%c0, %c0_1] : memref<16x32xf32, #tpu.memory_space<vmem>>, vector<16x32xf32>
    %c0_2 = arith.constant 0 : index
    %c0_3 = arith.constant 0 : index
    %4 = vector.load %arg2[%c0_2, %c0_3] : memref<16x32xbf16, #tpu.memory_space<vmem>>, vector<16x32xbf16>
    %c0_4 = arith.constant 0 : index
    %c0_5 = arith.constant 0 : index
    %5 = vector.load %arg3[%c0_4, %c0_5] : memref<32x32xbf16, #tpu.memory_space<vmem>>, vector<32x32xbf16>
    %cst = arith.constant dense<0.000000e+00> : vector<16x32xf32>
    %6 = tpu.matmul %4, %5, %cst {dimension_numbers = #tpu.dot_dimension_numbers<[1], [0], [0], [1], [0, 0, 1, 1], [], []>} : vector<16x32xbf16>, vector<32x32xbf16>, vector<16x32xf32> -> vector<16x32xf32>
    %7 = arith.addf %3, %6 : vector<16x32xf32>
    %c0_6 = arith.constant 0 : index
    %c0_7 = arith.constant 0 : index
    %8 = vector.load %arg9[%c0_6, %c0_7] : memref<16x32xf32, #tpu.memory_space<vmem>>, vector<16x32xf32>
    tpu.vector_store %arg9[%c0_6, %c0_7], %7 {strides = array<i32>} : memref<16x32xf32, #tpu.memory_space<vmem>>, vector<16x32xf32>,
    %c0_i32_8 = arith.constant 0 : i32
    %9 = arith.cmpi eq, %arg1, %c0_i32_8 : i32
    %10 = arith.extui %9 : i1 to i32
    %c0_i32_9 = arith.constant 0 : i32
    %11 = arith.cmpi ne, %10, %c0_i32_9 : i32
    scf.if %11 {
      %c0_10 = arith.constant 0 : index
      %c0_11 = arith.constant 0 : index
      %12 = vector.load %arg9[%c0_10, %c0_11] : memref<16x32xf32, #tpu.memory_space<vmem>>, vector<16x32xf32>
      %c0_12 = arith.constant 0 : index
      %c0_13 = arith.constant 0 : index
      %13 = vector.load %arg4[%c0_12, %c0_13] : memref<1x32xf32, #tpu.memory_space<vmem>>, vector<1x32xf32>
      %14 = vector.broadcast %13 : vector<1x32xf32> to vector<16x32xf32>
      %15 = arith.addf %12, %14 : vector<16x32xf32>
      %c0_14 = arith.constant 0 : index
      %c0_15 = arith.constant 0 : index
      %16 = vector.load %arg5[%c0_14, %c0_15] : memref<16x32xbf16, #tpu.memory_space<vmem>>, vector<16x32xbf16>
      %17 = arith.extf %16 : vector<16x32xbf16> to vector<16x32xf32>
      %18 = arith.addf %15, %17 : vector<16x32xf32>
      %cst_16 = arith.constant dense<0.000000e+00> : vector<16xf32>
      %19 = vector.multi_reduction <add>, %18, %cst_16 [1] : vector<16x32xf32> to vector<16xf32>
      %20 = vector.shape_cast %19 : vector<16xf32> to vector<16x1xf32>
      %cst_17 = arith.constant 3.200000e+01 : f32
      %21 = vector.broadcast %cst_17 : f32 to vector<16x1xf32>
      %22 = arith.divf %20, %21 : vector<16x1xf32>
      %23 = vector.broadcast %22 : vector<16x1xf32> to vector<16x32xf32>
      %24 = arith.subf %18, %23 : vector<16x32xf32>
      %25 = arith.mulf %24, %24 : vector<16x32xf32>
      %cst_18 = arith.constant dense<0.000000e+00> : vector<16xf32>
      %26 = vector.multi_reduction <add>, %25, %cst_18 [1] : vector<16x32xf32> to vector<16xf32>
      %27 = vector.shape_cast %26 : vector<16xf32> to vector<16x1xf32>
      %cst_19 = arith.constant 3.200000e+01 : f32
      %28 = vector.broadcast %cst_19 : f32 to vector<16x1xf32>
      %29 = arith.divf %27, %28 : vector<16x1xf32>
      %30 = vector.broadcast %22 : vector<16x1xf32> to vector<16x32xf32>
      %31 = arith.subf %18, %30 : vector<16x32xf32>
      %cst_20 = arith.constant 9.99999996E-13 : f32
      %32 = vector.broadcast %cst_20 : f32 to vector<16x1xf32>
      %33 = arith.addf %29, %32 : vector<16x1xf32>
      %34 = math.rsqrt %33 : vector<16x1xf32>
      %35 = vector.broadcast %34 : vector<16x1xf32> to vector<16x32xf32>
      %36 = arith.mulf %31, %35 : vector<16x32xf32>
      %c0_21 = arith.constant 0 : index
      %c0_22 = arith.constant 0 : index
      %37 = vector.load %arg6[%c0_21, %c0_22] : memref<1x32xf32, #tpu.memory_space<vmem>>, vector<1x32xf32>
      %38 = vector.broadcast %37 : vector<1x32xf32> to vector<16x32xf32>
      %39 = arith.mulf %36, %38 : vector<16x32xf32>
      %c0_23 = arith.constant 0 : index
      %c0_24 = arith.constant 0 : index
      %40 = vector.load %arg7[%c0_23, %c0_24] : memref<1x32xf32, #tpu.memory_space<vmem>>, vector<1x32xf32>
      %41 = vector.broadcast %40 : vector<1x32xf32> to vector<16x32xf32>
      %42 = arith.addf %39, %41 : vector<16x32xf32>
      %43 = arith.truncf %42 : vector<16x32xf32> to vector<16x32xbf16>
      %c0_25 = arith.constant 0 : index
      %c0_26 = arith.constant 0 : index
      %44 = vector.load %arg8[%c0_25, %c0_26] : memref<16x32xbf16, #tpu.memory_space<vmem>>, vector<16x32xbf16>
      tpu.vector_store %arg8[%c0_25, %c0_26], %43 {strides = array<i32>} : memref<16x32xbf16, #tpu.memory_space<vmem>>, vector<16x32xbf16>,
    } else {
    }
    return
  }
  func.func @transform_0(%arg0: i32, %arg1: i32) -> (i32, i32) {
    %c0_i32 = arith.constant 0 : i32
    return %arg0, %arg1 : i32, i32
  }
  func.func @transform_1(%arg0: i32, %arg1: i32) -> (i32, i32) {
    %c0_i32 = arith.constant 0 : i32
    %c0_i32_0 = arith.constant 0 : i32
    return %arg1, %c0_i32 : i32, i32
  }
  func.func @transform_2(%arg0: i32, %arg1: i32) -> (i32, i32) {
    %c0_i32 = arith.constant 0 : i32
    %c0_i32_0 = arith.constant 0 : i32
    %c0_i32_1 = arith.constant 0 : i32
    return %c0_i32, %c0_i32_0 : i32, i32
  }
  func.func @transform_3(%arg0: i32, %arg1: i32) -> (i32, i32) {
    %c0_i32 = arith.constant 0 : i32
    %c0_i32_0 = arith.constant 0 : i32
    return %arg0, %c0_i32 : i32, i32
  }
  func.func @transform_4(%arg0: i32, %arg1: i32) -> (i32, i32) {
    %c0_i32 = arith.constant 0 : i32
    %c0_i32_0 = arith.constant 0 : i32
    %c0_i32_1 = arith.constant 0 : i32
    return %c0_i32, %c0_i32_0 : i32, i32
  }
  func.func @transform_5(%arg0: i32, %arg1: i32) -> (i32, i32) {
    %c0_i32 = arith.constant 0 : i32
    %c0_i32_0 = arith.constant 0 : i32
    %c0_i32_1 = arith.constant 0 : i32
    return %c0_i32, %c0_i32_0 : i32, i32
  }
  func.func @transform_6(%arg0: i32, %arg1: i32) -> (i32, i32) {
    %c0_i32 = arith.constant 0 : i32
    %c0_i32_0 = arith.constant 0 : i32
    return %arg0, %c0_i32 : i32, i32
  }
}

module attributes {stable_mosaic.version = 11 : i64} {
  func.func @_matmul_bias_kernel(%arg0: i32, %arg1: i32, %arg2: i32, %arg3: memref<16x32xbf16, #tpu.memory_space<vmem>>, %arg4: memref<32x64xbf16, #tpu.memory_space<vmem>>, %arg5: memref<1x64xf32, #tpu.memory_space<vmem>>, %arg6: memref<16x64xbf16, #tpu.memory_space<vmem>>, %arg7: memref<16x64xf32, #tpu.memory_space<vmem>>) attributes {dimension_semantics = [#tpu.dimension_semantics<parallel>, #tpu.dimension_semantics<parallel>, #tpu.dimension_semantics<arbitrary>], iteration_bounds = array<i64: 1, 1, 1>, scalar_prefetch = 0 : i64, scratch_operands = 1 : i64, tpu.core_type = #tpu.core_type<tc>, window_params = [{transform_indices = @transform_0, window_bounds = array<i64: 16, 32>}, {transform_indices = @transform_1, window_bounds = array<i64: 32, 64>}, {transform_indices = @transform_2, window_bounds = array<i64: 1, 64>}, {transform_indices = @transform_3, window_bounds = array<i64: 16, 64>}]} {
    %c0_i32 = arith.constant 0 : i32
    %0 = arith.cmpi eq, %arg2, %c0_i32 : i32
    %1 = arith.extui %0 : i1 to i32
    %c0_i32_0 = arith.constant 0 : i32
    %2 = arith.cmpi ne, %1, %c0_i32_0 : i32
    scf.if %2 {
      %cst_10 = arith.constant 0.000000e+00 : f32
      %12 = vector.broadcast %cst_10 : f32 to vector<16x64xf32>
      %c0_11 = arith.constant 0 : index
      %c0_12 = arith.constant 0 : index
      %13 = vector.load %arg7[%c0_11, %c0_12] : memref<16x64xf32, #tpu.memory_space<vmem>>, vector<16x64xf32>
      tpu.vector_store %arg7[%c0_11, %c0_12], %12 {strides = array<i32>} : memref<16x64xf32, #tpu.memory_space<vmem>>, vector<16x64xf32>,
    } else {
    }
    %c0 = arith.constant 0 : index
    %c0_1 = arith.constant 0 : index
    %3 = vector.load %arg7[%c0, %c0_1] : memref<16x64xf32, #tpu.memory_space<vmem>>, vector<16x64xf32>
    %c0_2 = arith.constant 0 : index
    %c0_3 = arith.constant 0 : index
    %4 = vector.load %arg3[%c0_2, %c0_3] : memref<16x32xbf16, #tpu.memory_space<vmem>>, vector<16x32xbf16>
    %c0_4 = arith.constant 0 : index
    %c0_5 = arith.constant 0 : index
    %5 = vector.load %arg4[%c0_4, %c0_5] : memref<32x64xbf16, #tpu.memory_space<vmem>>, vector<32x64xbf16>
    %cst = arith.constant dense<0.000000e+00> : vector<16x64xf32>
    %6 = tpu.matmul %4, %5, %cst {dimension_numbers = #tpu.dot_dimension_numbers<[1], [0], [0], [1], [0, 0, 1, 1], [], []>} : vector<16x32xbf16>, vector<32x64xbf16>, vector<16x64xf32> -> vector<16x64xf32>
    %7 = arith.addf %3, %6 : vector<16x64xf32>
    %c0_6 = arith.constant 0 : index
    %c0_7 = arith.constant 0 : index
    %8 = vector.load %arg7[%c0_6, %c0_7] : memref<16x64xf32, #tpu.memory_space<vmem>>, vector<16x64xf32>
    tpu.vector_store %arg7[%c0_6, %c0_7], %7 {strides = array<i32>} : memref<16x64xf32, #tpu.memory_space<vmem>>, vector<16x64xf32>,
    %c0_i32_8 = arith.constant 0 : i32
    %9 = arith.cmpi eq, %arg2, %c0_i32_8 : i32
    %10 = arith.extui %9 : i1 to i32
    %c0_i32_9 = arith.constant 0 : i32
    %11 = arith.cmpi ne, %10, %c0_i32_9 : i32
    scf.if %11 {
      %c0_10 = arith.constant 0 : index
      %c0_11 = arith.constant 0 : index
      %12 = vector.load %arg7[%c0_10, %c0_11] : memref<16x64xf32, #tpu.memory_space<vmem>>, vector<16x64xf32>
      %c0_12 = arith.constant 0 : index
      %c0_13 = arith.constant 0 : index
      %13 = vector.load %arg5[%c0_12, %c0_13] : memref<1x64xf32, #tpu.memory_space<vmem>>, vector<1x64xf32>
      %14 = vector.broadcast %13 : vector<1x64xf32> to vector<16x64xf32>
      %15 = arith.addf %12, %14 : vector<16x64xf32>
      %cst_14 = arith.constant 5.000000e-01 : f32
      %16 = vector.broadcast %cst_14 : f32 to vector<16x64xf32>
      %17 = arith.mulf %16, %15 : vector<16x64xf32>
      %cst_15 = arith.constant 4.471500e-02 : f32
      %18 = vector.broadcast %cst_15 : f32 to vector<16x64xf32>
      %19 = arith.mulf %18, %15 : vector<16x64xf32>
      %20 = arith.mulf %19, %15 : vector<16x64xf32>
      %21 = arith.mulf %20, %15 : vector<16x64xf32>
      %22 = arith.addf %15, %21 : vector<16x64xf32>
      %cst_16 = arith.constant 0.797884583 : f32
      %23 = vector.broadcast %cst_16 : f32 to vector<16x64xf32>
      %24 = arith.mulf %23, %22 : vector<16x64xf32>
      %25 = math.tanh %24 : vector<16x64xf32>
      %cst_17 = arith.constant 1.000000e+00 : f32
      %26 = vector.broadcast %cst_17 : f32 to vector<16x64xf32>
      %27 = arith.addf %26, %25 : vector<16x64xf32>
      %28 = arith.mulf %17, %27 : vector<16x64xf32>
      %29 = arith.truncf %28 : vector<16x64xf32> to vector<16x64xbf16>
      %c0_18 = arith.constant 0 : index
      %c0_19 = arith.constant 0 : index
      %30 = vector.load %arg6[%c0_18, %c0_19] : memref<16x64xbf16, #tpu.memory_space<vmem>>, vector<16x64xbf16>
      tpu.vector_store %arg6[%c0_18, %c0_19], %29 {strides = array<i32>} : memref<16x64xbf16, #tpu.memory_space<vmem>>, vector<16x64xbf16>,
    } else {
    }
    return
  }
  func.func @transform_0(%arg0: i32, %arg1: i32, %arg2: i32) -> (i32, i32) {
    %c0_i32 = arith.constant 0 : i32
    return %arg0, %arg2 : i32, i32
  }
  func.func @transform_1(%arg0: i32, %arg1: i32, %arg2: i32) -> (i32, i32) {
    %c0_i32 = arith.constant 0 : i32
    return %arg2, %arg1 : i32, i32
  }
  func.func @transform_2(%arg0: i32, %arg1: i32, %arg2: i32) -> (i32, i32) {
    %c0_i32 = arith.constant 0 : i32
    %c0_i32_0 = arith.constant 0 : i32
    return %c0_i32, %arg1 : i32, i32
  }
  func.func @transform_3(%arg0: i32, %arg1: i32, %arg2: i32) -> (i32, i32) {
    %c0_i32 = arith.constant 0 : i32
    return %arg0, %arg1 : i32, i32
  }
}

module attributes {stable_mosaic.version = 11 : i64} {
  func.func @_matmul_bias_kernel(%arg0: i32, %arg1: i32, %arg2: i32, %arg3: memref<16x32xbf16, #tpu.memory_space<vmem>>, %arg4: memref<32x32xbf16, #tpu.memory_space<vmem>>, %arg5: memref<1x32xf32, #tpu.memory_space<vmem>>, %arg6: memref<16x32xbf16, #tpu.memory_space<vmem>>, %arg7: memref<16x32xf32, #tpu.memory_space<vmem>>) attributes {dimension_semantics = [#tpu.dimension_semantics<parallel>, #tpu.dimension_semantics<parallel>, #tpu.dimension_semantics<arbitrary>], iteration_bounds = array<i64: 1, 1, 1>, scalar_prefetch = 0 : i64, scratch_operands = 1 : i64, tpu.core_type = #tpu.core_type<tc>, window_params = [{transform_indices = @transform_0, window_bounds = array<i64: 16, 32>}, {transform_indices = @transform_1, window_bounds = array<i64: 32, 32>}, {transform_indices = @transform_2, window_bounds = array<i64: 1, 32>}, {transform_indices = @transform_3, window_bounds = array<i64: 16, 32>}]} {
    %c0_i32 = arith.constant 0 : i32
    %0 = arith.cmpi eq, %arg2, %c0_i32 : i32
    %1 = arith.extui %0 : i1 to i32
    %c0_i32_0 = arith.constant 0 : i32
    %2 = arith.cmpi ne, %1, %c0_i32_0 : i32
    scf.if %2 {
      %cst_10 = arith.constant 0.000000e+00 : f32
      %12 = vector.broadcast %cst_10 : f32 to vector<16x32xf32>
      %c0_11 = arith.constant 0 : index
      %c0_12 = arith.constant 0 : index
      %13 = vector.load %arg7[%c0_11, %c0_12] : memref<16x32xf32, #tpu.memory_space<vmem>>, vector<16x32xf32>
      tpu.vector_store %arg7[%c0_11, %c0_12], %12 {strides = array<i32>} : memref<16x32xf32, #tpu.memory_space<vmem>>, vector<16x32xf32>,
    } else {
    }
    %c0 = arith.constant 0 : index
    %c0_1 = arith.constant 0 : index
    %3 = vector.load %arg7[%c0, %c0_1] : memref<16x32xf32, #tpu.memory_space<vmem>>, vector<16x32xf32>
    %c0_2 = arith.constant 0 : index
    %c0_3 = arith.constant 0 : index
    %4 = vector.load %arg3[%c0_2, %c0_3] : memref<16x32xbf16, #tpu.memory_space<vmem>>, vector<16x32xbf16>
    %c0_4 = arith.constant 0 : index
    %c0_5 = arith.constant 0 : index
    %5 = vector.load %arg4[%c0_4, %c0_5] : memref<32x32xbf16, #tpu.memory_space<vmem>>, vector<32x32xbf16>
    %cst = arith.constant dense<0.000000e+00> : vector<16x32xf32>
    %6 = tpu.matmul %4, %5, %cst {dimension_numbers = #tpu.dot_dimension_numbers<[1], [0], [0], [1], [0, 0, 1, 1], [], []>} : vector<16x32xbf16>, vector<32x32xbf16>, vector<16x32xf32> -> vector<16x32xf32>
    %7 = arith.addf %3, %6 : vector<16x32xf32>
    %c0_6 = arith.constant 0 : index
    %c0_7 = arith.constant 0 : index
    %8 = vector.load %arg7[%c0_6, %c0_7] : memref<16x32xf32, #tpu.memory_space<vmem>>, vector<16x32xf32>
    tpu.vector_store %arg7[%c0_6, %c0_7], %7 {strides = array<i32>} : memref<16x32xf32, #tpu.memory_space<vmem>>, vector<16x32xf32>,
    %c0_i32_8 = arith.constant 0 : i32
    %9 = arith.cmpi eq, %arg2, %c0_i32_8 : i32
    %10 = arith.extui %9 : i1 to i32
    %c0_i32_9 = arith.constant 0 : i32
    %11 = arith.cmpi ne, %10, %c0_i32_9 : i32
    scf.if %11 {
      %c0_10 = arith.constant 0 : index
      %c0_11 = arith.constant 0 : index
      %12 = vector.load %arg7[%c0_10, %c0_11] : memref<16x32xf32, #tpu.memory_space<vmem>>, vector<16x32xf32>
      %c0_12 = arith.constant 0 : index
      %c0_13 = arith.constant 0 : index
      %13 = vector.load %arg5[%c0_12, %c0_13] : memref<1x32xf32, #tpu.memory_space<vmem>>, vector<1x32xf32>
      %14 = vector.broadcast %13 : vector<1x32xf32> to vector<16x32xf32>
      %15 = arith.addf %12, %14 : vector<16x32xf32>
      %cst_14 = arith.constant 5.000000e-01 : f32
      %16 = vector.broadcast %cst_14 : f32 to vector<16x32xf32>
      %17 = arith.mulf %16, %15 : vector<16x32xf32>
      %cst_15 = arith.constant 4.471500e-02 : f32
      %18 = vector.broadcast %cst_15 : f32 to vector<16x32xf32>
      %19 = arith.mulf %18, %15 : vector<16x32xf32>
      %20 = arith.mulf %19, %15 : vector<16x32xf32>
      %21 = arith.mulf %20, %15 : vector<16x32xf32>
      %22 = arith.addf %15, %21 : vector<16x32xf32>
      %cst_16 = arith.constant 0.797884583 : f32
      %23 = vector.broadcast %cst_16 : f32 to vector<16x32xf32>
      %24 = arith.mulf %23, %22 : vector<16x32xf32>
      %25 = math.tanh %24 : vector<16x32xf32>
      %cst_17 = arith.constant 1.000000e+00 : f32
      %26 = vector.broadcast %cst_17 : f32 to vector<16x32xf32>
      %27 = arith.addf %26, %25 : vector<16x32xf32>
      %28 = arith.mulf %17, %27 : vector<16x32xf32>
      %29 = arith.truncf %28 : vector<16x32xf32> to vector<16x32xbf16>
      %c0_18 = arith.constant 0 : index
      %c0_19 = arith.constant 0 : index
      %30 = vector.load %arg6[%c0_18, %c0_19] : memref<16x32xbf16, #tpu.memory_space<vmem>>, vector<16x32xbf16>
      tpu.vector_store %arg6[%c0_18, %c0_19], %29 {strides = array<i32>} : memref<16x32xbf16, #tpu.memory_space<vmem>>, vector<16x32xbf16>,
    } else {
    }
    return
  }
  func.func @transform_0(%arg0: i32, %arg1: i32, %arg2: i32) -> (i32, i32) {
    %c0_i32 = arith.constant 0 : i32
    return %arg0, %arg2 : i32, i32
  }
  func.func @transform_1(%arg0: i32, %arg1: i32, %arg2: i32) -> (i32, i32) {
    %c0_i32 = arith.constant 0 : i32
    return %arg2, %arg1 : i32, i32
  }
  func.func @transform_2(%arg0: i32, %arg1: i32, %arg2: i32) -> (i32, i32) {
    %c0_i32 = arith.constant 0 : i32
    %c0_i32_0 = arith.constant 0 : i32
    return %c0_i32, %arg1 : i32, i32
  }
  func.func @transform_3(%arg0: i32, %arg1: i32, %arg2: i32) -> (i32, i32) {
    %c0_i32 = arith.constant 0 : i32
    return %arg0, %arg1 : i32, i32
  }
}

module attributes {stable_mosaic.version = 11 : i64} {
  func.func @_layernorm_kernel(%arg0: i32, %arg1: memref<16x32xbf16, #tpu.memory_space<vmem>>, %arg2: memref<1x32xf32, #tpu.memory_space<vmem>>, %arg3: memref<1x32xf32, #tpu.memory_space<vmem>>, %arg4: memref<16x32xbf16, #tpu.memory_space<vmem>>) attributes {dimension_semantics = [#tpu.dimension_semantics<parallel>], iteration_bounds = array<i64: 1>, scalar_prefetch = 0 : i64, scratch_operands = 0 : i64, tpu.core_type = #tpu.core_type<tc>, window_params = [{transform_indices = @transform_0, window_bounds = array<i64: 16, 32>}, {pipeline_mode = #tpu.pipeline_mode<synchronous>, transform_indices = @transform_1, window_bounds = array<i64: 1, 32>}, {pipeline_mode = #tpu.pipeline_mode<synchronous>, transform_indices = @transform_2, window_bounds = array<i64: 1, 32>}, {transform_indices = @transform_3, window_bounds = array<i64: 16, 32>}]} {
    %c0 = arith.constant 0 : index
    %c0_0 = arith.constant 0 : index
    %0 = vector.load %arg1[%c0, %c0_0] : memref<16x32xbf16, #tpu.memory_space<vmem>>, vector<16x32xbf16>
    %1 = arith.extf %0 : vector<16x32xbf16> to vector<16x32xf32>
    %cst = arith.constant dense<0.000000e+00> : vector<16xf32>
    %2 = vector.multi_reduction <add>, %1, %cst [1] : vector<16x32xf32> to vector<16xf32>
    %3 = vector.shape_cast %2 : vector<16xf32> to vector<16x1xf32>
    %cst_1 = arith.constant 3.200000e+01 : f32
    %4 = vector.broadcast %cst_1 : f32 to vector<16x1xf32>
    %5 = arith.divf %3, %4 : vector<16x1xf32>
    %6 = vector.broadcast %5 : vector<16x1xf32> to vector<16x32xf32>
    %7 = arith.subf %1, %6 : vector<16x32xf32>
    %8 = arith.mulf %7, %7 : vector<16x32xf32>
    %cst_2 = arith.constant dense<0.000000e+00> : vector<16xf32>
    %9 = vector.multi_reduction <add>, %8, %cst_2 [1] : vector<16x32xf32> to vector<16xf32>
    %10 = vector.shape_cast %9 : vector<16xf32> to vector<16x1xf32>
    %cst_3 = arith.constant 3.200000e+01 : f32
    %11 = vector.broadcast %cst_3 : f32 to vector<16x1xf32>
    %12 = arith.divf %10, %11 : vector<16x1xf32>
    %13 = vector.broadcast %5 : vector<16x1xf32> to vector<16x32xf32>
    %14 = arith.subf %1, %13 : vector<16x32xf32>
    %cst_4 = arith.constant 9.99999996E-13 : f32
    %15 = vector.broadcast %cst_4 : f32 to vector<16x1xf32>
    %16 = arith.addf %12, %15 : vector<16x1xf32>
    %17 = math.rsqrt %16 : vector<16x1xf32>
    %18 = vector.broadcast %17 : vector<16x1xf32> to vector<16x32xf32>
    %19 = arith.mulf %14, %18 : vector<16x32xf32>
    %c0_5 = arith.constant 0 : index
    %c0_6 = arith.constant 0 : index
    %20 = vector.load %arg2[%c0_5, %c0_6] : memref<1x32xf32, #tpu.memory_space<vmem>>, vector<1x32xf32>
    %21 = vector.broadcast %20 : vector<1x32xf32> to vector<16x32xf32>
    %22 = arith.mulf %19, %21 : vector<16x32xf32>
    %c0_7 = arith.constant 0 : index
    %c0_8 = arith.constant 0 : index
    %23 = vector.load %arg3[%c0_7, %c0_8] : memref<1x32xf32, #tpu.memory_space<vmem>>, vector<1x32xf32>
    %24 = vector.broadcast %23 : vector<1x32xf32> to vector<16x32xf32>
    %25 = arith.addf %22, %24 : vector<16x32xf32>
    %26 = arith.truncf %25 : vector<16x32xf32> to vector<16x32xbf16>
    %c0_9 = arith.constant 0 : index
    %c0_10 = arith.constant 0 : index
    %27 = vector.load %arg4[%c0_9, %c0_10] : memref<16x32xbf16, #tpu.memory_space<vmem>>, vector<16x32xbf16>
    tpu.vector_store %arg4[%c0_9, %c0_10], %26 {strides = array<i32>} : memref<16x32xbf16, #tpu.memory_space<vmem>>, vector<16x32xbf16>,
    return
  }
  func.func @transform_0(%arg0: i32) -> (i32, i32) {
    %c0_i32 = arith.constant 0 : i32
    %c0_i32_0 = arith.constant 0 : i32
    return %arg0, %c0_i32 : i32, i32
  }
  func.func @transform_1(%arg0: i32) -> (i32, i32) {
    %c0_i32 = arith.constant 0 : i32
    %c0_i32_0 = arith.constant 0 : i32
    %c0_i32_1 = arith.constant 0 : i32
    return %c0_i32, %c0_i32_0 : i32, i32
  }
  func.func @transform_2(%arg0: i32) -> (i32, i32) {
    %c0_i32 = arith.constant 0 : i32
    %c0_i32_0 = arith.constant 0 : i32
    %c0_i32_1 = arith.constant 0 : i32
    return %c0_i32, %c0_i32_0 : i32, i32
  }
  func.func @transform_3(%arg0: i32) -> (i32, i32) {
    %c0_i32 = arith.constant 0 : i32
    %c0_i32_0 = arith.constant 0 : i32
    return %arg0, %c0_i32 : i32, i32
  }
}

module attributes {stable_mosaic.version = 11 : i64} {
  func.func @_matmul_bias_add_ln_kernel(%arg0: i32, %arg1: i32, %arg2: memref<16x64xbf16, #tpu.memory_space<vmem>>, %arg3: memref<64x32xbf16, #tpu.memory_space<vmem>>, %arg4: memref<1x32xf32, #tpu.memory_space<vmem>>, %arg5: memref<16x32xbf16, #tpu.memory_space<vmem>>, %arg6: memref<1x32xf32, #tpu.memory_space<vmem>>, %arg7: memref<1x32xf32, #tpu.memory_space<vmem>>, %arg8: memref<16x32xbf16, #tpu.memory_space<vmem>>, %arg9: memref<16x32xf32, #tpu.memory_space<vmem>>) attributes {dimension_semantics = [#tpu.dimension_semantics<parallel>, #tpu.dimension_semantics<arbitrary>], iteration_bounds = array<i64: 1, 1>, scalar_prefetch = 0 : i64, scratch_operands = 1 : i64, tpu.core_type = #tpu.core_type<tc>, window_params = [{transform_indices = @transform_0, window_bounds = array<i64: 16, 64>}, {transform_indices = @transform_1, window_bounds = array<i64: 64, 32>}, {pipeline_mode = #tpu.pipeline_mode<synchronous>, transform_indices = @transform_2, window_bounds = array<i64: 1, 32>}, {transform_indices = @transform_3, window_bounds = array<i64: 16, 32>}, {pipeline_mode = #tpu.pipeline_mode<synchronous>, transform_indices = @transform_4, window_bounds = array<i64: 1, 32>}, {pipeline_mode = #tpu.pipeline_mode<synchronous>, transform_indices = @transform_5, window_bounds = array<i64: 1, 32>}, {transform_indices = @transform_6, window_bounds = array<i64: 16, 32>}]} {
    %c0_i32 = arith.constant 0 : i32
    %0 = arith.cmpi eq, %arg1, %c0_i32 : i32
    %1 = arith.extui %0 : i1 to i32
    %c0_i32_0 = arith.constant 0 : i32
    %2 = arith.cmpi ne, %1, %c0_i32_0 : i32
    scf.if %2 {
      %cst_10 = arith.constant 0.000000e+00 : f32
      %12 = vector.broadcast %cst_10 : f32 to vector<16x32xf32>
      %c0_11 = arith.constant 0 : index
      %c0_12 = arith.constant 0 : index
      %13 = vector.load %arg9[%c0_11, %c0_12] : memref<16x32xf32, #tpu.memory_space<vmem>>, vector<16x32xf32>
      tpu.vector_store %arg9[%c0_11, %c0_12], %12 {strides = array<i32>} : memref<16x32xf32, #tpu.memory_space<vmem>>, vector<16x32xf32>,
    } else {
    }
    %c0 = arith.constant 0 : index
    %c0_1 = arith.constant 0 : index
    %3 = vector.load %arg9[%c0, %c0_1] : memref<16x32xf32, #tpu.memory_space<vmem>>, vector<16x32xf32>
    %c0_2 = arith.constant 0 : index
    %c0_3 = arith.constant 0 : index
    %4 = vector.load %arg2[%c0_2, %c0_3] : memref<16x64xbf16, #tpu.memory_space<vmem>>, vector<16x64xbf16>
    %c0_4 = arith.constant 0 : index
    %c0_5 = arith.constant 0 : index
    %5 = vector.load %arg3[%c0_4, %c0_5] : memref<64x32xbf16, #tpu.memory_space<vmem>>, vector<64x32xbf16>
    %cst = arith.constant dense<0.000000e+00> : vector<16x32xf32>
    %6 = tpu.matmul %4, %5, %cst {dimension_numbers = #tpu.dot_dimension_numbers<[1], [0], [0], [1], [0, 0, 1, 1], [], []>} : vector<16x64xbf16>, vector<64x32xbf16>, vector<16x32xf32> -> vector<16x32xf32>
    %7 = arith.addf %3, %6 : vector<16x32xf32>
    %c0_6 = arith.constant 0 : index
    %c0_7 = arith.constant 0 : index
    %8 = vector.load %arg9[%c0_6, %c0_7] : memref<16x32xf32, #tpu.memory_space<vmem>>, vector<16x32xf32>
    tpu.vector_store %arg9[%c0_6, %c0_7], %7 {strides = array<i32>} : memref<16x32xf32, #tpu.memory_space<vmem>>, vector<16x32xf32>,
    %c0_i32_8 = arith.constant 0 : i32
    %9 = arith.cmpi eq, %arg1, %c0_i32_8 : i32
    %10 = arith.extui %9 : i1 to i32
    %c0_i32_9 = arith.constant 0 : i32
    %11 = arith.cmpi ne, %10, %c0_i32_9 : i32
    scf.if %11 {
      %c0_10 = arith.constant 0 : index
      %c0_11 = arith.constant 0 : index
      %12 = vector.load %arg9[%c0_10, %c0_11] : memref<16x32xf32, #tpu.memory_space<vmem>>, vector<16x32xf32>
      %c0_12 = arith.constant 0 : index
      %c0_13 = arith.constant 0 : index
      %13 = vector.load %arg4[%c0_12, %c0_13] : memref<1x32xf32, #tpu.memory_space<vmem>>, vector<1x32xf32>
      %14 = vector.broadcast %13 : vector<1x32xf32> to vector<16x32xf32>
      %15 = arith.addf %12, %14 : vector<16x32xf32>
      %c0_14 = arith.constant 0 : index
      %c0_15 = arith.constant 0 : index
      %16 = vector.load %arg5[%c0_14, %c0_15] : memref<16x32xbf16, #tpu.memory_space<vmem>>, vector<16x32xbf16>
      %17 = arith.extf %16 : vector<16x32xbf16> to vector<16x32xf32>
      %18 = arith.addf %15, %17 : vector<16x32xf32>
      %cst_16 = arith.constant dense<0.000000e+00> : vector<16xf32>
      %19 = vector.multi_reduction <add>, %18, %cst_16 [1] : vector<16x32xf32> to vector<16xf32>
      %20 = vector.shape_cast %19 : vector<16xf32> to vector<16x1xf32>
      %cst_17 = arith.constant 3.200000e+01 : f32
      %21 = vector.broadcast %cst_17 : f32 to vector<16x1xf32>
      %22 = arith.divf %20, %21 : vector<16x1xf32>
      %23 = vector.broadcast %22 : vector<16x1xf32> to vector<16x32xf32>
      %24 = arith.subf %18, %23 : vector<16x32xf32>
      %25 = arith.mulf %24, %24 : vector<16x32xf32>
      %cst_18 = arith.constant dense<0.000000e+00> : vector<16xf32>
      %26 = vector.multi_reduction <add>, %25, %cst_18 [1] : vector<16x32xf32> to vector<16xf32>
      %27 = vector.shape_cast %26 : vector<16xf32> to vector<16x1xf32>
      %cst_19 = arith.constant 3.200000e+01 : f32
      %28 = vector.broadcast %cst_19 : f32 to vector<16x1xf32>
      %29 = arith.divf %27, %28 : vector<16x1xf32>
      %30 = vector.broadcast %22 : vector<16x1xf32> to vector<16x32xf32>
      %31 = arith.subf %18, %30 : vector<16x32xf32>
      %cst_20 = arith.constant 9.99999996E-13 : f32
      %32 = vector.broadcast %cst_20 : f32 to vector<16x1xf32>
      %33 = arith.addf %29, %32 : vector<16x1xf32>
      %34 = math.rsqrt %33 : vector<16x1xf32>
      %35 = vector.broadcast %34 : vector<16x1xf32> to vector<16x32xf32>
      %36 = arith.mulf %31, %35 : vector<16x32xf32>
      %c0_21 = arith.constant 0 : index
      %c0_22 = arith.constant 0 : index
      %37 = vector.load %arg6[%c0_21, %c0_22] : memref<1x32xf32, #tpu.memory_space<vmem>>, vector<1x32xf32>
      %38 = vector.broadcast %37 : vector<1x32xf32> to vector<16x32xf32>
      %39 = arith.mulf %36, %38 : vector<16x32xf32>
      %c0_23 = arith.constant 0 : index
      %c0_24 = arith.constant 0 : index
      %40 = vector.load %arg7[%c0_23, %c0_24] : memref<1x32xf32, #tpu.memory_space<vmem>>, vector<1x32xf32>
      %41 = vector.broadcast %40 : vector<1x32xf32> to vector<16x32xf32>
      %42 = arith.addf %39, %41 : vector<16x32xf32>
      %43 = arith.truncf %42 : vector<16x32xf32> to vector<16x32xbf16>
      %c0_25 = arith.constant 0 : index
      %c0_26 = arith.constant 0 : index
      %44 = vector.load %arg8[%c0_25, %c0_26] : memref<16x32xbf16, #tpu.memory_space<vmem>>, vector<16x32xbf16>
      tpu.vector_store %arg8[%c0_25, %c0_26], %43 {strides = array<i32>} : memref<16x32xbf16, #tpu.memory_space<vmem>>, vector<16x32xbf16>,
    } else {
    }
    return
  }
  func.func @transform_0(%arg0: i32, %arg1: i32) -> (i32, i32) {
    %c0_i32 = arith.constant 0 : i32
    return %arg0, %arg1 : i32, i32
  }
  func.func @transform_1(%arg0: i32, %arg1: i32) -> (i32, i32) {
    %c0_i32 = arith.constant 0 : i32
    %c0_i32_0 = arith.constant 0 : i32
    return %arg1, %c0_i32 : i32, i32
  }
  func.func @transform_2(%arg0: i32, %arg1: i32) -> (i32, i32) {
    %c0_i32 = arith.constant 0 : i32
    %c0_i32_0 = arith.constant 0 : i32
    %c0_i32_1 = arith.constant 0 : i32
    return %c0_i32, %c0_i32_0 : i32, i32
  }
  func.func @transform_3(%arg0: i32, %arg1: i32) -> (i32, i32) {
    %c0_i32 = arith.constant 0 : i32
    %c0_i32_0 = arith.constant 0 : i32
    return %arg0, %c0_i32 : i32, i32
  }
  func.func @transform_4(%arg0: i32, %arg1: i32) -> (i32, i32) {
    %c0_i32 = arith.constant 0 : i32
    %c0_i32_0 = arith.constant 0 : i32
    %c0_i32_1 = arith.constant 0 : i32
    return %c0_i32, %c0_i32_0 : i32, i32
  }
  func.func @transform_5(%arg0: i32, %arg1: i32) -> (i32, i32) {
    %c0_i32 = arith.constant 0 : i32
    %c0_i32_0 = arith.constant 0 : i32
    %c0_i32_1 = arith.constant 0 : i32
    return %c0_i32, %c0_i32_0 : i32, i32
  }
  func.func @transform_6(%arg0: i32, %arg1: i32) -> (i32, i32) {
    %c0_i32 = arith.constant 0 : i32
    %c0_i32_0 = arith.constant 0 : i32
    return %arg0, %c0_i32 : i32, i32
  }
}

module attributes {stable_mosaic.version = 11 : i64} {
  func.func @_decoder_xent_kernel(%arg0: i32, %arg1: i32, %arg2: memref<16x32xbf16, #tpu.memory_space<vmem>>, %arg3: memref<64x32xbf16, #tpu.memory_space<vmem>>, %arg4: memref<1x64xf32, #tpu.memory_space<vmem>>, %arg5: memref<16x1xi32, #tpu.memory_space<vmem>>, %arg6: memref<16x1xf32, #tpu.memory_space<vmem>>, %arg7: memref<16x1xf32, #tpu.memory_space<vmem>>, %arg8: memref<16x1xf32, #tpu.memory_space<vmem>>, %arg9: memref<16x1xf32, #tpu.memory_space<vmem>>) attributes {dimension_semantics = [#tpu.dimension_semantics<parallel>, #tpu.dimension_semantics<arbitrary>], iteration_bounds = array<i64: 1, 1>, scalar_prefetch = 0 : i64, scratch_operands = 3 : i64, tpu.core_type = #tpu.core_type<tc>, window_params = [{transform_indices = @transform_0, window_bounds = array<i64: 16, 32>}, {transform_indices = @transform_1, window_bounds = array<i64: 64, 32>}, {transform_indices = @transform_2, window_bounds = array<i64: 1, 64>}, {transform_indices = @transform_3, window_bounds = array<i64: 16, 1>}, {transform_indices = @transform_4, window_bounds = array<i64: 16, 1>}]} {
    %c0_i32 = arith.constant 0 : i32
    %0 = arith.cmpi eq, %arg1, %c0_i32 : i32
    %1 = arith.extui %0 : i1 to i32
    %c0_i32_0 = arith.constant 0 : i32
    %2 = arith.cmpi ne, %1, %c0_i32_0 : i32
    scf.if %2 {
      %cst_30 = arith.constant 0xFF800000 : f32
      %47 = vector.broadcast %cst_30 : f32 to vector<16x1xf32>
      %c0_31 = arith.constant 0 : index
      %c0_32 = arith.constant 0 : index
      %48 = vector.load %arg7[%c0_31, %c0_32] : memref<16x1xf32, #tpu.memory_space<vmem>>, vector<16x1xf32>
      tpu.vector_store %arg7[%c0_31, %c0_32], %47 {strides = array<i32>} : memref<16x1xf32, #tpu.memory_space<vmem>>, vector<16x1xf32>,
      %cst_33 = arith.constant 0.000000e+00 : f32
      %49 = vector.broadcast %cst_33 : f32 to vector<16x1xf32>
      %c0_34 = arith.constant 0 : index
      %c0_35 = arith.constant 0 : index
      %50 = vector.load %arg8[%c0_34, %c0_35] : memref<16x1xf32, #tpu.memory_space<vmem>>, vector<16x1xf32>
      tpu.vector_store %arg8[%c0_34, %c0_35], %49 {strides = array<i32>} : memref<16x1xf32, #tpu.memory_space<vmem>>, vector<16x1xf32>,
      %cst_36 = arith.constant 0.000000e+00 : f32
      %51 = vector.broadcast %cst_36 : f32 to vector<16x1xf32>
      %c0_37 = arith.constant 0 : index
      %c0_38 = arith.constant 0 : index
      %52 = vector.load %arg9[%c0_37, %c0_38] : memref<16x1xf32, #tpu.memory_space<vmem>>, vector<16x1xf32>
      tpu.vector_store %arg9[%c0_37, %c0_38], %51 {strides = array<i32>} : memref<16x1xf32, #tpu.memory_space<vmem>>, vector<16x1xf32>,
    } else {
    }
    %c0 = arith.constant 0 : index
    %c0_1 = arith.constant 0 : index
    %3 = vector.load %arg2[%c0, %c0_1] : memref<16x32xbf16, #tpu.memory_space<vmem>>, vector<16x32xbf16>
    %c0_2 = arith.constant 0 : index
    %c0_3 = arith.constant 0 : index
    %4 = vector.load %arg3[%c0_2, %c0_3] : memref<64x32xbf16, #tpu.memory_space<vmem>>, vector<64x32xbf16>
    %cst = arith.constant dense<0.000000e+00> : vector<16x64xf32>
    %5 = tpu.matmul %3, %4, %cst {dimension_numbers = #tpu.dot_dimension_numbers<[1], [1], [0], [0], [0, 0, 1, 0], [], []>} : vector<16x32xbf16>, vector<64x32xbf16>, vector<16x64xf32> -> vector<16x64xf32>
    %c0_4 = arith.constant 0 : index
    %c0_5 = arith.constant 0 : index
    %6 = vector.load %arg4[%c0_4, %c0_5] : memref<1x64xf32, #tpu.memory_space<vmem>>, vector<1x64xf32>
    %7 = vector.broadcast %6 : vector<1x64xf32> to vector<16x64xf32>
    %8 = arith.addf %5, %7 : vector<16x64xf32>
    %9 = tpu.iota {dimensions = array<i32: 1>} : vector<16x64xi32>
    %c64_i32 = arith.constant 64 : i32
    %10 = arith.muli %arg1, %c64_i32 : i32
    %11 = vector.broadcast %10 : i32 to vector<16x64xi32>
    %12 = arith.addi %9, %11 : vector<16x64xi32>
    %c64_i32_6 = arith.constant 64 : i32
    %13 = vector.broadcast %c64_i32_6 : i32 to vector<16x64xi32>
    %14 = arith.cmpi slt, %12, %13 : vector<16x64xi32>
    %cst_7 = arith.constant -1.000000e+30 : f32
    %15 = vector.broadcast %cst_7 : f32 to vector<16x64xf32>
    %16 = arith.select %14, %8, %15 : vector<16x64xi1>, vector<16x64xf32>
    %c0_8 = arith.constant 0 : index
    %c0_9 = arith.constant 0 : index
    %17 = vector.load %arg7[%c0_8, %c0_9] : memref<16x1xf32, #tpu.memory_space<vmem>>, vector<16x1xf32>
    %cst_10 = arith.constant dense<0xFF800000> : vector<16xf32>
    %18 = vector.multi_reduction <maximumf>, %16, %cst_10 [1] : vector<16x64xf32> to vector<16xf32>
    %19 = vector.shape_cast %18 : vector<16xf32> to vector<16x1xf32>
    %20 = arith.maximumf %17, %19 : vector<16x1xf32>
    %c0_11 = arith.constant 0 : index
    %c0_12 = arith.constant 0 : index
    %21 = vector.load %arg8[%c0_11, %c0_12] : memref<16x1xf32, #tpu.memory_space<vmem>>, vector<16x1xf32>
    %c0_13 = arith.constant 0 : index
    %c0_14 = arith.constant 0 : index
    %22 = vector.load %arg7[%c0_13, %c0_14] : memref<16x1xf32, #tpu.memory_space<vmem>>, vector<16x1xf32>
    %23 = arith.subf %22, %20 : vector<16x1xf32>
    %24 = math.exp %23 : vector<16x1xf32>
    %25 = arith.mulf %21, %24 : vector<16x1xf32>
    %26 = vector.broadcast %20 : vector<16x1xf32> to vector<16x64xf32>
    %27 = arith.subf %16, %26 : vector<16x64xf32>
    %28 = math.exp %27 : vector<16x64xf32>
    %cst_15 = arith.constant dense<0.000000e+00> : vector<16xf32>
    %29 = vector.multi_reduction <add>, %28, %cst_15 [1] : vector<16x64xf32> to vector<16xf32>
    %30 = vector.shape_cast %29 : vector<16xf32> to vector<16x1xf32>
    %31 = arith.addf %25, %30 : vector<16x1xf32>
    %c0_16 = arith.constant 0 : index
    %c0_17 = arith.constant 0 : index
    %32 = vector.load %arg8[%c0_16, %c0_17] : memref<16x1xf32, #tpu.memory_space<vmem>>, vector<16x1xf32>
    tpu.vector_store %arg8[%c0_16, %c0_17], %31 {strides = array<i32>} : memref<16x1xf32, #tpu.memory_space<vmem>>, vector<16x1xf32>,
    %c0_18 = arith.constant 0 : index
    %c0_19 = arith.constant 0 : index
    %33 = vector.load %arg7[%c0_18, %c0_19] : memref<16x1xf32, #tpu.memory_space<vmem>>, vector<16x1xf32>
    tpu.vector_store %arg7[%c0_18, %c0_19], %20 {strides = array<i32>} : memref<16x1xf32, #tpu.memory_space<vmem>>, vector<16x1xf32>,
    %c0_20 = arith.constant 0 : index
    %c0_21 = arith.constant 0 : index
    %34 = vector.load %arg5[%c0_20, %c0_21] : memref<16x1xi32, #tpu.memory_space<vmem>>, vector<16x1xi32>
    %35 = vector.broadcast %34 : vector<16x1xi32> to vector<16x64xi32>
    %36 = arith.cmpi eq, %12, %35 : vector<16x64xi32>
    %c0_22 = arith.constant 0 : index
    %c0_23 = arith.constant 0 : index
    %37 = vector.load %arg9[%c0_22, %c0_23] : memref<16x1xf32, #tpu.memory_space<vmem>>, vector<16x1xf32>
    %cst_24 = arith.constant 0.000000e+00 : f32
    %38 = vector.broadcast %cst_24 : f32 to vector<16x64xf32>
    %39 = arith.select %36, %16, %38 : vector<16x64xi1>, vector<16x64xf32>
    %cst_25 = arith.constant dense<0.000000e+00> : vector<16xf32>
    %40 = vector.multi_reduction <add>, %39, %cst_25 [1] : vector<16x64xf32> to vector<16xf32>
    %41 = vector.shape_cast %40 : vector<16xf32> to vector<16x1xf32>
    %42 = arith.addf %37, %41 : vector<16x1xf32>
    %c0_26 = arith.constant 0 : index
    %c0_27 = arith.constant 0 : index
    %43 = vector.load %arg9[%c0_26, %c0_27] : memref<16x1xf32, #tpu.memory_space<vmem>>, vector<16x1xf32>
    tpu.vector_store %arg9[%c0_26, %c0_27], %42 {strides = array<i32>} : memref<16x1xf32, #tpu.memory_space<vmem>>, vector<16x1xf32>,
    %c0_i32_28 = arith.constant 0 : i32
    %44 = arith.cmpi eq, %arg1, %c0_i32_28 : i32
    %45 = arith.extui %44 : i1 to i32
    %c0_i32_29 = arith.constant 0 : i32
    %46 = arith.cmpi ne, %45, %c0_i32_29 : i32
    scf.if %46 {
      %c0_30 = arith.constant 0 : index
      %c0_31 = arith.constant 0 : index
      %47 = vector.load %arg5[%c0_30, %c0_31] : memref<16x1xi32, #tpu.memory_space<vmem>>, vector<16x1xi32>
      %c-100_i32 = arith.constant -100 : i32
      %48 = vector.broadcast %c-100_i32 : i32 to vector<16x1xi32>
      %49 = arith.cmpi ne, %47, %48 : vector<16x1xi32>
      %c0_32 = arith.constant 0 : index
      %c0_33 = arith.constant 0 : index
      %50 = vector.load %arg8[%c0_32, %c0_33] : memref<16x1xf32, #tpu.memory_space<vmem>>, vector<16x1xf32>
      %51 = math.log %50 : vector<16x1xf32>
      %c0_34 = arith.constant 0 : index
      %c0_35 = arith.constant 0 : index
      %52 = vector.load %arg7[%c0_34, %c0_35] : memref<16x1xf32, #tpu.memory_space<vmem>>, vector<16x1xf32>
      %53 = arith.addf %51, %52 : vector<16x1xf32>
      %c0_36 = arith.constant 0 : index
      %c0_37 = arith.constant 0 : index
      %54 = vector.load %arg9[%c0_36, %c0_37] : memref<16x1xf32, #tpu.memory_space<vmem>>, vector<16x1xf32>
      %55 = arith.subf %53, %54 : vector<16x1xf32>
      %cst_38 = arith.constant 0.000000e+00 : f32
      %56 = vector.broadcast %cst_38 : f32 to vector<16x1xf32>
      %57 = arith.select %49, %55, %56 : vector<16x1xi1>, vector<16x1xf32>
      %c0_39 = arith.constant 0 : index
      %c0_40 = arith.constant 0 : index
      %58 = vector.load %arg6[%c0_39, %c0_40] : memref<16x1xf32, #tpu.memory_space<vmem>>, vector<16x1xf32>
      tpu.vector_store %arg6[%c0_39, %c0_40], %57 {strides = array<i32>} : memref<16x1xf32, #tpu.memory_space<vmem>>, vector<16x1xf32>,
    } else {
    }
    return
  }
  func.func @transform_0(%arg0: i32, %arg1: i32) -> (i32, i32) {
    %c0_i32 = arith.constant 0 : i32
    %c0_i32_0 = arith.constant 0 : i32
    return %arg0, %c0_i32 : i32, i32
  }
  func.func @transform_1(%arg0: i32, %arg1: i32) -> (i32, i32) {
    %c0_i32 = arith.constant 0 : i32
    %c0_i32_0 = arith.constant 0 : i32
    return %arg1, %c0_i32 : i32, i32
  }
  func.func @transform_2(%arg0: i32, %arg1: i32) -> (i32, i32) {
    %c0_i32 = arith.constant 0 : i32
    %c0_i32_0 = arith.constant 0 : i32
    return %c0_i32, %arg1 : i32, i32
  }
  func.func @transform_3(%arg0: i32, %arg1: i32) -> (i32, i32) {
    %c0_i32 = arith.constant 0 : i32
    %c0_i32_0 = arith.constant 0 : i32
    return %arg0, %c0_i32 : i32, i32
  }
  func.func @transform_4(%arg0: i32, %arg1: i32) -> (i32, i32) {
    %c0_i32 = arith.constant 0 : i32
    %c0_i32_0 = arith.constant 0 : i32
    return %arg0, %c0_i32 : i32, i32
  }
}

</mosaic_0001>

<llo_original>
// kernel: post_model_forward.16
$region0: #{post_model_forward.16}
  #allocation0 [shape = 'u32[]', space=smem, size = 0x4, offset = 0x4, fixed_abs, tag = 'smem constant byte address 0x4 - core index']
  #allocation1 [shape = 'u32[72,128]{1,0:T(1,128)}', space=vmem, size = 0x9000, scoped, tag = 'internal scratch']
  %s0 = inlined_call_operand.vmem [shape: bf16[16,96], index: 0, kind: input, shape index: {}]
  %s1 = inlined_call_operand.vmem [shape: f32[2,1,8], index: 1, kind: input, shape index: {}]
  %s2 = inlined_call_operand.vmem [shape: bf16[16,32], index: 2, kind: output, shape index: {}]
  %s3 = sld [smem:[#allocation0]]
  $region41: #{post_model_forward.16} parent=0
    _
  %s5 = ssub.s32 1, %s3
  %s6 = scalar_select 0, %s5, %s3
  loop: start=0, step=1, limit=4
  $region2: #{post_model_forward.16} parent=0 // loop_pre_header
    _
  $region3: #{post_model_forward.16} parent=0 // loop_header
    %s8 = sphi 0, %s12
    %p9 = scmp.ge.s32.totalorder %s8, 4
    %s18 = sphi 0, %s20
    %s21 = sphi 0, %s18
    %s22 = sphi 0, %s21
    %s38 = sphi 0, %s22
    %s44 = sphi 0, %s46
    %s47 = sphi 0, %s44
    %s48 = sphi 0, %s47
    %s64 = sphi 0, %s48
    %s70 = sphi 0, %s72
    %s73 = sphi 0, %s70
    %s74 = sphi 0, %s73
    %s90 = sphi 0, %s74
  $region4: #{post_model_forward.16} parent=0 // loop_header_branch
    %11 = sbr.rel (%p9) target = $region8
  $region5: #{post_model_forward.16} parent=0 // loop_body
    %s13 = ssub.s32 %s8, 1
    %s14 = ssub.s32 %s8, 2
    %s15 = sadd.s32 %s8, 1
    %s16 = ssub.s32 %s8, %s15
    %p17 = scmp.eq.s32.totalorder %s16, 0
    %s19 = sadd.s32 %s18, 1
    %s20 = scalar_select %p17, %s18, %s19
    %p23 = pneg %p17
    %p24 = scmp.eq.s32.totalorder %s8, 1
    %p25 = por %p23, %p24
    %p26 = scmp.ne.s32.totalorder %s18, %s21
    %p27 = scmp.eq.s32.totalorder %s8, 0
    %p28 = por %p26, %p27
    %p29 = scmp.ne.s32.totalorder %s18, %s21
    %p30 = scmp.eq.s32.totalorder %s13, 1
    %p31 = por %p29, %p30
    %p32 = scmp.ne.s32.totalorder %s21, %s22
    %p33 = scmp.eq.s32.totalorder %s13, 0
    %p34 = por %p32, %p33
    %p35 = scmp.ne.s32.totalorder %s21, %s22
    %p36 = scmp.eq.s32.totalorder %s14, 1
    %p37 = por %p35, %p36
    %p39 = scmp.ne.s32.totalorder %s22, %s38
    %p40 = scmp.eq.s32.totalorder %s14, 0
    %p41 = por %p39, %p40
    %s42 = ssub.s32 %s8, %s15
    %p43 = scmp.eq.s32.totalorder %s42, 0
    %s45 = sadd.s32 %s44, 1
    %s46 = scalar_select %p43, %s44, %s45
    %p49 = pneg %p43
    %p50 = scmp.eq.s32.totalorder %s8, 1
    %p51 = por %p49, %p50
    %p52 = scmp.ne.s32.totalorder %s44, %s47
    %p53 = scmp.eq.s32.totalorder %s8, 0
    %p54 = por %p52, %p53
    %p55 = scmp.ne.s32.totalorder %s44, %s47
    %p56 = scmp.eq.s32.totalorder %s13, 1
    %p57 = por %p55, %p56
    %p58 = scmp.ne.s32.totalorder %s47, %s48
    %p59 = scmp.eq.s32.totalorder %s13, 0
    %p60 = por %p58, %p59
    %p61 = scmp.ne.s32.totalorder %s47, %s48
    %p62 = scmp.eq.s32.totalorder %s14, 1
    %p63 = por %p61, %p62
    %p65 = scmp.ne.s32.totalorder %s48, %s64
    %p66 = scmp.eq.s32.totalorder %s14, 0
    %p67 = por %p65, %p66
    %s68 = ssub.s32 %s8, %s15
    %p69 = scmp.eq.s32.totalorder %s68, 0
    %s71 = sadd.s32 %s70, 1
    %s72 = scalar_select %p69, %s70, %s71
    %p75 = pneg %p69
    %p76 = scmp.eq.s32.totalorder %s8, 1
    %p77 = por %p75, %p76
    %p78 = scmp.ne.s32.totalorder %s70, %s73
    %p79 = scmp.eq.s32.totalorder %s8, 0
    %p80 = por %p78, %p79
    %p81 = scmp.ne.s32.totalorder %s70, %s73
    %p82 = scmp.eq.s32.totalorder %s13, 1
    %p83 = por %p81, %p82
    %p84 = scmp.ne.s32.totalorder %s73, %s74
    %p85 = scmp.eq.s32.totalorder %s13, 0
    %p86 = por %p84, %p85
    %p87 = scmp.ne.s32.totalorder %s73, %s74
    %p88 = scmp.eq.s32.totalorder %s14, 1
    %p89 = por %p87, %p88
    %p91 = scmp.ne.s32.totalorder %s74, %s90
    %p92 = scmp.eq.s32.totalorder %s14, 0
    %p93 = por %p91, %p92
    %p94 = scmp.le.s32.totalorder 1, %s8
    %p95 = scmp.lt.s32.totalorder %s8, 3
    %p96 = pnand %p94, %p95
    %p97 = pneg %p96
    // Predicated region
    $region9: #{post_model_forward.16} parent=5 // pred_check
      _
    $region10: #{post_model_forward.16} parent=5 // pred_check_branch
      %99 = sbr.rel (%p96) target = $region12
    $region11: #{post_model_forward.16} parent=5 // pred_region
      %s100 = ssub.s32 %s8, 1
    $region12: #{post_model_forward.16} parent=5 // pred_fallthru
      _
    %p101 = scmp.lt.s32.totalorder %s8, 2
    // Predicated region
    $region13: #{post_model_forward.16} parent=5 // pred_check
      %p102 = pneg %p101
    $region14: #{post_model_forward.16} parent=5 // pred_check_branch
      %104 = sbr.rel (%p102) target = $region16
    $region15: #{post_model_forward.16} parent=5 // pred_region
      // Predicated region
      $region17: #{post_model_forward.16} parent=15 // pred_check
        %p105 = pneg %p28
      $region18: #{post_model_forward.16} parent=15 // pred_check_branch
        %107 = sbr.rel (%p105) target = $region20
      $region19: #{post_model_forward.16} parent=15 // pred_region
        %p108 = scmp.lt.s32.totalorder %s8, 1
        %s109 = scalar_select %p108, %s8, 1
        %s110 = smul.addr %s109, 4
        %s111 = scalar_lea.vmem %s0, %s110
      $region20: #{post_model_forward.16} parent=15 // pred_fallthru
        _
      // Predicated region
      $region21: #{post_model_forward.16} parent=15 // pred_check
        %p112 = pneg %p54
      $region22: #{post_model_forward.16} parent=15 // pred_check_branch
        %114 = sbr.rel (%p112) target = $region24
      $region23: #{post_model_forward.16} parent=15 // pred_region
        %p115 = scmp.lt.s32.totalorder %s8, 1
        %s116 = scalar_select %p115, %s8, 1
        %s117 = scalar_lea.vmem %s1, %s116
      $region24: #{post_model_forward.16} parent=15 // pred_fallthru
        _
    $region16: #{post_model_forward.16} parent=5 // pred_fallthru
      _
    %p118 = scmp.le.s32.totalorder 1, %s8
    %p119 = scmp.lt.s32.totalorder %s8, 3
    %p120 = pnand %p118, %p119
    %p121 = pneg %p120
    // Predicated region
    $region25: #{post_model_forward.16} parent=5 // pred_check
      _
    $region26: #{post_model_forward.16} parent=5 // pred_check_branch
      %123 = sbr.rel (%p120) target = $region28
    $region27: #{post_model_forward.16} parent=5 // pred_region
      %s124 = ssub.s32 %s8, 1
      %p125 = scmp.lt.s32.totalorder %s13, 1
      %s126 = scalar_select %p125, %s13, 1
      %s127 = smul.addr %s126, 4
      %s128 = scalar_lea.vmem %s0, %s127
      %p129 = pneg %p34
      %p130 = pneg %p31
      %p131 = scmp.lt.s32.totalorder %s13, 1
      %s132 = scalar_select %p131, %s13, 1
      %s133 = scalar_lea.vmem %s1, %s132
      %p134 = pneg %p60
      %p135 = pneg %p57
      %p136 = pneg %p86
      %p137 = pneg %p83
      %p138 = scmp.lt.s32.totalorder %s13, 1
      %s139 = scalar_select %p138, %s13, 1
      %s140 = smul.addr %s139, 4
      %s141 = scalar_lea.vmem %s2, %s140
      %p142 = scmp.lt.s32.totalorder %s13, 1
      %s143 = scalar_select %p142, %s13, 1
      %s144 = smul.addr %s143, 4
      %s145 = scalar_lea.vmem %s0, %s144
      %p146 = scmp.lt.s32.totalorder %s13, 1
      %s147 = scalar_select %p146, %s13, 1
      %s148 = scalar_lea.vmem %s1, %s147
      %p149 = scmp.lt.s32.totalorder %s13, 1
      %s150 = scalar_select %p149, %s13, 1
      %s151 = smul.addr %s150, 4
      %s152 = scalar_lea.vmem %s2, %s151
      %v154 = vld [vmem:[%s148] sm:$0x1]
      %v155 = vld [vmem:[%s145] sm:$0xf]
      %v157 = vunpack.c.l.b16 %v155
      %v158 = vpack.c.b16 %v157, %v157
      %159 = vrot.lane.b32.xlu0 %v158, 96
      %v160 = vpop.permute.xlu0 %159
      %vm161 = vcmask 130048
      %v163 = vsel %vm161, %v155, 0
      %v166 = vsel %vm161, %v160, 0
      %168 = vmatpush.bf16.xpose.msra.mxu0 0
      %169 = vmatpush.bf16.xpose.msra.mxu0 0
      %170 = vmatpush.bf16.xpose.msra.mxu0 0
      %171 = vmatpush.bf16.xpose.msra.mxu0 0
      %172 = vmatpush.bf16.xpose.msra.mxu0 0
      %173 = vmatpush.bf16.xpose.msra.mxu0 0
      %174 = vmatpush.bf16.xpose.msra.mxu0 0
      %175 = vmatpush.bf16.xpose.msra.mxu0 %v166
      %176 = vmatmul.bf16.gmra.mxu0 %v163
      %v177 = vpop.f32.mrf.mxu0
      %v178 = vadd.f32 0.0, %v177
      %v179 = vpop.f32.mrf.mxu0
      %180 = vdwg.mxu0
      %v181 = vmul.f32 %v178, 0.25
      %v183 = vperm.slane %v154, 0
      %v185 = vadd.f32 %v181, %v183
      %vm186 = vcmask 64512
      %v187 = vsel %vm186, %v185, -inf
      %188 = vmax.xlane.f32.xlu0 %v187
      %v189 = vpop.xlane.xlu0 %188
      %v190 = vsub.f32 %v185, %v189
      %v191 = vmul.f32 %v190, 1.442695
      %v192 = vpow.pop %v191
      %v193 = vsel %vm186, %v192, 0.0
      %194 = vadd.xlane.f32.xlu0 %v193
      %v195 = vpop.xlane.xlu0 %194
      %v196 = vrcp.pop %v195
      %v197 = vmul.f32 %v192, %v196
      %v198 = vpack.c.bf16 %v197, %v197
      %199 = vrot.lane.b32.xlu0 %v158, 64
      %v200 = vpop.permute.xlu0 %199
      %v202 = vsel %vm186, %v198, 0
      %vm204 = vcmask 1043456
      %v206 = vsel %vm204, %v200, 0
      %208 = vmatpush.bf16.msra.mxu0 0
      %209 = vmatpush.bf16.msra.mxu0 0
      %210 = vmatpush.bf16.msra.mxu0 0
      %211 = vmatpush.bf16.msra.mxu0 0
      %212 = vmatpush.bf16.msra.mxu0 0
      %213 = vmatpush.bf16.msra.mxu0 0
      %214 = vmatpush.bf16.msra.mxu0 0
      %215 = vmatpush.bf16.msra.mxu0 %v206
      %216 = vmatmul.bf16.gmra.mxu0 %v202
      %v217 = vpop.f32.mrf.mxu0
      %v218 = vadd.f32 0.0, %v217
      %v219 = vpop.f32.mrf.mxu0
      %220 = vdwg.mxu0
      %v221 = vpack.c.bf16 %v218, %v218
      %vm222 = vcmask 125952
      %223 = vst.msk [vmem:[%s152] sm:$0xf] %vm222, %v221
      %v224 = vld [vmem:[%s145] sm:$0xf]
      %v226 = vunpack.c.l.b16 %v224
      %v227 = vpack.c.b16 %v226, %v226
      %228 = vrot.lane.b32.xlu0 %v227, 112
      %v229 = vpop.permute.xlu0 %228
      %230 = vrot.lane.b32.xlu0 %v227, 80
      %v231 = vpop.permute.xlu0 %230
      %v233 = vsel %vm161, %v229, 0
      %v236 = vsel %vm161, %v231, 0
      %238 = vmatpush.bf16.xpose.msra.mxu0 0
      %239 = vmatpush.bf16.xpose.msra.mxu0 0
      %240 = vmatpush.bf16.xpose.msra.mxu0 0
      %241 = vmatpush.bf16.xpose.msra.mxu0 0
      %242 = vmatpush.bf16.xpose.msra.mxu0 0
      %243 = vmatpush.bf16.xpose.msra.mxu0 0
      %244 = vmatpush.bf16.xpose.msra.mxu0 0
      %245 = vmatpush.bf16.xpose.msra.mxu0 %v236
      %246 = vmatmul.bf16.gmra.mxu0 %v233
      %v247 = vpop.f32.mrf.mxu0
      %v248 = vadd.f32 0.0, %v247
      %v249 = vpop.f32.mrf.mxu0
      %250 = vdwg.mxu0
      %v251 = vmul.f32 %v248, 0.25
      %v252 = vadd.f32 %v251, %v183
      %v253 = vsel %vm186, %v252, -inf
      %254 = vmax.xlane.f32.xlu0 %v253
      %v255 = vpop.xlane.xlu0 %254
      %v256 = vsub.f32 %v252, %v255
      %v257 = vmul.f32 %v256, 1.442695
      %v258 = vpow.pop %v257
      %v259 = vsel %vm186, %v258, 0.0
      %260 = vadd.xlane.f32.xlu0 %v259
      %v261 = vpop.xlane.xlu0 %260
      %v262 = vrcp.pop %v261
      %v263 = vmul.f32 %v258, %v262
      %v264 = vpack.c.bf16 %v263, %v263
      %265 = vrot.lane.b32.xlu0 %v227, 48
      %v266 = vpop.permute.xlu0 %265
      %v268 = vsel %vm186, %v264, 0
      %v271 = vsel %vm204, %v266, 0
      %273 = vmatpush.bf16.msra.mxu0 0
      %274 = vmatpush.bf16.msra.mxu0 0
      %275 = vmatpush.bf16.msra.mxu0 0
      %276 = vmatpush.bf16.msra.mxu0 0
      %277 = vmatpush.bf16.msra.mxu0 0
      %278 = vmatpush.bf16.msra.mxu0 0
      %279 = vmatpush.bf16.msra.mxu0 0
      %280 = vmatpush.bf16.msra.mxu0 %v271
      %281 = vmatmul.bf16.gmra.mxu0 %v268
      %v282 = vpop.f32.mrf.mxu0
      %v283 = vadd.f32 0.0, %v282
      %v284 = vpop.f32.mrf.mxu0
      %285 = vdwg.mxu0
      %v286 = vpack.c.bf16 %v283, %v283
      %288 = vrot.lane.b32.xlu0 %v286, 16
      %v289 = vpop.permute.xlu0 %288
      %vm291 = vcmask 257152
      %292 = vst.msk [vmem:[%s152] sm:$0xf] %vm291, %v289
      %p293 = scmp.lt.s32.totalorder %s13, 1
      %s294 = scalar_select %p293, %s13, 1
      %s295 = smul.addr %s294, 4
      %s296 = scalar_lea.vmem %s2, %s295
      // Predicated region
      $region29: #{post_model_forward.16} parent=27 // pred_check
        %p297 = pneg %p83
      $region30: #{post_model_forward.16} parent=27 // pred_check_branch
        %299 = sbr.rel (%p297) target = $region32
      $region31: #{post_model_forward.16} parent=27 // pred_region
        _
      $region32: #{post_model_forward.16} parent=27 // pred_fallthru
        _
    $region28: #{post_model_forward.16} parent=5 // pred_fallthru
      _
    %p300 = scmp.le.s32.totalorder 2, %s8
    // Predicated region
    $region33: #{post_model_forward.16} parent=5 // pred_check
      %p301 = pneg %p300
    $region34: #{post_model_forward.16} parent=5 // pred_check_branch
      %303 = sbr.rel (%p301) target = $region36
    $region35: #{post_model_forward.16} parent=5 // pred_region
      %s304 = ssub.s32 %s8, 2
      // Predicated region
      $region37: #{post_model_forward.16} parent=35 // pred_check
        %p305 = pneg %p89
      $region38: #{post_model_forward.16} parent=35 // pred_check_branch
        %307 = sbr.rel (%p305) target = $region40
      $region39: #{post_model_forward.16} parent=35 // pred_region
        %p308 = scmp.lt.s32.totalorder %s14, 1
        %s309 = scalar_select %p308, %s14, 1
        %s310 = smul.addr %s309, 4
        %s311 = scalar_lea.vmem %s2, %s310
      $region40: #{post_model_forward.16} parent=35 // pred_fallthru
        _
    $region36: #{post_model_forward.16} parent=5 // pred_fallthru
      _
  $region6: #{post_model_forward.16} parent=0 // loop_footer
    %s12 = sadd.s32 1, %s8
  $region7: #{post_model_forward.16} parent=0 // loop_footer_branch
    %7 = sbr.rel target = $region3
  $region8: #{post_model_forward.16} parent=0 // loop_exit
    _

// kernel: post_model_forward.15
$region0: #{post_model_forward.15}
  #allocation0 [shape = 'u32[]', space=smem, size = 0x4, offset = 0x4, fixed_abs, tag = 'smem constant byte address 0x4 - core index']
  #allocation1 [shape = 'u32[72,128]{1,0:T(1,128)}', space=vmem, size = 0x9000, scoped, tag = 'internal scratch']
  #allocation2 [shape = 'f32[16,96]{1,0:T(8,128)}', space=vmem, size = 0x2000, scoped, tag = 'scratch operand']
  %s0 = inlined_call_operand.vmem [shape: bf16[16,32], index: 0, kind: input, shape index: {}]
  %s1 = inlined_call_operand.vmem [shape: bf16[32,96], index: 1, kind: input, shape index: {}]
  %s2 = inlined_call_operand.vmem [shape: f32[1,96], index: 2, kind: input, shape index: {}]
  %s3 = inlined_call_operand.vmem [shape: bf16[16,96], index: 3, kind: output, shape index: {}]
  %s4 = sld [smem:[#allocation0]]
  $region30: #{post_model_forward.15} parent=0
    _
  %s6 = ssub.s32 1, %s4
  %s7 = scalar_select 0, %s6, %s4
  // Predicated region
  $region2: #{post_model_forward.15} parent=0 // pred_check
    _
  $region3: #{post_model_forward.15} parent=0 // pred_check_branch
    %9 = sbr.rel (0) target = $region5
  $region4: #{post_model_forward.15} parent=0 // pred_region
    _
  $region5: #{post_model_forward.15} parent=0 // pred_fallthru
    _
  // Predicated region
  $region6: #{post_model_forward.15} parent=0 // pred_check
    _
  $region7: #{post_model_forward.15} parent=0 // pred_check_branch
    %11 = sbr.rel (0) target = $region9
  $region8: #{post_model_forward.15} parent=0 // pred_region
    _
  $region9: #{post_model_forward.15} parent=0 // pred_fallthru
    _
  // Predicated region
  $region10: #{post_model_forward.15} parent=0 // pred_check
    _
  $region11: #{post_model_forward.15} parent=0 // pred_check_branch
    %13 = sbr.rel (0) target = $region13
  $region12: #{post_model_forward.15} parent=0 // pred_region
    _
  $region13: #{post_model_forward.15} parent=0 // pred_fallthru
    _
  %p15 = scmp.eq.s32.totalorder 0, 0
  // Predicated region
  $region14: #{post_model_forward.15} parent=0 // pred_check
    %p16 = pneg %p15
  $region15: #{post_model_forward.15} parent=0 // pred_check_branch
    %18 = sbr.rel (%p16) target = $region17
  $region16: #{post_model_forward.15} parent=0 // pred_region
    %vm19 = vcmask 785408
    %20 = vst.msk [vmem:[#allocation2] sm:$0xff] %vm19, 0.0
    %21 = vst.msk [vmem:[#allocation2 + $0x8] sm:$0xff] %vm19, 0.0
  $region17: #{post_model_forward.15} parent=0 // pred_fallthru
    _
  %v22 = vld [vmem:[#allocation2] sm:$0xff]
  %v23 = vld [vmem:[#allocation2 + $0x8] sm:$0xff]
  %v24 = vld [vmem:[%s0] sm:$0xf]
  %v25 = vld [vmem:[%s0 + $0x4] sm:$0xf]
  %v26 = vld [vmem:[%s1] sm:$0xf]
  %v27 = vld [vmem:[%s1 + $0x4] sm:$0xf]
  %v28 = vld [vmem:[%s1 + $0x8] sm:$0xf]
  %v29 = vld [vmem:[%s1 + $0xc] sm:$0xf]
  %v32 = vunpack.c.l.b16 %v24
  %v33 = vunpack.c.l.b16 %v25
  %v34 = vpack.c.b16 %v33, %v32
  %v39 = vunpack.c.l.b16 %v26
  %v40 = vunpack.c.l.b16 %v27
  %v41 = vunpack.c.l.b16 %v28
  %v42 = vunpack.c.l.b16 %v29
  %v43 = vpack.c.b16 %v40, %v39
  %v44 = vpack.c.b16 %v42, %v41
  %vm47 = vcmask 261120
  %v49 = vsel %vm47, %v34, 0
  %51 = vmatpush.bf16.msra.mxu0 0
  %52 = vmatpush.bf16.msra.mxu0 0
  %53 = vmatpush.bf16.msra.mxu0 0
  %54 = vmatpush.bf16.msra.mxu0 0
  %55 = vmatpush.bf16.msra.mxu0 0
  %56 = vmatpush.bf16.msra.mxu0 0
  %57 = vmatpush.bf16.msra.mxu0 %v44
  %58 = vmatpush.bf16.msra.mxu0 %v43
  %59 = vmatmul.bf16.gmra.mxu0 %v49
  %v60 = vpop.f32.mrf.mxu0
  %v61 = vadd.f32 0.0, %v60
  %v62 = vpop.f32.mrf.mxu0
  %v63 = vadd.f32 0.0, %v62
  %64 = vdwg.mxu0
  %v65 = vadd.f32 %v22, %v61
  %v66 = vadd.f32 %v23, %v63
  %vm67 = vcmask 785408
  %68 = vst.msk [vmem:[#allocation2] sm:$0xff] %vm67, %v65
  %69 = vst.msk [vmem:[#allocation2 + $0x8] sm:$0xff] %vm67, %v66
  // Predicated region
  $region18: #{post_model_forward.15} parent=0 // pred_check
    %p70 = pneg %p15
  $region19: #{post_model_forward.15} parent=0 // pred_check_branch
    %72 = sbr.rel (%p70) target = $region21
  $region20: #{post_model_forward.15} parent=0 // pred_region
    %v73 = vld [vmem:[#allocation2] sm:$0xff]
    %v74 = vld [vmem:[#allocation2 + $0x8] sm:$0xff]
    %v75 = vld [vmem:[%s2] sm:$0x1]
    %v77 = vperm.slane %v75, 0
    %v79 = vadd.f32 %v73, %v77
    %v80 = vadd.f32 %v74, %v77
    %v81 = vpack.c.bf16 %v79, %v79
    %v82 = vpack.c.bf16 %v80, %v80
    %vm83 = vcmask 781312
    %84 = vst.msk [vmem:[%s3] sm:$0xf] %vm83, %v81
    %85 = vst.msk [vmem:[%s3 + $0x4] sm:$0xf] %vm83, %v82
  $region21: #{post_model_forward.15} parent=0 // pred_fallthru
    _
  // Predicated region
  $region22: #{post_model_forward.15} parent=0 // pred_check
    _
  $region23: #{post_model_forward.15} parent=0 // pred_check_branch
    %87 = sbr.rel (0) target = $region25
  $region24: #{post_model_forward.15} parent=0 // pred_region
    _
  $region25: #{post_model_forward.15} parent=0 // pred_fallthru
    _
  // Predicated region
  $region26: #{post_model_forward.15} parent=0 // pred_check
    _
  $region27: #{post_model_forward.15} parent=0 // pred_check_branch
    %89 = sbr.rel (0) target = $region29
  $region28: #{post_model_forward.15} parent=0 // pred_region
    _
  $region29: #{post_model_forward.15} parent=0 // pred_fallthru
    _

// kernel: post_model_forward.17
$region0: #{post_model_forward.17}
  #allocation0 [shape = 'u32[]', space=smem, size = 0x4, offset = 0x4, fixed_abs, tag = 'smem constant byte address 0x4 - core index']
  #allocation1 [shape = 'u32[72,128]{1,0:T(1,128)}', space=vmem, size = 0x9000, scoped, tag = 'internal scratch']
  #allocation2 [shape = 'f32[16,32]{1,0:T(8,128)}', space=vmem, size = 0x2000, scoped, tag = 'scratch operand']
  %s0 = inlined_call_operand.vmem [shape: bf16[16,32], index: 0, kind: input, shape index: {}]
  %s1 = inlined_call_operand.vmem [shape: bf16[32,32], index: 1, kind: input, shape index: {}]
  %s2 = inlined_call_operand.vmem [shape: f32[1,32], index: 2, kind: input, shape index: {}]
  %s3 = inlined_call_operand.vmem [shape: bf16[16,32], index: 3, kind: input, shape index: {}]
  %s4 = inlined_call_operand.vmem [shape: f32[1,32], index: 4, kind: input, shape index: {}]
  %s5 = inlined_call_operand.vmem [shape: f32[1,32], index: 5, kind: input, shape index: {}]
  %s6 = inlined_call_operand.vmem [shape: bf16[16,32], index: 6, kind: output, shape index: {}]
  %s7 = sld [smem:[#allocation0]]
  $region42: #{post_model_forward.17} parent=0
    _
  %s9 = ssub.s32 1, %s7
  %s10 = scalar_select 0, %s9, %s7
  // Predicated region
  $region2: #{post_model_forward.17} parent=0 // pred_check
    _
  $region3: #{post_model_forward.17} parent=0 // pred_check_branch
    %12 = sbr.rel (0) target = $region5
  $region4: #{post_model_forward.17} parent=0 // pred_region
    _
  $region5: #{post_model_forward.17} parent=0 // pred_fallthru
    _
  // Predicated region
  $region6: #{post_model_forward.17} parent=0 // pred_check
    _
  $region7: #{post_model_forward.17} parent=0 // pred_check_branch
    %14 = sbr.rel (0) target = $region9
  $region8: #{post_model_forward.17} parent=0 // pred_region
    _
  $region9: #{post_model_forward.17} parent=0 // pred_fallthru
    _
  // Predicated region
  $region10: #{post_model_forward.17} parent=0 // pred_check
    _
  $region11: #{post_model_forward.17} parent=0 // pred_check_branch
    %16 = sbr.rel (0) target = $region13
  $region12: #{post_model_forward.17} parent=0 // pred_region
    _
  $region13: #{post_model_forward.17} parent=0 // pred_fallthru
    _
  // Predicated region
  $region14: #{post_model_forward.17} parent=0 // pred_check
    _
  $region15: #{post_model_forward.17} parent=0 // pred_check_branch
    %18 = sbr.rel (0) target = $region17
  $region16: #{post_model_forward.17} parent=0 // pred_region
    _
  $region17: #{post_model_forward.17} parent=0 // pred_fallthru
    _
  // Predicated region
  $region18: #{post_model_forward.17} parent=0 // pred_check
    _
  $region19: #{post_model_forward.17} parent=0 // pred_check_branch
    %20 = sbr.rel (0) target = $region21
  $region20: #{post_model_forward.17} parent=0 // pred_region
    _
  $region21: #{post_model_forward.17} parent=0 // pred_fallthru
    _
  // Predicated region
  $region22: #{post_model_forward.17} parent=0 // pred_check
    _
  $region23: #{post_model_forward.17} parent=0 // pred_check_branch
    %22 = sbr.rel (0) target = $region25
  $region24: #{post_model_forward.17} parent=0 // pred_region
    _
  $region25: #{post_model_forward.17} parent=0 // pred_fallthru
    _
  %p24 = scmp.eq.s32.totalorder 0, 0
  // Predicated region
  $region26: #{post_model_forward.17} parent=0 // pred_check
    %p25 = pneg %p24
  $region27: #{post_model_forward.17} parent=0 // pred_check_branch
    %27 = sbr.rel (%p25) target = $region29
  $region28: #{post_model_forward.17} parent=0 // pred_region
    %vm28 = vcmask 261120
    %29 = vst.msk [vmem:[#allocation2] sm:$0xff] %vm28, 0.0
    %30 = vst.msk [vmem:[#allocation2 + $0x8] sm:$0xff] %vm28, 0.0
  $region29: #{post_model_forward.17} parent=0 // pred_fallthru
    _
  %v31 = vld [vmem:[#allocation2] sm:$0xff]
  %v32 = vld [vmem:[#allocation2 + $0x8] sm:$0xff]
  %v33 = vld [vmem:[%s0] sm:$0xf]
  %v34 = vld [vmem:[%s0 + $0x4] sm:$0xf]
  %v35 = vld [vmem:[%s1] sm:$0xf]
  %v36 = vld [vmem:[%s1 + $0x4] sm:$0xf]
  %v37 = vld [vmem:[%s1 + $0x8] sm:$0xf]
  %v38 = vld [vmem:[%s1 + $0xc] sm:$0xf]
  %v41 = vunpack.c.l.b16 %v33
  %v42 = vunpack.c.l.b16 %v34
  %v43 = vpack.c.b16 %v42, %v41
  %v48 = vunpack.c.l.b16 %v35
  %v49 = vunpack.c.l.b16 %v36
  %v50 = vunpack.c.l.b16 %v37
  %v51 = vunpack.c.l.b16 %v38
  %v52 = vpack.c.b16 %v49, %v48
  %v53 = vpack.c.b16 %v51, %v50
  %vm56 = vcmask 261120
  %v58 = vsel %vm56, %v43, 0
  %60 = vmatpush.bf16.msra.mxu0 0
  %61 = vmatpush.bf16.msra.mxu0 0
  %62 = vmatpush.bf16.msra.mxu0 0
  %63 = vmatpush.bf16.msra.mxu0 0
  %64 = vmatpush.bf16.msra.mxu0 0
  %65 = vmatpush.bf16.msra.mxu0 0
  %66 = vmatpush.bf16.msra.mxu0 %v53
  %67 = vmatpush.bf16.msra.mxu0 %v52
  %68 = vmatmul.bf16.gmra.mxu0 %v58
  %v69 = vpop.f32.mrf.mxu0
  %v70 = vadd.f32 0.0, %v69
  %v71 = vpop.f32.mrf.mxu0
  %v72 = vadd.f32 0.0, %v71
  %73 = vdwg.mxu0
  %v74 = vadd.f32 %v31, %v70
  %v75 = vadd.f32 %v32, %v72
  %76 = vst.msk [vmem:[#allocation2] sm:$0xff] %vm56, %v74
  %77 = vst.msk [vmem:[#allocation2 + $0x8] sm:$0xff] %vm56, %v75
  // Predicated region
  $region30: #{post_model_forward.17} parent=0 // pred_check
    %p78 = pneg %p24
  $region31: #{post_model_forward.17} parent=0 // pred_check_branch
    %80 = sbr.rel (%p78) target = $region33
  $region32: #{post_model_forward.17} parent=0 // pred_region
    %v81 = vld [vmem:[#allocation2] sm:$0xff]
    %v82 = vld [vmem:[#allocation2 + $0x8] sm:$0xff]
    %v83 = vld [vmem:[%s2] sm:$0x1]
    %v85 = vperm.slane %v83, 0
    %v87 = vadd.f32 %v81, %v85
    %v88 = vadd.f32 %v82, %v85
    %v89 = vld [vmem:[%s3] sm:$0xf]
    %v90 = vld [vmem:[%s3 + $0x4] sm:$0xf]
    %v91 = vunpack.c.l.bf16 %v89
    %v92 = vunpack.c.l.bf16 %v90
    %v93 = vadd.f32 %v87, %v91
    %v94 = vadd.f32 %v88, %v92
    %v95 = vsel %vm56, %v93, 0.0
    %96 = vadd.xlane.f32.xlu0 %v95
    %v97 = vpop.xlane.xlu0 %96
    %v98 = vsel %vm56, %v94, 0.0
    %99 = vadd.xlane.f32.xlu0 %v98
    %v100 = vpop.xlane.xlu0 %99
    %v101 = vrcp.pop 32.0
    %v102 = vmul.f32 32.0, %v101
    %v103 = vsub.f32 1.0, %v102
    %v104 = vmul.f32 %v101, %v103
    %v105 = vadd.f32 %v101, %v104
    %vm106 = vweird.f32 %v101
    %v107 = vsel %vm106, %v101, %v105
    %v108 = vmul.f32 %v97, %v107
    %v109 = vmul.f32 %v100, %v107
    %v110 = vsub.f32 %v93, %v108
    %v111 = vsub.f32 %v94, %v109
    %v112 = vmul.f32 %v110, %v110
    %v113 = vmul.f32 %v111, %v111
    %v114 = vsel %vm56, %v112, 0.0
    %115 = vadd.xlane.f32.xlu0 %v114
    %v116 = vpop.xlane.xlu0 %115
    %v117 = vsel %vm56, %v113, 0.0
    %118 = vadd.xlane.f32.xlu0 %v117
    %v119 = vpop.xlane.xlu0 %118
    %v120 = vmul.f32 %v116, %v107
    %v121 = vmul.f32 %v119, %v107
    %v122 = vadd.f32 %v120, 1e-12
    %v123 = vadd.f32 %v121, 1e-12
    %v124 = vrsqrt.pop %v122
    %v125 = vmul.f32 %v124, %v122
    %v126 = vmul.f32 %v125, %v124
    %v127 = vmul.f32 0.5, %v126
    %v128 = vsub.f32 1.5, %v127
    %v129 = vmul.f32 %v124, %v128
    %vm130 = vweird.f32 %v122
    %vm131 = vweird.f32 %v124
    %vm132 = vmor %vm130, %vm131
    %v133 = vsel %vm132, %v124, %v129
    %v134 = vrsqrt.pop %v123
    %v135 = vmul.f32 %v134, %v123
    %v136 = vmul.f32 %v135, %v134
    %v137 = vmul.f32 0.5, %v136
    %v138 = vsub.f32 1.5, %v137
    %v139 = vmul.f32 %v134, %v138
    %vm140 = vweird.f32 %v123
    %vm141 = vweird.f32 %v134
    %vm142 = vmor %vm140, %vm141
    %v143 = vsel %vm142, %v134, %v139
    %v144 = vmul.f32 %v110, %v133
    %v145 = vmul.f32 %v111, %v143
    %v146 = vld [vmem:[%s4] sm:$0x1]
    %v148 = vperm.slane %v146, 0
    %v150 = vmul.f32 %v144, %v148
    %v151 = vmul.f32 %v145, %v148
    %v152 = vld [vmem:[%s5] sm:$0x1]
    %v154 = vperm.slane %v152, 0
    %v156 = vadd.f32 %v150, %v154
    %v157 = vadd.f32 %v151, %v154
    %v158 = vpack.c.bf16 %v156, %v156
    %v159 = vpack.c.bf16 %v157, %v157
    %vm160 = vcmask 257024
    %161 = vst.msk [vmem:[%s6] sm:$0xf] %vm160, %v158
    %162 = vst.msk [vmem:[%s6 + $0x4] sm:$0xf] %vm160, %v159
  $region33: #{post_model_forward.17} parent=0 // pred_fallthru
    _
  // Predicated region
  $region34: #{post_model_forward.17} parent=0 // pred_check
    _
  $region35: #{post_model_forward.17} parent=0 // pred_check_branch
    %164 = sbr.rel (0) target = $region37
  $region36: #{post_model_forward.17} parent=0 // pred_region
    _
  $region37: #{post_model_forward.17} parent=0 // pred_fallthru
    _
  // Predicated region
  $region38: #{post_model_forward.17} parent=0 // pred_check
    _
  $region39: #{post_model_forward.17} parent=0 // pred_check_branch
    %166 = sbr.rel (0) target = $region41
  $region40: #{post_model_forward.17} parent=0 // pred_region
    _
  $region41: #{post_model_forward.17} parent=0 // pred_fallthru
    _

// kernel: post_model_forward.14
$region0: #{post_model_forward.14}
  #allocation0 [shape = 'u32[]', space=smem, size = 0x4, offset = 0x4, fixed_abs, tag = 'smem constant byte address 0x4 - core index']
  #allocation1 [shape = 'u32[72,128]{1,0:T(1,128)}', space=vmem, size = 0x9000, scoped, tag = 'internal scratch']
  %s0 = inlined_call_operand.vmem [shape: bf16[16,32], index: 0, kind: input, shape index: {}]
  %s1 = inlined_call_operand.vmem [shape: bf16[8,32], index: 1, kind: input, shape index: {}]
  %s2 = inlined_call_operand.vmem [shape: bf16[16,32], index: 2, kind: input, shape index: {}]
  %s3 = inlined_call_operand.vmem [shape: f32[1,32], index: 3, kind: input, shape index: {}]
  %s4 = inlined_call_operand.vmem [shape: f32[1,32], index: 4, kind: input, shape index: {}]
  %s5 = inlined_call_operand.vmem [shape: bf16[16,32], index: 5, kind: output, shape index: {}]
  %s6 = sld [smem:[#allocation0]]
  $region53: #{post_model_forward.14} parent=0
    _
  %s8 = ssub.s32 1, %s6
  %s9 = scalar_select 0, %s8, %s6
  loop: start=0, step=1, limit=4
  $region2: #{post_model_forward.14} parent=0 // loop_pre_header
    _
  $region3: #{post_model_forward.14} parent=0 // loop_header
    %s11 = sphi 0, %s15
    %p12 = scmp.ge.s32.totalorder %s11, 4
    %s21 = sphi 0, %s23
    %s24 = sphi 0, %s21
    %s25 = sphi 0, %s24
    %s41 = sphi 0, %s25
    %s45 = sphi 0, %s45
    %s47 = sphi 0, %s45
    %s48 = sphi 0, %s47
    %s62 = sphi 0, %s48
    %s68 = sphi 0, %s70
    %s71 = sphi 0, %s68
    %s72 = sphi 0, %s71
    %s88 = sphi 0, %s72
    %s92 = sphi 0, %s92
    %s94 = sphi 0, %s92
    %s95 = sphi 0, %s94
    %s109 = sphi 0, %s95
    %s113 = sphi 0, %s113
    %s115 = sphi 0, %s113
    %s116 = sphi 0, %s115
    %s130 = sphi 0, %s116
    %s136 = sphi 0, %s138
    %s139 = sphi 0, %s136
    %s140 = sphi 0, %s139
    %s156 = sphi 0, %s140
  $region4: #{post_model_forward.14} parent=0 // loop_header_branch
    %14 = sbr.rel (%p12) target = $region8
  $region5: #{post_model_forward.14} parent=0 // loop_body
    %s16 = ssub.s32 %s11, 1
    %s17 = ssub.s32 %s11, 2
    %s18 = sadd.s32 %s11, 1
    %s19 = ssub.s32 %s11, %s18
    %p20 = scmp.eq.s32.totalorder %s19, 0
    %s22 = sadd.s32 %s21, 1
    %s23 = scalar_select %p20, %s21, %s22
    %p26 = pneg %p20
    %p27 = scmp.eq.s32.totalorder %s11, 1
    %p28 = por %p26, %p27
    %p29 = scmp.ne.s32.totalorder %s21, %s24
    %p30 = scmp.eq.s32.totalorder %s11, 0
    %p31 = por %p29, %p30
    %p32 = scmp.ne.s32.totalorder %s21, %s24
    %p33 = scmp.eq.s32.totalorder %s16, 1
    %p34 = por %p32, %p33
    %p35 = scmp.ne.s32.totalorder %s24, %s25
    %p36 = scmp.eq.s32.totalorder %s16, 0
    %p37 = por %p35, %p36
    %p38 = scmp.ne.s32.totalorder %s24, %s25
    %p39 = scmp.eq.s32.totalorder %s17, 1
    %p40 = por %p38, %p39
    %p42 = scmp.ne.s32.totalorder %s25, %s41
    %p43 = scmp.eq.s32.totalorder %s17, 0
    %p44 = por %p42, %p43
    %s46 = sadd.s32 %s45, 1
    %p49 = scmp.eq.s32.totalorder %s11, 1
    %p50 = scmp.ne.s32.totalorder %s45, %s47
    %p51 = scmp.eq.s32.totalorder %s11, 0
    %p52 = por %p50, %p51
    %p53 = scmp.ne.s32.totalorder %s45, %s47
    %p54 = scmp.eq.s32.totalorder %s16, 1
    %p55 = por %p53, %p54
    %p56 = scmp.ne.s32.totalorder %s47, %s48
    %p57 = scmp.eq.s32.totalorder %s16, 0
    %p58 = por %p56, %p57
    %p59 = scmp.ne.s32.totalorder %s47, %s48
    %p60 = scmp.eq.s32.totalorder %s17, 1
    %p61 = por %p59, %p60
    %p63 = scmp.ne.s32.totalorder %s48, %s62
    %p64 = scmp.eq.s32.totalorder %s17, 0
    %p65 = por %p63, %p64
    %s66 = ssub.s32 %s11, %s18
    %p67 = scmp.eq.s32.totalorder %s66, 0
    %s69 = sadd.s32 %s68, 1
    %s70 = scalar_select %p67, %s68, %s69
    %p73 = pneg %p67
    %p74 = scmp.eq.s32.totalorder %s11, 1
    %p75 = por %p73, %p74
    %p76 = scmp.ne.s32.totalorder %s68, %s71
    %p77 = scmp.eq.s32.totalorder %s11, 0
    %p78 = por %p76, %p77
    %p79 = scmp.ne.s32.totalorder %s68, %s71
    %p80 = scmp.eq.s32.totalorder %s16, 1
    %p81 = por %p79, %p80
    %p82 = scmp.ne.s32.totalorder %s71, %s72
    %p83 = scmp.eq.s32.totalorder %s16, 0
    %p84 = por %p82, %p83
    %p85 = scmp.ne.s32.totalorder %s71, %s72
    %p86 = scmp.eq.s32.totalorder %s17, 1
    %p87 = por %p85, %p86
    %p89 = scmp.ne.s32.totalorder %s72, %s88
    %p90 = scmp.eq.s32.totalorder %s17, 0
    %p91 = por %p89, %p90
    %s93 = sadd.s32 %s92, 1
    %p96 = scmp.eq.s32.totalorder %s11, 1
    %p97 = scmp.ne.s32.totalorder %s92, %s94
    %p98 = scmp.eq.s32.totalorder %s11, 0
    %p99 = por %p97, %p98
    %p100 = scmp.ne.s32.totalorder %s92, %s94
    %p101 = scmp.eq.s32.totalorder %s16, 1
    %p102 = por %p100, %p101
    %p103 = scmp.ne.s32.totalorder %s94, %s95
    %p104 = scmp.eq.s32.totalorder %s16, 0
    %p105 = por %p103, %p104
    %p106 = scmp.ne.s32.totalorder %s94, %s95
    %p107 = scmp.eq.s32.totalorder %s17, 1
    %p108 = por %p106, %p107
    %p110 = scmp.ne.s32.totalorder %s95, %s109
    %p111 = scmp.eq.s32.totalorder %s17, 0
    %p112 = por %p110, %p111
    %s114 = sadd.s32 %s113, 1
    %p117 = scmp.eq.s32.totalorder %s11, 1
    %p118 = scmp.ne.s32.totalorder %s113, %s115
    %p119 = scmp.eq.s32.totalorder %s11, 0
    %p120 = por %p118, %p119
    %p121 = scmp.ne.s32.totalorder %s113, %s115
    %p122 = scmp.eq.s32.totalorder %s16, 1
    %p123 = por %p121, %p122
    %p124 = scmp.ne.s32.totalorder %s115, %s116
    %p125 = scmp.eq.s32.totalorder %s16, 0
    %p126 = por %p124, %p125
    %p127 = scmp.ne.s32.totalorder %s115, %s116
    %p128 = scmp.eq.s32.totalorder %s17, 1
    %p129 = por %p127, %p128
    %p131 = scmp.ne.s32.totalorder %s116, %s130
    %p132 = scmp.eq.s32.totalorder %s17, 0
    %p133 = por %p131, %p132
    %s134 = ssub.s32 %s11, %s18
    %p135 = scmp.eq.s32.totalorder %s134, 0
    %s137 = sadd.s32 %s136, 1
    %s138 = scalar_select %p135, %s136, %s137
    %p141 = pneg %p135
    %p142 = scmp.eq.s32.totalorder %s11, 1
    %p143 = por %p141, %p142
    %p144 = scmp.ne.s32.totalorder %s136, %s139
    %p145 = scmp.eq.s32.totalorder %s11, 0
    %p146 = por %p144, %p145
    %p147 = scmp.ne.s32.totalorder %s136, %s139
    %p148 = scmp.eq.s32.totalorder %s16, 1
    %p149 = por %p147, %p148
    %p150 = scmp.ne.s32.totalorder %s139, %s140
    %p151 = scmp.eq.s32.totalorder %s16, 0
    %p152 = por %p150, %p151
    %p153 = scmp.ne.s32.totalorder %s139, %s140
    %p154 = scmp.eq.s32.totalorder %s17, 1
    %p155 = por %p153, %p154
    %p157 = scmp.ne.s32.totalorder %s140, %s156
    %p158 = scmp.eq.s32.totalorder %s17, 0
    %p159 = por %p157, %p158
    %p160 = scmp.le.s32.totalorder 1, %s11
    %p161 = scmp.lt.s32.totalorder %s11, 3
    %p162 = pnand %p160, %p161
    %p163 = pneg %p162
    // Predicated region
    $region9: #{post_model_forward.14} parent=5 // pred_check
      _
    $region10: #{post_model_forward.14} parent=5 // pred_check_branch
      %165 = sbr.rel (%p162) target = $region12
    $region11: #{post_model_forward.14} parent=5 // pred_region
      %s166 = ssub.s32 %s11, 1
      // Predicated region
      $region13: #{post_model_forward.14} parent=11 // pred_check
        %p167 = pneg %p58
      $region14: #{post_model_forward.14} parent=11 // pred_check_branch
        %169 = sbr.rel (%p167) target = $region16
      $region15: #{post_model_forward.14} parent=11 // pred_region
        _
      $region16: #{post_model_forward.14} parent=11 // pred_fallthru
        _
      // Predicated region
      $region17: #{post_model_forward.14} parent=11 // pred_check
        %p170 = pneg %p105
      $region18: #{post_model_forward.14} parent=11 // pred_check_branch
        %172 = sbr.rel (%p170) target = $region20
      $region19: #{post_model_forward.14} parent=11 // pred_region
        _
      $region20: #{post_model_forward.14} parent=11 // pred_fallthru
        _
      // Predicated region
      $region21: #{post_model_forward.14} parent=11 // pred_check
        %p173 = pneg %p126
      $region22: #{post_model_forward.14} parent=11 // pred_check_branch
        %175 = sbr.rel (%p173) target = $region24
      $region23: #{post_model_forward.14} parent=11 // pred_region
        _
      $region24: #{post_model_forward.14} parent=11 // pred_fallthru
        _
    $region12: #{post_model_forward.14} parent=5 // pred_fallthru
      _
    %p176 = scmp.lt.s32.totalorder %s11, 2
    // Predicated region
    $region25: #{post_model_forward.14} parent=5 // pred_check
      %p177 = pneg %p176
    $region26: #{post_model_forward.14} parent=5 // pred_check_branch
      %179 = sbr.rel (%p177) target = $region28
    $region27: #{post_model_forward.14} parent=5 // pred_region
      // Predicated region
      $region29: #{post_model_forward.14} parent=27 // pred_check
        %p180 = pneg %p31
      $region30: #{post_model_forward.14} parent=27 // pred_check_branch
        %182 = sbr.rel (%p180) target = $region32
      $region31: #{post_model_forward.14} parent=27 // pred_region
        %p183 = scmp.lt.s32.totalorder %s11, 1
        %s184 = scalar_select %p183, %s11, 1
        %s185 = smul.addr %s184, 4
        %s186 = scalar_lea.vmem %s0, %s185
      $region32: #{post_model_forward.14} parent=27 // pred_fallthru
        _
      // Predicated region
      $region33: #{post_model_forward.14} parent=27 // pred_check
        %p187 = pneg %p78
      $region34: #{post_model_forward.14} parent=27 // pred_check_branch
        %189 = sbr.rel (%p187) target = $region36
      $region35: #{post_model_forward.14} parent=27 // pred_region
        %p190 = scmp.lt.s32.totalorder %s11, 1
        %s191 = scalar_select %p190, %s11, 1
        %s192 = smul.addr %s191, 4
        %s193 = scalar_lea.vmem %s2, %s192
      $region36: #{post_model_forward.14} parent=27 // pred_fallthru
        _
    $region28: #{post_model_forward.14} parent=5 // pred_fallthru
      _
    %p194 = scmp.le.s32.totalorder 1, %s11
    %p195 = scmp.lt.s32.totalorder %s11, 3
    %p196 = pnand %p194, %p195
    %p197 = pneg %p196
    // Predicated region
    $region37: #{post_model_forward.14} parent=5 // pred_check
      _
    $region38: #{post_model_forward.14} parent=5 // pred_check_branch
      %199 = sbr.rel (%p196) target = $region40
    $region39: #{post_model_forward.14} parent=5 // pred_region
      %s200 = ssub.s32 %s11, 1
      %p201 = scmp.lt.s32.totalorder %s16, 1
      %s202 = scalar_select %p201, %s16, 1
      %s203 = smul.addr %s202, 4
      %s204 = scalar_lea.vmem %s0, %s203
      %p205 = pneg %p37
      %p206 = pneg %p34
      %p207 = pneg %p58
      %p208 = pneg %p55
      %p209 = scmp.lt.s32.totalorder %s16, 1
      %s210 = scalar_select %p209, %s16, 1
      %s211 = smul.addr %s210, 4
      %s212 = scalar_lea.vmem %s2, %s211
      %p213 = pneg %p84
      %p214 = pneg %p81
      %p215 = pneg %p105
      %p216 = pneg %p102
      %p217 = pneg %p126
      %p218 = pneg %p123
      %p219 = pneg %p152
      %p220 = pneg %p149
      %p221 = scmp.lt.s32.totalorder %s16, 1
      %s222 = scalar_select %p221, %s16, 1
      %s223 = smul.addr %s222, 4
      %s224 = scalar_lea.vmem %s5, %s223
      %p225 = scmp.lt.s32.totalorder %s16, 1
      %s226 = scalar_select %p225, %s16, 1
      %s227 = smul.addr %s226, 4
      %s228 = scalar_lea.vmem %s0, %s227
      %p229 = scmp.lt.s32.totalorder %s16, 1
      %s230 = scalar_select %p229, %s16, 1
      %s231 = smul.addr %s230, 4
      %s232 = scalar_lea.vmem %s2, %s231
      %p233 = scmp.lt.s32.totalorder %s16, 1
      %s234 = scalar_select %p233, %s16, 1
      %s235 = smul.addr %s234, 4
      %s236 = scalar_lea.vmem %s5, %s235
      %v237 = vld [vmem:[%s228] sm:$0xf]
      %v238 = vunpack.c.l.bf16 %v237
      %v239 = vld [vmem:[%s1] sm:$0xf]
      %v240 = vunpack.c.l.bf16 %v239
      %v241 = vadd.f32 %v238, %v240
      %v242 = vld [vmem:[%s232] sm:$0xf]
      %v243 = vunpack.c.l.bf16 %v242
      %v244 = vadd.f32 %v241, %v243
      %vm245 = vcmask 261120
      %v246 = vsel %vm245, %v244, 0.0
      %247 = vadd.xlane.f32.xlu0 %v246
      %v248 = vpop.xlane.xlu0 %247
      %v249 = vrcp.pop 32.0
      %v250 = vmul.f32 32.0, %v249
      %v251 = vsub.f32 1.0, %v250
      %v252 = vmul.f32 %v249, %v251
      %v253 = vadd.f32 %v249, %v252
      %vm254 = vweird.f32 %v249
      %v255 = vsel %vm254, %v249, %v253
      %v256 = vmul.f32 %v248, %v255
      %v257 = vsub.f32 %v244, %v256
      %v258 = vmul.f32 %v257, %v257
      %v259 = vsel %vm245, %v258, 0.0
      %260 = vadd.xlane.f32.xlu0 %v259
      %v261 = vpop.xlane.xlu0 %260
      %v262 = vmul.f32 %v261, %v255
      %v263 = vadd.f32 %v262, 1e-12
      %v264 = vrsqrt.pop %v263
      %v265 = vmul.f32 %v264, %v263
      %v266 = vmul.f32 %v265, %v264
      %v267 = vmul.f32 0.5, %v266
      %v268 = vsub.f32 1.5, %v267
      %v269 = vmul.f32 %v264, %v268
      %vm270 = vweird.f32 %v263
      %vm271 = vweird.f32 %v264
      %vm272 = vmor %vm270, %vm271
      %v273 = vsel %vm272, %v264, %v269
      %v274 = vmul.f32 %v257, %v273
      %v275 = vld [vmem:[%s3] sm:$0x1]
      %v277 = vperm.slane %v275, 0
      %v279 = vmul.f32 %v274, %v277
      %v280 = vld [vmem:[%s4] sm:$0x1]
      %v282 = vperm.slane %v280, 0
      %v284 = vadd.f32 %v279, %v282
      %v285 = vpack.c.bf16 %v284, %v284
      %vm286 = vcmask 257024
      %287 = vst.msk [vmem:[%s236] sm:$0xf] %vm286, %v285
      %p288 = scmp.lt.s32.totalorder %s16, 1
      %s289 = scalar_select %p288, %s16, 1
      %s290 = smul.addr %s289, 4
      %s291 = scalar_lea.vmem %s5, %s290
      // Predicated region
      $region41: #{post_model_forward.14} parent=39 // pred_check
        %p292 = pneg %p149
      $region42: #{post_model_forward.14} parent=39 // pred_check_branch
        %294 = sbr.rel (%p292) target = $region44
      $region43: #{post_model_forward.14} parent=39 // pred_region
        _
      $region44: #{post_model_forward.14} parent=39 // pred_fallthru
        _
    $region40: #{post_model_forward.14} parent=5 // pred_fallthru
      _
    %p295 = scmp.le.s32.totalorder 2, %s11
    // Predicated region
    $region45: #{post_model_forward.14} parent=5 // pred_check
      %p296 = pneg %p295
    $region46: #{post_model_forward.14} parent=5 // pred_check_branch
      %298 = sbr.rel (%p296) target = $region48
    $region47: #{post_model_forward.14} parent=5 // pred_region
      %s299 = ssub.s32 %s11, 2
      // Predicated region
      $region49: #{post_model_forward.14} parent=47 // pred_check
        %p300 = pneg %p155
      $region50: #{post_model_forward.14} parent=47 // pred_check_branch
        %302 = sbr.rel (%p300) target = $region52
      $region51: #{post_model_forward.14} parent=47 // pred_region
        %p303 = scmp.lt.s32.totalorder %s17, 1
        %s304 = scalar_select %p303, %s17, 1
        %s305 = smul.addr %s304, 4
        %s306 = scalar_lea.vmem %s5, %s305
      $region52: #{post_model_forward.14} parent=47 // pred_fallthru
        _
    $region48: #{post_model_forward.14} parent=5 // pred_fallthru
      _
  $region6: #{post_model_forward.14} parent=0 // loop_footer
    %s15 = sadd.s32 1, %s11
  $region7: #{post_model_forward.14} parent=0 // loop_footer_branch
    %10 = sbr.rel target = $region3
  $region8: #{post_model_forward.14} parent=0 // loop_exit
    _

// kernel: post_model_forward.26
$region0: #{post_model_forward.26}
  #allocation0 [shape = 'u32[]', space=smem, size = 0x4, offset = 0x4, fixed_abs, tag = 'smem constant byte address 0x4 - core index']
  #allocation1 [shape = 'u32[72,128]{1,0:T(1,128)}', space=vmem, size = 0x9000, scoped, tag = 'internal scratch']
  %s0 = inlined_call_operand.vmem [shape: bf16[16,32], index: 0, kind: input, shape index: {}]
  %s1 = inlined_call_operand.vmem [shape: f32[1,32], index: 1, kind: input, shape index: {}]
  %s2 = inlined_call_operand.vmem [shape: f32[1,32], index: 2, kind: input, shape index: {}]
  %s3 = inlined_call_operand.vmem [shape: bf16[16,32], index: 3, kind: output, shape index: {}]
  %s4 = sld [smem:[#allocation0]]
  $region22: #{post_model_forward.26} parent=0
    _
  %s6 = ssub.s32 1, %s4
  %s7 = scalar_select 0, %s6, %s4
  // Predicated region
  $region2: #{post_model_forward.26} parent=0 // pred_check
    _
  $region3: #{post_model_forward.26} parent=0 // pred_check_branch
    %9 = sbr.rel (0) target = $region5
  $region4: #{post_model_forward.26} parent=0 // pred_region
    _
  $region5: #{post_model_forward.26} parent=0 // pred_fallthru
    _
  // Predicated region
  $region6: #{post_model_forward.26} parent=0 // pred_check
    _
  $region7: #{post_model_forward.26} parent=0 // pred_check_branch
    %11 = sbr.rel (0) target = $region9
  $region8: #{post_model_forward.26} parent=0 // pred_region
    _
  $region9: #{post_model_forward.26} parent=0 // pred_fallthru
    _
  // Predicated region
  $region10: #{post_model_forward.26} parent=0 // pred_check
    _
  $region11: #{post_model_forward.26} parent=0 // pred_check_branch
    %13 = sbr.rel (0) target = $region13
  $region12: #{post_model_forward.26} parent=0 // pred_region
    _
  $region13: #{post_model_forward.26} parent=0 // pred_fallthru
    _
  %v14 = vld [vmem:[%s0] sm:$0xf]
  %v15 = vld [vmem:[%s0 + $0x4] sm:$0xf]
  %v16 = vunpack.c.l.bf16 %v14
  %v17 = vunpack.c.l.bf16 %v15
  %vm18 = vcmask 261120
  %v19 = vsel %vm18, %v16, 0.0
  %20 = vadd.xlane.f32.xlu0 %v19
  %v21 = vpop.xlane.xlu0 %20
  %v22 = vsel %vm18, %v17, 0.0
  %23 = vadd.xlane.f32.xlu0 %v22
  %v24 = vpop.xlane.xlu0 %23
  %v25 = vrcp.pop 32.0
  %v26 = vmul.f32 32.0, %v25
  %v27 = vsub.f32 1.0, %v26
  %v28 = vmul.f32 %v25, %v27
  %v29 = vadd.f32 %v25, %v28
  %vm30 = vweird.f32 %v25
  %v31 = vsel %vm30, %v25, %v29
  %v32 = vmul.f32 %v21, %v31
  %v33 = vmul.f32 %v24, %v31
  %v34 = vsub.f32 %v16, %v32
  %v35 = vsub.f32 %v17, %v33
  %v36 = vmul.f32 %v34, %v34
  %v37 = vmul.f32 %v35, %v35
  %v38 = vsel %vm18, %v36, 0.0
  %39 = vadd.xlane.f32.xlu0 %v38
  %v40 = vpop.xlane.xlu0 %39
  %v41 = vsel %vm18, %v37, 0.0
  %42 = vadd.xlane.f32.xlu0 %v41
  %v43 = vpop.xlane.xlu0 %42
  %v44 = vmul.f32 %v40, %v31
  %v45 = vmul.f32 %v43, %v31
  %v46 = vadd.f32 %v44, 1e-12
  %v47 = vadd.f32 %v45, 1e-12
  %v48 = vrsqrt.pop %v46
  %v49 = vmul.f32 %v48, %v46
  %v50 = vmul.f32 %v49, %v48
  %v51 = vmul.f32 0.5, %v50
  %v52 = vsub.f32 1.5, %v51
  %v53 = vmul.f32 %v48, %v52
  %vm54 = vweird.f32 %v46
  %vm55 = vweird.f32 %v48
  %vm56 = vmor %vm54, %vm55
  %v57 = vsel %vm56, %v48, %v53
  %v58 = vrsqrt.pop %v47
  %v59 = vmul.f32 %v58, %v47
  %v60 = vmul.f32 %v59, %v58
  %v61 = vmul.f32 0.5, %v60
  %v62 = vsub.f32 1.5, %v61
  %v63 = vmul.f32 %v58, %v62
  %vm64 = vweird.f32 %v47
  %vm65 = vweird.f32 %v58
  %vm66 = vmor %vm64, %vm65
  %v67 = vsel %vm66, %v58, %v63
  %v68 = vmul.f32 %v34, %v57
  %v69 = vmul.f32 %v35, %v67
  %v70 = vld [vmem:[%s1] sm:$0x1]
  %v72 = vperm.slane %v70, 0
  %v74 = vmul.f32 %v68, %v72
  %v75 = vmul.f32 %v69, %v72
  %v76 = vld [vmem:[%s2] sm:$0x1]
  %v78 = vperm.slane %v76, 0
  %v80 = vadd.f32 %v74, %v78
  %v81 = vadd.f32 %v75, %v78
  %v82 = vpack.c.bf16 %v80, %v80
  %v83 = vpack.c.bf16 %v81, %v81
  %vm84 = vcmask 257024
  %85 = vst.msk [vmem:[%s3] sm:$0xf] %vm84, %v82
  %86 = vst.msk [vmem:[%s3 + $0x4] sm:$0xf] %vm84, %v83
  // Predicated region
  $region14: #{post_model_forward.26} parent=0 // pred_check
    _
  $region15: #{post_model_forward.26} parent=0 // pred_check_branch
    %88 = sbr.rel (0) target = $region17
  $region16: #{post_model_forward.26} parent=0 // pred_region
    _
  $region17: #{post_model_forward.26} parent=0 // pred_fallthru
    _
  // Predicated region
  $region18: #{post_model_forward.26} parent=0 // pred_check
    _
  $region19: #{post_model_forward.26} parent=0 // pred_check_branch
    %90 = sbr.rel (0) target = $region21
  $region20: #{post_model_forward.26} parent=0 // pred_region
    _
  $region21: #{post_model_forward.26} parent=0 // pred_fallthru
    _

// kernel: post_model_forward.18
$region0: #{post_model_forward.18}
  #allocation0 [shape = 'u32[]', space=smem, size = 0x4, offset = 0x4, fixed_abs, tag = 'smem constant byte address 0x4 - core index']
  #allocation1 [shape = 'u32[72,128]{1,0:T(1,128)}', space=vmem, size = 0x9000, scoped, tag = 'internal scratch']
  #allocation2 [shape = 'f32[16,64]{1,0:T(8,128)}', space=vmem, size = 0x2000, scoped, tag = 'scratch operand']
  %s0 = inlined_call_operand.vmem [shape: bf16[16,32], index: 0, kind: input, shape index: {}]
  %s1 = inlined_call_operand.vmem [shape: bf16[32,64], index: 1, kind: input, shape index: {}]
  %s2 = inlined_call_operand.vmem [shape: f32[1,64], index: 2, kind: input, shape index: {}]
  %s3 = inlined_call_operand.vmem [shape: bf16[16,64], index: 3, kind: output, shape index: {}]
  %s4 = sld [smem:[#allocation0]]
  $region30: #{post_model_forward.18} parent=0
    _
  %s6 = ssub.s32 1, %s4
  %s7 = scalar_select 0, %s6, %s4
  // Predicated region
  $region2: #{post_model_forward.18} parent=0 // pred_check
    _
  $region3: #{post_model_forward.18} parent=0 // pred_check_branch
    %9 = sbr.rel (0) target = $region5
  $region4: #{post_model_forward.18} parent=0 // pred_region
    _
  $region5: #{post_model_forward.18} parent=0 // pred_fallthru
    _
  // Predicated region
  $region6: #{post_model_forward.18} parent=0 // pred_check
    _
  $region7: #{post_model_forward.18} parent=0 // pred_check_branch
    %11 = sbr.rel (0) target = $region9
  $region8: #{post_model_forward.18} parent=0 // pred_region
    _
  $region9: #{post_model_forward.18} parent=0 // pred_fallthru
    _
  // Predicated region
  $region10: #{post_model_forward.18} parent=0 // pred_check
    _
  $region11: #{post_model_forward.18} parent=0 // pred_check_branch
    %13 = sbr.rel (0) target = $region13
  $region12: #{post_model_forward.18} parent=0 // pred_region
    _
  $region13: #{post_model_forward.18} parent=0 // pred_fallthru
    _
  %p15 = scmp.eq.s32.totalorder 0, 0
  // Predicated region
  $region14: #{post_model_forward.18} parent=0 // pred_check
    %p16 = pneg %p15
  $region15: #{post_model_forward.18} parent=0 // pred_check_branch
    %18 = sbr.rel (%p16) target = $region17
  $region16: #{post_model_forward.18} parent=0 // pred_region
    %vm19 = vcmask 523264
    %20 = vst.msk [vmem:[#allocation2] sm:$0xff] %vm19, 0.0
    %21 = vst.msk [vmem:[#allocation2 + $0x8] sm:$0xff] %vm19, 0.0
  $region17: #{post_model_forward.18} parent=0 // pred_fallthru
    _
  %v22 = vld [vmem:[#allocation2] sm:$0xff]
  %v23 = vld [vmem:[#allocation2 + $0x8] sm:$0xff]
  %v24 = vld [vmem:[%s0] sm:$0xf]
  %v25 = vld [vmem:[%s0 + $0x4] sm:$0xf]
  %v26 = vld [vmem:[%s1] sm:$0xf]
  %v27 = vld [vmem:[%s1 + $0x4] sm:$0xf]
  %v28 = vld [vmem:[%s1 + $0x8] sm:$0xf]
  %v29 = vld [vmem:[%s1 + $0xc] sm:$0xf]
  %v32 = vunpack.c.l.b16 %v24
  %v33 = vunpack.c.l.b16 %v25
  %v34 = vpack.c.b16 %v33, %v32
  %v39 = vunpack.c.l.b16 %v26
  %v40 = vunpack.c.l.b16 %v27
  %v41 = vunpack.c.l.b16 %v28
  %v42 = vunpack.c.l.b16 %v29
  %v43 = vpack.c.b16 %v40, %v39
  %v44 = vpack.c.b16 %v42, %v41
  %vm47 = vcmask 261120
  %v49 = vsel %vm47, %v34, 0
  %51 = vmatpush.bf16.msra.mxu0 0
  %52 = vmatpush.bf16.msra.mxu0 0
  %53 = vmatpush.bf16.msra.mxu0 0
  %54 = vmatpush.bf16.msra.mxu0 0
  %55 = vmatpush.bf16.msra.mxu0 0
  %56 = vmatpush.bf16.msra.mxu0 0
  %57 = vmatpush.bf16.msra.mxu0 %v44
  %58 = vmatpush.bf16.msra.mxu0 %v43
  %59 = vmatmul.bf16.gmra.mxu0 %v49
  %v60 = vpop.f32.mrf.mxu0
  %v61 = vadd.f32 0.0, %v60
  %v62 = vpop.f32.mrf.mxu0
  %v63 = vadd.f32 0.0, %v62
  %64 = vdwg.mxu0
  %v65 = vadd.f32 %v22, %v61
  %v66 = vadd.f32 %v23, %v63
  %vm67 = vcmask 523264
  %68 = vst.msk [vmem:[#allocation2] sm:$0xff] %vm67, %v65
  %69 = vst.msk [vmem:[#allocation2 + $0x8] sm:$0xff] %vm67, %v66
  // Predicated region
  $region18: #{post_model_forward.18} parent=0 // pred_check
    %p70 = pneg %p15
  $region19: #{post_model_forward.18} parent=0 // pred_check_branch
    %72 = sbr.rel (%p70) target = $region21
  $region20: #{post_model_forward.18} parent=0 // pred_region
    %v73 = vld [vmem:[#allocation2] sm:$0xff]
    %v74 = vld [vmem:[#allocation2 + $0x8] sm:$0xff]
    %v75 = vld [vmem:[%s2] sm:$0x1]
    %v77 = vperm.slane %v75, 0
    %v79 = vadd.f32 %v73, %v77
    %v80 = vadd.f32 %v74, %v77
    %v81 = vmul.f32 %v79, 0.5
    %v82 = vmul.f32 %v80, 0.5
    %v83 = vmul.f32 %v79, 0.044715
    %v84 = vmul.f32 %v80, 0.044715
    %v85 = vmul.f32 %v83, %v79
    %v86 = vmul.f32 %v84, %v80
    %v87 = vmul.f32 %v85, %v79
    %v88 = vmul.f32 %v86, %v80
    %v89 = vadd.f32 %v79, %v87
    %v90 = vadd.f32 %v80, %v88
    %v91 = vmul.f32 %v89, 0.7978846
    %v92 = vmul.f32 %v90, 0.7978846
    %v93 = vtanh.pop %v91
    %v94 = vtanh.pop %v92
    %v95 = vadd.f32 %v93, 1.0
    %v96 = vadd.f32 %v94, 1.0
    %v97 = vmul.f32 %v81, %v95
    %v98 = vmul.f32 %v82, %v96
    %v99 = vpack.c.bf16 %v97, %v97
    %v100 = vpack.c.bf16 %v98, %v98
    %vm101 = vcmask 519168
    %102 = vst.msk [vmem:[%s3] sm:$0xf] %vm101, %v99
    %103 = vst.msk [vmem:[%s3 + $0x4] sm:$0xf] %vm101, %v100
  $region21: #{post_model_forward.18} parent=0 // pred_fallthru
    _
  // Predicated region
  $region22: #{post_model_forward.18} parent=0 // pred_check
    _
  $region23: #{post_model_forward.18} parent=0 // pred_check_branch
    %105 = sbr.rel (0) target = $region25
  $region24: #{post_model_forward.18} parent=0 // pred_region
    _
  $region25: #{post_model_forward.18} parent=0 // pred_fallthru
    _
  // Predicated region
  $region26: #{post_model_forward.18} parent=0 // pred_check
    _
  $region27: #{post_model_forward.18} parent=0 // pred_check_branch
    %107 = sbr.rel (0) target = $region29
  $region28: #{post_model_forward.18} parent=0 // pred_region
    _
  $region29: #{post_model_forward.18} parent=0 // pred_fallthru
    _

// kernel: post_model_forward.25
$region0: #{post_model_forward.25}
  #allocation0 [shape = 'u32[]', space=smem, size = 0x4, offset = 0x4, fixed_abs, tag = 'smem constant byte address 0x4 - core index']
  #allocation1 [shape = 'u32[72,128]{1,0:T(1,128)}', space=vmem, size = 0x9000, scoped, tag = 'internal scratch']
  #allocation2 [shape = 'f32[16,32]{1,0:T(8,128)}', space=vmem, size = 0x2000, scoped, tag = 'scratch operand']
  %s0 = inlined_call_operand.vmem [shape: bf16[16,32], index: 0, kind: input, shape index: {}]
  %s1 = inlined_call_operand.vmem [shape: bf16[32,32], index: 1, kind: input, shape index: {}]
  %s2 = inlined_call_operand.vmem [shape: f32[1,32], index: 2, kind: input, shape index: {}]
  %s3 = inlined_call_operand.vmem [shape: bf16[16,32], index: 3, kind: output, shape index: {}]
  %s4 = sld [smem:[#allocation0]]
  $region30: #{post_model_forward.25} parent=0
    _
  %s6 = ssub.s32 1, %s4
  %s7 = scalar_select 0, %s6, %s4
  // Predicated region
  $region2: #{post_model_forward.25} parent=0 // pred_check
    _
  $region3: #{post_model_forward.25} parent=0 // pred_check_branch
    %9 = sbr.rel (0) target = $region5
  $region4: #{post_model_forward.25} parent=0 // pred_region
    _
  $region5: #{post_model_forward.25} parent=0 // pred_fallthru
    _
  // Predicated region
  $region6: #{post_model_forward.25} parent=0 // pred_check
    _
  $region7: #{post_model_forward.25} parent=0 // pred_check_branch
    %11 = sbr.rel (0) target = $region9
  $region8: #{post_model_forward.25} parent=0 // pred_region
    _
  $region9: #{post_model_forward.25} parent=0 // pred_fallthru
    _
  // Predicated region
  $region10: #{post_model_forward.25} parent=0 // pred_check
    _
  $region11: #{post_model_forward.25} parent=0 // pred_check_branch
    %13 = sbr.rel (0) target = $region13
  $region12: #{post_model_forward.25} parent=0 // pred_region
    _
  $region13: #{post_model_forward.25} parent=0 // pred_fallthru
    _
  %p15 = scmp.eq.s32.totalorder 0, 0
  // Predicated region
  $region14: #{post_model_forward.25} parent=0 // pred_check
    %p16 = pneg %p15
  $region15: #{post_model_forward.25} parent=0 // pred_check_branch
    %18 = sbr.rel (%p16) target = $region17
  $region16: #{post_model_forward.25} parent=0 // pred_region
    %vm19 = vcmask 261120
    %20 = vst.msk [vmem:[#allocation2] sm:$0xff] %vm19, 0.0
    %21 = vst.msk [vmem:[#allocation2 + $0x8] sm:$0xff] %vm19, 0.0
  $region17: #{post_model_forward.25} parent=0 // pred_fallthru
    _
  %v22 = vld [vmem:[#allocation2] sm:$0xff]
  %v23 = vld [vmem:[#allocation2 + $0x8] sm:$0xff]
  %v24 = vld [vmem:[%s0] sm:$0xf]
  %v25 = vld [vmem:[%s0 + $0x4] sm:$0xf]
  %v26 = vld [vmem:[%s1] sm:$0xf]
  %v27 = vld [vmem:[%s1 + $0x4] sm:$0xf]
  %v28 = vld [vmem:[%s1 + $0x8] sm:$0xf]
  %v29 = vld [vmem:[%s1 + $0xc] sm:$0xf]
  %v32 = vunpack.c.l.b16 %v24
  %v33 = vunpack.c.l.b16 %v25
  %v34 = vpack.c.b16 %v33, %v32
  %v39 = vunpack.c.l.b16 %v26
  %v40 = vunpack.c.l.b16 %v27
  %v41 = vunpack.c.l.b16 %v28
  %v42 = vunpack.c.l.b16 %v29
  %v43 = vpack.c.b16 %v40, %v39
  %v44 = vpack.c.b16 %v42, %v41
  %vm47 = vcmask 261120
  %v49 = vsel %vm47, %v34, 0
  %51 = vmatpush.bf16.msra.mxu0 0
  %52 = vmatpush.bf16.msra.mxu0 0
  %53 = vmatpush.bf16.msra.mxu0 0
  %54 = vmatpush.bf16.msra.mxu0 0
  %55 = vmatpush.bf16.msra.mxu0 0
  %56 = vmatpush.bf16.msra.mxu0 0
  %57 = vmatpush.bf16.msra.mxu0 %v44
  %58 = vmatpush.bf16.msra.mxu0 %v43
  %59 = vmatmul.bf16.gmra.mxu0 %v49
  %v60 = vpop.f32.mrf.mxu0
  %v61 = vadd.f32 0.0, %v60
  %v62 = vpop.f32.mrf.mxu0
  %v63 = vadd.f32 0.0, %v62
  %64 = vdwg.mxu0
  %v65 = vadd.f32 %v22, %v61
  %v66 = vadd.f32 %v23, %v63
  %67 = vst.msk [vmem:[#allocation2] sm:$0xff] %vm47, %v65
  %68 = vst.msk [vmem:[#allocation2 + $0x8] sm:$0xff] %vm47, %v66
  // Predicated region
  $region18: #{post_model_forward.25} parent=0 // pred_check
    %p69 = pneg %p15
  $region19: #{post_model_forward.25} parent=0 // pred_check_branch
    %71 = sbr.rel (%p69) target = $region21
  $region20: #{post_model_forward.25} parent=0 // pred_region
    %v72 = vld [vmem:[#allocation2] sm:$0xff]
    %v73 = vld [vmem:[#allocation2 + $0x8] sm:$0xff]
    %v74 = vld [vmem:[%s2] sm:$0x1]
    %v76 = vperm.slane %v74, 0
    %v78 = vadd.f32 %v72, %v76
    %v79 = vadd.f32 %v73, %v76
    %v80 = vmul.f32 %v78, 0.5
    %v81 = vmul.f32 %v79, 0.5
    %v82 = vmul.f32 %v78, 0.044715
    %v83 = vmul.f32 %v79, 0.044715
    %v84 = vmul.f32 %v82, %v78
    %v85 = vmul.f32 %v83, %v79
    %v86 = vmul.f32 %v84, %v78
    %v87 = vmul.f32 %v85, %v79
    %v88 = vadd.f32 %v78, %v86
    %v89 = vadd.f32 %v79, %v87
    %v90 = vmul.f32 %v88, 0.7978846
    %v91 = vmul.f32 %v89, 0.7978846
    %v92 = vtanh.pop %v90
    %v93 = vtanh.pop %v91
    %v94 = vadd.f32 %v92, 1.0
    %v95 = vadd.f32 %v93, 1.0
    %v96 = vmul.f32 %v80, %v94
    %v97 = vmul.f32 %v81, %v95
    %v98 = vpack.c.bf16 %v96, %v96
    %v99 = vpack.c.bf16 %v97, %v97
    %vm100 = vcmask 257024
    %101 = vst.msk [vmem:[%s3] sm:$0xf] %vm100, %v98
    %102 = vst.msk [vmem:[%s3 + $0x4] sm:$0xf] %vm100, %v99
  $region21: #{post_model_forward.25} parent=0 // pred_fallthru
    _
  // Predicated region
  $region22: #{post_model_forward.25} parent=0 // pred_check
    _
  $region23: #{post_model_forward.25} parent=0 // pred_check_branch
    %104 = sbr.rel (0) target = $region25
  $region24: #{post_model_forward.25} parent=0 // pred_region
    _
  $region25: #{post_model_forward.25} parent=0 // pred_fallthru
    _
  // Predicated region
  $region26: #{post_model_forward.25} parent=0 // pred_check
    _
  $region27: #{post_model_forward.25} parent=0 // pred_check_branch
    %106 = sbr.rel (0) target = $region29
  $region28: #{post_model_forward.25} parent=0 // pred_region
    _
  $region29: #{post_model_forward.25} parent=0 // pred_fallthru
    _

// kernel: post_model_forward.19
$region0: #{post_model_forward.19}
  #allocation0 [shape = 'u32[]', space=smem, size = 0x4, offset = 0x4, fixed_abs, tag = 'smem constant byte address 0x4 - core index']
  #allocation1 [shape = 'u32[72,128]{1,0:T(1,128)}', space=vmem, size = 0x9000, scoped, tag = 'internal scratch']
  #allocation2 [shape = 'f32[16,32]{1,0:T(8,128)}', space=vmem, size = 0x2000, scoped, tag = 'scratch operand']
  %s0 = inlined_call_operand.vmem [shape: bf16[16,64], index: 0, kind: input, shape index: {}]
  %s1 = inlined_call_operand.vmem [shape: bf16[64,32], index: 1, kind: input, shape index: {}]
  %s2 = inlined_call_operand.vmem [shape: f32[1,32], index: 2, kind: input, shape index: {}]
  %s3 = inlined_call_operand.vmem [shape: bf16[16,32], index: 3, kind: input, shape index: {}]
  %s4 = inlined_call_operand.vmem [shape: f32[1,32], index: 4, kind: input, shape index: {}]
  %s5 = inlined_call_operand.vmem [shape: f32[1,32], index: 5, kind: input, shape index: {}]
  %s6 = inlined_call_operand.vmem [shape: bf16[16,32], index: 6, kind: output, shape index: {}]
  %s7 = sld [smem:[#allocation0]]
  $region42: #{post_model_forward.19} parent=0
    _
  %s9 = ssub.s32 1, %s7
  %s10 = scalar_select 0, %s9, %s7
  // Predicated region
  $region2: #{post_model_forward.19} parent=0 // pred_check
    _
  $region3: #{post_model_forward.19} parent=0 // pred_check_branch
    %12 = sbr.rel (0) target = $region5
  $region4: #{post_model_forward.19} parent=0 // pred_region
    _
  $region5: #{post_model_forward.19} parent=0 // pred_fallthru
    _
  // Predicated region
  $region6: #{post_model_forward.19} parent=0 // pred_check
    _
  $region7: #{post_model_forward.19} parent=0 // pred_check_branch
    %14 = sbr.rel (0) target = $region9
  $region8: #{post_model_forward.19} parent=0 // pred_region
    _
  $region9: #{post_model_forward.19} parent=0 // pred_fallthru
    _
  // Predicated region
  $region10: #{post_model_forward.19} parent=0 // pred_check
    _
  $region11: #{post_model_forward.19} parent=0 // pred_check_branch
    %16 = sbr.rel (0) target = $region13
  $region12: #{post_model_forward.19} parent=0 // pred_region
    _
  $region13: #{post_model_forward.19} parent=0 // pred_fallthru
    _
  // Predicated region
  $region14: #{post_model_forward.19} parent=0 // pred_check
    _
  $region15: #{post_model_forward.19} parent=0 // pred_check_branch
    %18 = sbr.rel (0) target = $region17
  $region16: #{post_model_forward.19} parent=0 // pred_region
    _
  $region17: #{post_model_forward.19} parent=0 // pred_fallthru
    _
  // Predicated region
  $region18: #{post_model_forward.19} parent=0 // pred_check
    _
  $region19: #{post_model_forward.19} parent=0 // pred_check_branch
    %20 = sbr.rel (0) target = $region21
  $region20: #{post_model_forward.19} parent=0 // pred_region
    _
  $region21: #{post_model_forward.19} parent=0 // pred_fallthru
    _
  // Predicated region
  $region22: #{post_model_forward.19} parent=0 // pred_check
    _
  $region23: #{post_model_forward.19} parent=0 // pred_check_branch
    %22 = sbr.rel (0) target = $region25
  $region24: #{post_model_forward.19} parent=0 // pred_region
    _
  $region25: #{post_model_forward.19} parent=0 // pred_fallthru
    _
  %p24 = scmp.eq.s32.totalorder 0, 0
  // Predicated region
  $region26: #{post_model_forward.19} parent=0 // pred_check
    %p25 = pneg %p24
  $region27: #{post_model_forward.19} parent=0 // pred_check_branch
    %27 = sbr.rel (%p25) target = $region29
  $region28: #{post_model_forward.19} parent=0 // pred_region
    %vm28 = vcmask 261120
    %29 = vst.msk [vmem:[#allocation2] sm:$0xff] %vm28, 0.0
    %30 = vst.msk [vmem:[#allocation2 + $0x8] sm:$0xff] %vm28, 0.0
  $region29: #{post_model_forward.19} parent=0 // pred_fallthru
    _
  %v31 = vld [vmem:[#allocation2] sm:$0xff]
  %v32 = vld [vmem:[#allocation2 + $0x8] sm:$0xff]
  %v33 = vld [vmem:[%s0] sm:$0xf]
  %v34 = vld [vmem:[%s0 + $0x4] sm:$0xf]
  %v35 = vld [vmem:[%s1] sm:$0xf]
  %v36 = vld [vmem:[%s1 + $0x4] sm:$0xf]
  %v37 = vld [vmem:[%s1 + $0x8] sm:$0xf]
  %v38 = vld [vmem:[%s1 + $0xc] sm:$0xf]
  %v39 = vld [vmem:[%s1 + $0x10] sm:$0xf]
  %v40 = vld [vmem:[%s1 + $0x14] sm:$0xf]
  %v41 = vld [vmem:[%s1 + $0x18] sm:$0xf]
  %v42 = vld [vmem:[%s1 + $0x1c] sm:$0xf]
  %v45 = vunpack.c.l.b16 %v33
  %v46 = vunpack.c.l.b16 %v34
  %v47 = vpack.c.b16 %v46, %v45
  %v56 = vunpack.c.l.b16 %v35
  %v57 = vunpack.c.l.b16 %v36
  %v58 = vunpack.c.l.b16 %v37
  %v59 = vunpack.c.l.b16 %v38
  %v60 = vunpack.c.l.b16 %v39
  %v61 = vunpack.c.l.b16 %v40
  %v62 = vunpack.c.l.b16 %v41
  %v63 = vunpack.c.l.b16 %v42
  %v64 = vpack.c.b16 %v57, %v56
  %v65 = vpack.c.b16 %v59, %v58
  %v66 = vpack.c.b16 %v61, %v60
  %v67 = vpack.c.b16 %v63, %v62
  %vm72 = vcmask 523264
  %v74 = vsel %vm72, %v47, 0
  %76 = vmatpush.bf16.msra.mxu0 0
  %77 = vmatpush.bf16.msra.mxu0 0
  %78 = vmatpush.bf16.msra.mxu0 0
  %79 = vmatpush.bf16.msra.mxu0 0
  %80 = vmatpush.bf16.msra.mxu0 %v67
  %81 = vmatpush.bf16.msra.mxu0 %v66
  %82 = vmatpush.bf16.msra.mxu0 %v65
  %83 = vmatpush.bf16.msra.mxu0 %v64
  %84 = vmatmul.bf16.gmra.mxu0 %v74
  %v85 = vpop.f32.mrf.mxu0
  %v86 = vadd.f32 0.0, %v85
  %v87 = vpop.f32.mrf.mxu0
  %v88 = vadd.f32 0.0, %v87
  %89 = vdwg.mxu0
  %v90 = vadd.f32 %v31, %v86
  %v91 = vadd.f32 %v32, %v88
  %vm92 = vcmask 261120
  %93 = vst.msk [vmem:[#allocation2] sm:$0xff] %vm92, %v90
  %94 = vst.msk [vmem:[#allocation2 + $0x8] sm:$0xff] %vm92, %v91
  // Predicated region
  $region30: #{post_model_forward.19} parent=0 // pred_check
    %p95 = pneg %p24
  $region31: #{post_model_forward.19} parent=0 // pred_check_branch
    %97 = sbr.rel (%p95) target = $region33
  $region32: #{post_model_forward.19} parent=0 // pred_region
    %v98 = vld [vmem:[#allocation2] sm:$0xff]
    %v99 = vld [vmem:[#allocation2 + $0x8] sm:$0xff]
    %v100 = vld [vmem:[%s2] sm:$0x1]
    %v102 = vperm.slane %v100, 0
    %v104 = vadd.f32 %v98, %v102
    %v105 = vadd.f32 %v99, %v102
    %v106 = vld [vmem:[%s3] sm:$0xf]
    %v107 = vld [vmem:[%s3 + $0x4] sm:$0xf]
    %v108 = vunpack.c.l.bf16 %v106
    %v109 = vunpack.c.l.bf16 %v107
    %v110 = vadd.f32 %v104, %v108
    %v111 = vadd.f32 %v105, %v109
    %v112 = vsel %vm92, %v110, 0.0
    %113 = vadd.xlane.f32.xlu0 %v112
    %v114 = vpop.xlane.xlu0 %113
    %v115 = vsel %vm92, %v111, 0.0
    %116 = vadd.xlane.f32.xlu0 %v115
    %v117 = vpop.xlane.xlu0 %116
    %v118 = vrcp.pop 32.0
    %v119 = vmul.f32 32.0, %v118
    %v120 = vsub.f32 1.0, %v119
    %v121 = vmul.f32 %v118, %v120
    %v122 = vadd.f32 %v118, %v121
    %vm123 = vweird.f32 %v118
    %v124 = vsel %vm123, %v118, %v122
    %v125 = vmul.f32 %v114, %v124
    %v126 = vmul.f32 %v117, %v124
    %v127 = vsub.f32 %v110, %v125
    %v128 = vsub.f32 %v111, %v126
    %v129 = vmul.f32 %v127, %v127
    %v130 = vmul.f32 %v128, %v128
    %v131 = vsel %vm92, %v129, 0.0
    %132 = vadd.xlane.f32.xlu0 %v131
    %v133 = vpop.xlane.xlu0 %132
    %v134 = vsel %vm92, %v130, 0.0
    %135 = vadd.xlane.f32.xlu0 %v134
    %v136 = vpop.xlane.xlu0 %135
    %v137 = vmul.f32 %v133, %v124
    %v138 = vmul.f32 %v136, %v124
    %v139 = vadd.f32 %v137, 1e-12
    %v140 = vadd.f32 %v138, 1e-12
    %v141 = vrsqrt.pop %v139
    %v142 = vmul.f32 %v141, %v139
    %v143 = vmul.f32 %v142, %v141
    %v144 = vmul.f32 0.5, %v143
    %v145 = vsub.f32 1.5, %v144
    %v146 = vmul.f32 %v141, %v145
    %vm147 = vweird.f32 %v139
    %vm148 = vweird.f32 %v141
    %vm149 = vmor %vm147, %vm148
    %v150 = vsel %vm149, %v141, %v146
    %v151 = vrsqrt.pop %v140
    %v152 = vmul.f32 %v151, %v140
    %v153 = vmul.f32 %v152, %v151
    %v154 = vmul.f32 0.5, %v153
    %v155 = vsub.f32 1.5, %v154
    %v156 = vmul.f32 %v151, %v155
    %vm157 = vweird.f32 %v140
    %vm158 = vweird.f32 %v151
    %vm159 = vmor %vm157, %vm158
    %v160 = vsel %vm159, %v151, %v156
    %v161 = vmul.f32 %v127, %v150
    %v162 = vmul.f32 %v128, %v160
    %v163 = vld [vmem:[%s4] sm:$0x1]
    %v165 = vperm.slane %v163, 0
    %v167 = vmul.f32 %v161, %v165
    %v168 = vmul.f32 %v162, %v165
    %v169 = vld [vmem:[%s5] sm:$0x1]
    %v171 = vperm.slane %v169, 0
    %v173 = vadd.f32 %v167, %v171
    %v174 = vadd.f32 %v168, %v171
    %v175 = vpack.c.bf16 %v173, %v173
    %v176 = vpack.c.bf16 %v174, %v174
    %vm177 = vcmask 257024
    %178 = vst.msk [vmem:[%s6] sm:$0xf] %vm177, %v175
    %179 = vst.msk [vmem:[%s6 + $0x4] sm:$0xf] %vm177, %v176
  $region33: #{post_model_forward.19} parent=0 // pred_fallthru
    _
  // Predicated region
  $region34: #{post_model_forward.19} parent=0 // pred_check
    _
  $region35: #{post_model_forward.19} parent=0 // pred_check_branch
    %181 = sbr.rel (0) target = $region37
  $region36: #{post_model_forward.19} parent=0 // pred_region
    _
  $region37: #{post_model_forward.19} parent=0 // pred_fallthru
    _
  // Predicated region
  $region38: #{post_model_forward.19} parent=0 // pred_check
    _
  $region39: #{post_model_forward.19} parent=0 // pred_check_branch
    %183 = sbr.rel (0) target = $region41
  $region40: #{post_model_forward.19} parent=0 // pred_region
    _
  $region41: #{post_model_forward.19} parent=0 // pred_fallthru
    _

// kernel: post_model_forward.27
$region0: #{post_model_forward.27}
  #allocation0 [shape = 'u32[]', space=smem, size = 0x4, offset = 0x4, fixed_abs, tag = 'smem constant byte address 0x4 - core index']
  #allocation1 [shape = 'u32[72,128]{1,0:T(1,128)}', space=vmem, size = 0x9000, scoped, tag = 'internal scratch']
  #allocation2 [shape = 'f32[16,1]{1,0:T(8,128)}', space=vmem, size = 0x2000, scoped, tag = 'scratch operand']
  #allocation3 [shape = 'f32[16,1]{1,0:T(8,128)}', space=vmem, size = 0x2000, scoped, tag = 'scratch operand']
  #allocation4 [shape = 'f32[16,1]{1,0:T(8,128)}', space=vmem, size = 0x2000, scoped, tag = 'scratch operand']
  %s0 = inlined_call_operand.vmem [shape: bf16[16,32], index: 0, kind: input, shape index: {}]
  %s1 = inlined_call_operand.vmem [shape: bf16[64,32], index: 1, kind: input, shape index: {}]
  %s2 = inlined_call_operand.vmem [shape: f32[1,64], index: 2, kind: input, shape index: {}]
  %s3 = inlined_call_operand.vmem [shape: s32[16,1], index: 3, kind: input, shape index: {}]
  %s4 = inlined_call_operand.vmem [shape: f32[16,1], index: 4, kind: output, shape index: {}]
  %s5 = sld [smem:[#allocation0]]
  $region34: #{post_model_forward.27} parent=0
    _
  %s7 = ssub.s32 1, %s5
  %s8 = scalar_select 0, %s7, %s5
  // Predicated region
  $region2: #{post_model_forward.27} parent=0 // pred_check
    _
  $region3: #{post_model_forward.27} parent=0 // pred_check_branch
    %10 = sbr.rel (0) target = $region5
  $region4: #{post_model_forward.27} parent=0 // pred_region
    _
  $region5: #{post_model_forward.27} parent=0 // pred_fallthru
    _
  // Predicated region
  $region6: #{post_model_forward.27} parent=0 // pred_check
    _
  $region7: #{post_model_forward.27} parent=0 // pred_check_branch
    %12 = sbr.rel (0) target = $region9
  $region8: #{post_model_forward.27} parent=0 // pred_region
    _
  $region9: #{post_model_forward.27} parent=0 // pred_fallthru
    _
  // Predicated region
  $region10: #{post_model_forward.27} parent=0 // pred_check
    _
  $region11: #{post_model_forward.27} parent=0 // pred_check_branch
    %14 = sbr.rel (0) target = $region13
  $region12: #{post_model_forward.27} parent=0 // pred_region
    _
  $region13: #{post_model_forward.27} parent=0 // pred_fallthru
    _
  // Predicated region
  $region14: #{post_model_forward.27} parent=0 // pred_check
    _
  $region15: #{post_model_forward.27} parent=0 // pred_check_branch
    %16 = sbr.rel (0) target = $region17
  $region16: #{post_model_forward.27} parent=0 // pred_region
    _
  $region17: #{post_model_forward.27} parent=0 // pred_fallthru
    _
  %p18 = scmp.eq.s32.totalorder 0, 0
  // Predicated region
  $region18: #{post_model_forward.27} parent=0 // pred_check
    %p19 = pneg %p18
  $region19: #{post_model_forward.27} parent=0 // pred_check_branch
    %21 = sbr.rel (%p19) target = $region21
  $region20: #{post_model_forward.27} parent=0 // pred_region
    %vm22 = vcmask 7168
    %23 = vst.msk [vmem:[#allocation2] sm:$0xff] %vm22, -inf
    %24 = vst.msk [vmem:[#allocation2 + $0x8] sm:$0xff] %vm22, -inf
    %25 = vst.msk [vmem:[#allocation3] sm:$0xff] %vm22, 0.0
    %26 = vst.msk [vmem:[#allocation3 + $0x8] sm:$0xff] %vm22, 0.0
    %27 = vst.msk [vmem:[#allocation4] sm:$0xff] %vm22, 0.0
    %28 = vst.msk [vmem:[#allocation4 + $0x8] sm:$0xff] %vm22, 0.0
  $region21: #{post_model_forward.27} parent=0 // pred_fallthru
    _
  %v29 = vld [vmem:[%s0] sm:$0xf]
  %v30 = vld [vmem:[%s0 + $0x4] sm:$0xf]
  %v31 = vld [vmem:[%s1] sm:$0xf]
  %v32 = vld [vmem:[%s1 + $0x4] sm:$0xf]
  %v33 = vld [vmem:[%s1 + $0x8] sm:$0xf]
  %v34 = vld [vmem:[%s1 + $0xc] sm:$0xf]
  %v35 = vld [vmem:[%s1 + $0x10] sm:$0xf]
  %v36 = vld [vmem:[%s1 + $0x14] sm:$0xf]
  %v37 = vld [vmem:[%s1 + $0x18] sm:$0xf]
  %v38 = vld [vmem:[%s1 + $0x1c] sm:$0xf]
  %v39 = vld [vmem:[%s2] sm:$0x1]
  %v41 = vperm.slane %v39, 0
  %v45 = vunpack.c.l.b16 %v29
  %v46 = vunpack.c.l.b16 %v30
  %v47 = vpack.c.b16 %v46, %v45
  %v56 = vunpack.c.l.b16 %v31
  %v57 = vunpack.c.l.b16 %v32
  %v58 = vunpack.c.l.b16 %v33
  %v59 = vunpack.c.l.b16 %v34
  %v60 = vunpack.c.l.b16 %v35
  %v61 = vunpack.c.l.b16 %v36
  %v62 = vunpack.c.l.b16 %v37
  %v63 = vunpack.c.l.b16 %v38
  %v64 = vpack.c.b16 %v57, %v56
  %v65 = vpack.c.b16 %v59, %v58
  %v66 = vpack.c.b16 %v61, %v60
  %v67 = vpack.c.b16 %v63, %v62
  %vm68 = vcmask 261120
  %v70 = vsel %vm68, %v47, 0
  %v73 = vsel %vm68, %v64, 0
  %v76 = vsel %vm68, %v65, 0
  %v79 = vsel %vm68, %v66, 0
  %v82 = vsel %vm68, %v67, 0
  %84 = vmatpush.bf16.xpose.msra.mxu0 0
  %85 = vmatpush.bf16.xpose.msra.mxu0 0
  %86 = vmatpush.bf16.xpose.msra.mxu0 0
  %87 = vmatpush.bf16.xpose.msra.mxu0 0
  %88 = vmatpush.bf16.xpose.msra.mxu0 %v82
  %89 = vmatpush.bf16.xpose.msra.mxu0 %v79
  %90 = vmatpush.bf16.xpose.msra.mxu0 %v76
  %91 = vmatpush.bf16.xpose.msra.mxu0 %v73
  %92 = vmatmul.bf16.gmra.mxu0 %v70
  %v93 = vpop.f32.mrf.mxu0
  %v94 = vadd.f32 %v41, %v93
  %v95 = vpop.f32.mrf.mxu0
  %v96 = vadd.f32 %v41, %v95
  %97 = vdwg.mxu0
  %v98 = vlaneseq
  %v99 = vand.u32 %v98, 127
  %s100 = smul.u32 0, 64
  %v101 = vstv %s100
  %v102 = vadd.s32 %v99, %v101
  %vm103 = vcmp.lt.s32.totalorder %v102, 64
  %v104 = vsel %vm103, %v94, -1e+30
  %v105 = vsel %vm103, %v96, -1e+30
  %v106 = vld [vmem:[#allocation2] sm:$0xff]
  %v107 = vld [vmem:[#allocation2 + $0x8] sm:$0xff]
  %vm108 = vcmask 523264
  %v109 = vsel %vm108, %v104, -inf
  %110 = vmax.xlane.f32.xlu0 %v109
  %v111 = vpop.xlane.xlu0 %110
  %v112 = vsel %vm108, %v105, -inf
  %113 = vmax.xlane.f32.xlu0 %v112
  %v114 = vpop.xlane.xlu0 %113
  %v115 = vmax.f32 %v106, %v111
  %v116 = vmax.f32 %v107, %v114
  %v117 = vld [vmem:[#allocation3] sm:$0xff]
  %v118 = vld [vmem:[#allocation3 + $0x8] sm:$0xff]
  %v119 = vsub.f32 %v106, %v115
  %v120 = vsub.f32 %v107, %v116
  %v121 = vmul.f32 %v119, 1.442695
  %v122 = vpow.pop %v121
  %v123 = vmul.f32 %v120, 1.442695
  %v124 = vpow.pop %v123
  %v125 = vmul.f32 %v117, %v122
  %v126 = vmul.f32 %v118, %v124
  %128 = vset.pattern.permute.xlu0 0
  %129 = vperm.xlu0 %128, %v115
  %v130 = vpop.permute.xlu0 %129
  %133 = vset.pattern.permute.xlu0 0
  %134 = vperm.xlu0 %133, %v116
  %v135 = vpop.permute.xlu0 %134
  %v137 = vsub.f32 %v104, %v130
  %v138 = vsub.f32 %v105, %v135
  %v139 = vmul.f32 %v137, 1.442695
  %v140 = vpow.pop %v139
  %v141 = vmul.f32 %v138, 1.442695
  %v142 = vpow.pop %v141
  %v143 = vsel %vm108, %v140, 0.0
  %144 = vadd.xlane.f32.xlu0 %v143
  %v145 = vpop.xlane.xlu0 %144
  %v146 = vsel %vm108, %v142, 0.0
  %147 = vadd.xlane.f32.xlu0 %v146
  %v148 = vpop.xlane.xlu0 %147
  %v149 = vadd.f32 %v125, %v145
  %v150 = vadd.f32 %v126, %v148
  %vm151 = vcmask 7168
  %152 = vst.msk [vmem:[#allocation3] sm:$0xff] %vm151, %v149
  %153 = vst.msk [vmem:[#allocation3 + $0x8] sm:$0xff] %vm151, %v150
  %154 = vst.msk [vmem:[#allocation2] sm:$0xff] %vm151, %v115
  %155 = vst.msk [vmem:[#allocation2 + $0x8] sm:$0xff] %vm151, %v116
  %v156 = vld [vmem:[%s3] sm:$0xff]
  %v157 = vld [vmem:[%s3 + $0x8] sm:$0xff]
  %158 = vset.pattern.permute.xlu0 0
  %159 = vperm.xlu0 %158, %v156
  %v160 = vpop.permute.xlu0 %159
  %161 = vset.pattern.permute.xlu0 0
  %162 = vperm.xlu0 %161, %v157
  %v163 = vpop.permute.xlu0 %162
  %vm164 = vcmp.eq.s32.totalorder %v102, %v160
  %vm165 = vcmp.eq.s32.totalorder %v102, %v163
  %v166 = vld [vmem:[#allocation4] sm:$0xff]
  %v167 = vld [vmem:[#allocation4 + $0x8] sm:$0xff]
  %v168 = vsel %vm164, %v104, 0.0
  %v169 = vsel %vm165, %v105, 0.0
  %v170 = vsel %vm108, %v168, 0.0
  %171 = vadd.xlane.f32.xlu0 %v170
  %v172 = vpop.xlane.xlu0 %171
  %v173 = vsel %vm108, %v169, 0.0
  %174 = vadd.xlane.f32.xlu0 %v173
  %v175 = vpop.xlane.xlu0 %174
  %v176 = vadd.f32 %v166, %v172
  %v177 = vadd.f32 %v167, %v175
  %178 = vst.msk [vmem:[#allocation4] sm:$0xff] %vm151, %v176
  %179 = vst.msk [vmem:[#allocation4 + $0x8] sm:$0xff] %vm151, %v177
  // Predicated region
  $region22: #{post_model_forward.27} parent=0 // pred_check
    %p180 = pneg %p18
  $region23: #{post_model_forward.27} parent=0 // pred_check_branch
    %182 = sbr.rel (%p180) target = $region25
  $region24: #{post_model_forward.27} parent=0 // pred_region
    %v183 = vld [vmem:[%s3] sm:$0xff]
    %v184 = vld [vmem:[%s3 + $0x8] sm:$0xff]
    %vm185 = vcmp.ne.s32.totalorder %v183, 4294967196
    %vm186 = vcmp.ne.s32.totalorder %v184, 4294967196
    %v187 = vld [vmem:[#allocation3] sm:$0xff]
    %v188 = vld [vmem:[#allocation3 + $0x8] sm:$0xff]
    %v189 = vlog2.pop %v187
    %v190 = vmul.f32 %v189, 0.6931472
    %v191 = vlog2.pop %v188
    %v192 = vmul.f32 %v191, 0.6931472
    %v193 = vld [vmem:[#allocation2] sm:$0xff]
    %v194 = vld [vmem:[#allocation2 + $0x8] sm:$0xff]
    %v195 = vadd.f32 %v190, %v193
    %v196 = vadd.f32 %v192, %v194
    %v197 = vld [vmem:[#allocation4] sm:$0xff]
    %v198 = vld [vmem:[#allocation4 + $0x8] sm:$0xff]
    %v199 = vsub.f32 %v195, %v197
    %v200 = vsub.f32 %v196, %v198
    %v201 = vsel %vm185, %v199, 0.0
    %v202 = vsel %vm186, %v200, 0.0
    %203 = vst.msk [vmem:[%s4] sm:$0xff] %vm151, %v201
    %204 = vst.msk [vmem:[%s4 + $0x8] sm:$0xff] %vm151, %v202
  $region25: #{post_model_forward.27} parent=0 // pred_fallthru
    _
  // Predicated region
  $region26: #{post_model_forward.27} parent=0 // pred_check
    _
  $region27: #{post_model_forward.27} parent=0 // pred_check_branch
    %206 = sbr.rel (0) target = $region29
  $region28: #{post_model_forward.27} parent=0 // pred_region
    _
  $region29: #{post_model_forward.27} parent=0 // pred_fallthru
    _
  // Predicated region
  $region30: #{post_model_forward.27} parent=0 // pred_check
    _
  $region31: #{post_model_forward.27} parent=0 // pred_check_branch
    %208 = sbr.rel (0) target = $region33
  $region32: #{post_model_forward.27} parent=0 // pred_region
    _
  $region33: #{post_model_forward.27} parent=0 // pred_fallthru
    _

</llo_original>
